<compile_context>
chip_gen: v6e
topology: v6e:2x2x1
jax: 0.10.0
libtpu: 0.0.40
codegen_flags: <defaults>
</compile_context>

<pallas_src>
import math

import jax
import jax.numpy as jnp
from jax.experimental import pallas as pl
from jax.experimental.pallas import tpu as pltpu


def _dma_copy_kernel(x_hbm_ref, o_hbm_ref, sem):
    # ComplexFlatten does no arithmetic: one DMA streams the whole (already
    # reshape-compatible) buffer at the HBM roofline.
    cp = pltpu.make_async_copy(x_hbm_ref, o_hbm_ref, sem)
    cp.start()
    cp.wait()


def _flattened_shape(dims, start_dim, end_dim):
    """nn.Flatten(start_dim, end_dim) applied to `dims` (complex axis excluded)."""
    r = len(dims)
    sd = start_dim if start_dim >= 0 else start_dim + r
    ed = end_dim if end_dim >= 0 else end_dim + r
    if not (0 <= sd < r) or not (0 <= ed < r) or sd > ed:
        raise ValueError(
            f"invalid flatten range start_dim={start_dim}, end_dim={end_dim} "
            f"for an input with {r} non-complex dims")
    return (tuple(dims[:sd])
            + (int(math.prod(dims[sd:ed + 1])),)
            + tuple(dims[ed + 1:]))


def complex_flatten(X, *, start_dim=1, end_dim=-1):
    """ComplexFlatten.forward.  X: (..., 2) with trailing [real, imag] axis."""
    *dims, two = X.shape
    if two != 2:
        raise ValueError("last axis of X must have size 2 ([real, imag])")
    out_shape = _flattened_shape(dims, start_dim, end_dim) + (2,)

    total = int(X.size)
    itemsize = jnp.dtype(X.dtype).itemsize

    # Flatten preserves row-major order and the complex axis is trailing, so
    # the forward pass is a contiguous reshape; this reshape is metadata-only.
    # The pallas_call supplies the physical copy as a single HBM->HBM DMA.
    # (If output were allowed to alias the input, even this copy could be
    #  dropped entirely; the DMA form is kept so the result is always a fresh
    #  buffer, matching torch.stack semantics.)
    x_view = X.reshape(out_shape)

    return pl.pallas_call(
        _dma_copy_kernel,
        out_shape=jax.ShapeDtypeStruct(out_shape, X.dtype),
        in_specs=[pl.BlockSpec(memory_space=pl.ANY)],
        out_specs=pl.BlockSpec(memory_space=pl.ANY),
        scratch_shapes=[pltpu.SemaphoreType.DMA(())],
        compiler_params=pltpu.CompilerParams(has_side_effects=True),
        cost_estimate=pl.CostEstimate(
            flops=0,
            transcendentals=0,
            bytes_accessed=2 * total * itemsize,
        ),
    )(x_view)


if __name__ == "__main__":
    key = jax.random.PRNGKey(0)

    # X: (N, C, D, H, W, 2) — trailing axis is [real, imag].  Small shapes.
    N, C, D, H, W = 2, 4, 8, 16, 16
    X = jax.random.normal(key, (N, C, D, H, W, 2), jnp.float32)

    fwd = jax.jit(complex_flatten)
    out = fwd(X)
    jax.block_until_ready(out)

    # Reference: apply_complex_sep(nn.Flatten(1, -1), nn.Flatten(1, -1), X)
    ref = jnp.stack(
        (X[..., 0].reshape(N, -1), X[..., 1].reshape(N, -1)), axis=-1)

    assert out.shape == (N, C * D * H * W, 2), out.shape
    assert out.dtype == jnp.float32
    assert bool(jnp.array_equal(out, ref)), "mismatch vs. reference flatten"

    # Also exercise a non-default flatten range (end_dim before the last dim).
    out_partial = jax.jit(
        lambda x: complex_flatten(x, start_dim=1, end_dim=3))(X)
    jax.block_until_ready(out_partial)
    ref_partial = jnp.stack(
        (X[..., 0].reshape(N, C * D * H, W),
         X[..., 1].reshape(N, C * D * H, W)), axis=-1)
    assert out_partial.shape == (N, C * D * H, W, 2), out_partial.shape
    assert bool(jnp.array_equal(out_partial, ref_partial))

    # Awkward (non-128-multiple) shape: previously hit the degenerate fallback;
    # the DMA copy has no divisibility constraints at all.
    X_odd = jax.random.normal(key, (3, 5, 7, 2), jnp.bfloat16)
    out_odd = jax.jit(complex_flatten)(X_odd)
    jax.block_until_ready(out_odd)
    ref_odd = jnp.stack(
        (X_odd[..., 0].reshape(3, -1), X_odd[..., 1].reshape(3, -1)), axis=-1)
    assert out_odd.shape == (3, 35, 2)
    assert bool(jnp.array_equal(out_odd, ref_odd))

    print("KERNEL_OK")
</pallas_src>

<mosaic_0001>
module attributes {stable_mosaic.version = 11 : i64} {
  func.func @_dma_copy_kernel(%arg0: memref<2x8192x2xf32, #tpu.memory_space<any>>, %arg1: memref<2x8192x2xf32, #tpu.memory_space<any>>, %arg2: memref<!tpu.dma_semaphore, #tpu.memory_space<semaphore_mem>>) attributes {dimension_semantics = [], scalar_prefetch = 0 : i64, scratch_operands = 1 : i64, tpu.core_type = #tpu.core_type<tc>} {
    tpu.enqueue_dma source(%arg0 : memref<2x8192x2xf32, #tpu.memory_space<any>>) target(%arg1 : memref<2x8192x2xf32, #tpu.memory_space<any>>) target_semaphore(%arg2 : memref<!tpu.dma_semaphore, #tpu.memory_space<semaphore_mem>>)
    tpu.wait_dma2 semaphore(%arg2 : memref<!tpu.dma_semaphore, #tpu.memory_space<semaphore_mem>>) src(%arg0 : memref<2x8192x2xf32, #tpu.memory_space<any>>) dst(%arg1 : memref<2x8192x2xf32, #tpu.memory_space<any>>)
    return
  }
}

</mosaic_0001>

<llo_original>
// kernel: complex_flatten.1
$region0: #{complex_flatten.1}
  #allocation0 [shape = 'u32[]', space=smem, size = 0x4, offset = 0x4, fixed_abs, tag = 'smem constant byte address 0x4 - core index']
  #allocation1 [shape = 'u32[144,128]{1,0:T(1,128)}', space=vmem, size = 0x12000, scoped, tag = 'internal scratch']
  #allocation2 [shape = 's32[1]{0}', space=sflag, size = 0x4, scoped, tag = 'scratch operand']
  #allocation3 [shape = 's32[]', space=sflag, size = 0x4, offset = 0, fixed_abs, tag = 'sflag constant byte address 0x0 - dummy sync flag']
  %s0 = inlined_call_operand.vmem [shape: f32[2,8192,2], index: 0, kind: input, shape index: {}]
  %s1 = inlined_call_operand.vmem [shape: f32[2,8192,2], index: 1, kind: output, shape index: {}]
  %s2 = sld [smem:[#allocation0]]
  $region36: #{complex_flatten.1} parent=0
    _
  %s4 = ssub.s32 1, %s2
  %s5 = scalar_select 0, %s4, %s2
  %p7 = scmp.lt.u32.totalorder 16384, 8
  %p8 = pneg %p7
  // Predicated region
  $region2: #{complex_flatten.1} parent=0 // pred_check
    _
  $region3: #{complex_flatten.1} parent=0 // pred_check_branch
    %10 = sbr.rel (%p7) target = $region5
  $region4: #{complex_flatten.1} parent=0 // pred_region
    %s26 = sand.u32 16384, 7
    %p27 = scmp.eq.s32.totalorder %s26, 0
    // Predicated region
    $region17: #{complex_flatten.1} parent=4 // pred_check
      %p28 = pneg %p27
    $region18: #{complex_flatten.1} parent=4 // pred_check_branch
      %30 = sbr.rel (%p28) target = $region20
    $region19: #{complex_flatten.1} parent=4 // pred_region
      loop: start=0, step=1, limit=1
      $region21: #{complex_flatten.1} parent=19 // loop_pre_header
        _
      $region22: #{complex_flatten.1} parent=19 // loop_header
        %s32 = sphi 0, %s36
        %p33 = scmp.ge.s32.totalorder %s32, 1
        %s37 = sphi %s0, %s0
        %s38 = sphi %s1, %s1
      $region23: #{complex_flatten.1} parent=19 // loop_header_branch
        %35 = sbr.rel (%p33) target = $region27
      $region24: #{complex_flatten.1} parent=19 // loop_body
        %v39 = vld [vmem:[%s37] sm:$0xff]
        %40 = vst [vmem:[%s38] sm:$0xff] %v39
        %v41 = vld [vmem:[%s37 + $0x8] sm:$0xff]
        %42 = vst [vmem:[%s38 + $0x8] sm:$0xff] %v41
        %v43 = vld [vmem:[%s37 + $0x10] sm:$0xff]
        %44 = vst [vmem:[%s38 + $0x10] sm:$0xff] %v43
        %v45 = vld [vmem:[%s37 + $0x18] sm:$0xff]
        %46 = vst [vmem:[%s38 + $0x18] sm:$0xff] %v45
        %v47 = vld [vmem:[%s37 + $0x20] sm:$0xff]
        %48 = vst [vmem:[%s38 + $0x20] sm:$0xff] %v47
        %v49 = vld [vmem:[%s37 + $0x28] sm:$0xff]
        %50 = vst [vmem:[%s38 + $0x28] sm:$0xff] %v49
        %v51 = vld [vmem:[%s37 + $0x30] sm:$0xff]
        %52 = vst [vmem:[%s38 + $0x30] sm:$0xff] %v51
        %v53 = vld [vmem:[%s37 + $0x38] sm:$0xff]
        %54 = vst [vmem:[%s38 + $0x38] sm:$0xff] %v53
        %v55 = vld [vmem:[%s37 + $0x40] sm:$0xff]
        %56 = vst [vmem:[%s38 + $0x40] sm:$0xff] %v55
        %v57 = vld [vmem:[%s37 + $0x48] sm:$0xff]
        %58 = vst [vmem:[%s38 + $0x48] sm:$0xff] %v57
        %v59 = vld [vmem:[%s37 + $0x50] sm:$0xff]
        %60 = vst [vmem:[%s38 + $0x50] sm:$0xff] %v59
        %v61 = vld [vmem:[%s37 + $0x58] sm:$0xff]
        %62 = vst [vmem:[%s38 + $0x58] sm:$0xff] %v61
        %v63 = vld [vmem:[%s37 + $0x60] sm:$0xff]
        %64 = vst [vmem:[%s38 + $0x60] sm:$0xff] %v63
        %v65 = vld [vmem:[%s37 + $0x68] sm:$0xff]
        %66 = vst [vmem:[%s38 + $0x68] sm:$0xff] %v65
        %v67 = vld [vmem:[%s37 + $0x70] sm:$0xff]
        %68 = vst [vmem:[%s38 + $0x70] sm:$0xff] %v67
        %v69 = vld [vmem:[%s37 + $0x78] sm:$0xff]
        %70 = vst [vmem:[%s38 + $0x78] sm:$0xff] %v69
        %v71 = vld [vmem:[%s37 + $0x80] sm:$0xff]
        %72 = vst [vmem:[%s38 + $0x80] sm:$0xff] %v71
        %v73 = vld [vmem:[%s37 + $0x88] sm:$0xff]
        %74 = vst [vmem:[%s38 + $0x88] sm:$0xff] %v73
        %v75 = vld [vmem:[%s37 + $0x90] sm:$0xff]
        %76 = vst [vmem:[%s38 + $0x90] sm:$0xff] %v75
        %v77 = vld [vmem:[%s37 + $0x98] sm:$0xff]
        %78 = vst [vmem:[%s38 + $0x98] sm:$0xff] %v77
        %v79 = vld [vmem:[%s37 + $0xa0] sm:$0xff]
        %80 = vst [vmem:[%s38 + $0xa0] sm:$0xff] %v79
        %v81 = vld [vmem:[%s37 + $0xa8] sm:$0xff]
        %82 = vst [vmem:[%s38 + $0xa8] sm:$0xff] %v81
        %v83 = vld [vmem:[%s37 + $0xb0] sm:$0xff]
        %84 = vst [vmem:[%s38 + $0xb0] sm:$0xff] %v83
        %v85 = vld [vmem:[%s37 + $0xb8] sm:$0xff]
        %86 = vst [vmem:[%s38 + $0xb8] sm:$0xff] %v85
        %v87 = vld [vmem:[%s37 + $0xc0] sm:$0xff]
        %88 = vst [vmem:[%s38 + $0xc0] sm:$0xff] %v87
        %v89 = vld [vmem:[%s37 + $0xc8] sm:$0xff]
        %90 = vst [vmem:[%s38 + $0xc8] sm:$0xff] %v89
        %v91 = vld [vmem:[%s37 + $0xd0] sm:$0xff]
        %92 = vst [vmem:[%s38 + $0xd0] sm:$0xff] %v91
        %v93 = vld [vmem:[%s37 + $0xd8] sm:$0xff]
        %94 = vst [vmem:[%s38 + $0xd8] sm:$0xff] %v93
        %v95 = vld [vmem:[%s37 + $0xe0] sm:$0xff]
        %96 = vst [vmem:[%s38 + $0xe0] sm:$0xff] %v95
        %v97 = vld [vmem:[%s37 + $0xe8] sm:$0xff]
        %98 = vst [vmem:[%s38 + $0xe8] sm:$0xff] %v97
        %v99 = vld [vmem:[%s37 + $0xf0] sm:$0xff]
        %100 = vst [vmem:[%s38 + $0xf0] sm:$0xff] %v99
        %v101 = vld [vmem:[%s37 + $0xf8] sm:$0xff]
        %102 = vst [vmem:[%s38 + $0xf8] sm:$0xff] %v101
        %v103 = vld [vmem:[%s37 + $0x100] sm:$0xff]
        %104 = vst [vmem:[%s38 + $0x100] sm:$0xff] %v103
        %v105 = vld [vmem:[%s37 + $0x108] sm:$0xff]
        %106 = vst [vmem:[%s38 + $0x108] sm:$0xff] %v105
        %v107 = vld [vmem:[%s37 + $0x110] sm:$0xff]
        %108 = vst [vmem:[%s38 + $0x110] sm:$0xff] %v107
        %v109 = vld [vmem:[%s37 + $0x118] sm:$0xff]
        %110 = vst [vmem:[%s38 + $0x118] sm:$0xff] %v109
        %v111 = vld [vmem:[%s37 + $0x120] sm:$0xff]
        %112 = vst [vmem:[%s38 + $0x120] sm:$0xff] %v111
        %v113 = vld [vmem:[%s37 + $0x128] sm:$0xff]
        %114 = vst [vmem:[%s38 + $0x128] sm:$0xff] %v113
        %v115 = vld [vmem:[%s37 + $0x130] sm:$0xff]
        %116 = vst [vmem:[%s38 + $0x130] sm:$0xff] %v115
        %v117 = vld [vmem:[%s37 + $0x138] sm:$0xff]
        %118 = vst [vmem:[%s38 + $0x138] sm:$0xff] %v117
        %v119 = vld [vmem:[%s37 + $0x140] sm:$0xff]
        %120 = vst [vmem:[%s38 + $0x140] sm:$0xff] %v119
        %v121 = vld [vmem:[%s37 + $0x148] sm:$0xff]
        %122 = vst [vmem:[%s38 + $0x148] sm:$0xff] %v121
        %v123 = vld [vmem:[%s37 + $0x150] sm:$0xff]
        %124 = vst [vmem:[%s38 + $0x150] sm:$0xff] %v123
        %v125 = vld [vmem:[%s37 + $0x158] sm:$0xff]
        %126 = vst [vmem:[%s38 + $0x158] sm:$0xff] %v125
        %v127 = vld [vmem:[%s37 + $0x160] sm:$0xff]
        %128 = vst [vmem:[%s38 + $0x160] sm:$0xff] %v127
        %v129 = vld [vmem:[%s37 + $0x168] sm:$0xff]
        %130 = vst [vmem:[%s38 + $0x168] sm:$0xff] %v129
        %v131 = vld [vmem:[%s37 + $0x170] sm:$0xff]
        %132 = vst [vmem:[%s38 + $0x170] sm:$0xff] %v131
        %v133 = vld [vmem:[%s37 + $0x178] sm:$0xff]
        %134 = vst [vmem:[%s38 + $0x178] sm:$0xff] %v133
        %v135 = vld [vmem:[%s37 + $0x180] sm:$0xff]
        %136 = vst [vmem:[%s38 + $0x180] sm:$0xff] %v135
        %v137 = vld [vmem:[%s37 + $0x188] sm:$0xff]
        %138 = vst [vmem:[%s38 + $0x188] sm:$0xff] %v137
        %v139 = vld [vmem:[%s37 + $0x190] sm:$0xff]
        %140 = vst [vmem:[%s38 + $0x190] sm:$0xff] %v139
        %v141 = vld [vmem:[%s37 + $0x198] sm:$0xff]
        %142 = vst [vmem:[%s38 + $0x198] sm:$0xff] %v141
        %v143 = vld [vmem:[%s37 + $0x1a0] sm:$0xff]
        %144 = vst [vmem:[%s38 + $0x1a0] sm:$0xff] %v143
        %v145 = vld [vmem:[%s37 + $0x1a8] sm:$0xff]
        %146 = vst [vmem:[%s38 + $0x1a8] sm:$0xff] %v145
        %v147 = vld [vmem:[%s37 + $0x1b0] sm:$0xff]
        %148 = vst [vmem:[%s38 + $0x1b0] sm:$0xff] %v147
        %v149 = vld [vmem:[%s37 + $0x1b8] sm:$0xff]
        %150 = vst [vmem:[%s38 + $0x1b8] sm:$0xff] %v149
        %v151 = vld [vmem:[%s37 + $0x1c0] sm:$0xff]
        %152 = vst [vmem:[%s38 + $0x1c0] sm:$0xff] %v151
        %v153 = vld [vmem:[%s37 + $0x1c8] sm:$0xff]
        %154 = vst [vmem:[%s38 + $0x1c8] sm:$0xff] %v153
        %v155 = vld [vmem:[%s37 + $0x1d0] sm:$0xff]
        %156 = vst [vmem:[%s38 + $0x1d0] sm:$0xff] %v155
        %v157 = vld [vmem:[%s37 + $0x1d8] sm:$0xff]
        %158 = vst [vmem:[%s38 + $0x1d8] sm:$0xff] %v157
        %v159 = vld [vmem:[%s37 + $0x1e0] sm:$0xff]
        %160 = vst [vmem:[%s38 + $0x1e0] sm:$0xff] %v159
        %v161 = vld [vmem:[%s37 + $0x1e8] sm:$0xff]
        %162 = vst [vmem:[%s38 + $0x1e8] sm:$0xff] %v161
        %v163 = vld [vmem:[%s37 + $0x1f0] sm:$0xff]
        %164 = vst [vmem:[%s38 + $0x1f0] sm:$0xff] %v163
        %v165 = vld [vmem:[%s37 + $0x1f8] sm:$0xff]
        %166 = vst [vmem:[%s38 + $0x1f8] sm:$0xff] %v165
        %v167 = vld [vmem:[%s37 + $0x200] sm:$0xff]
        %168 = vst [vmem:[%s38 + $0x200] sm:$0xff] %v167
        %v169 = vld [vmem:[%s37 + $0x208] sm:$0xff]
        %170 = vst [vmem:[%s38 + $0x208] sm:$0xff] %v169
        %v171 = vld [vmem:[%s37 + $0x210] sm:$0xff]
        %172 = vst [vmem:[%s38 + $0x210] sm:$0xff] %v171
        %v173 = vld [vmem:[%s37 + $0x218] sm:$0xff]
        %174 = vst [vmem:[%s38 + $0x218] sm:$0xff] %v173
        %v175 = vld [vmem:[%s37 + $0x220] sm:$0xff]
        %176 = vst [vmem:[%s38 + $0x220] sm:$0xff] %v175
        %v177 = vld [vmem:[%s37 + $0x228] sm:$0xff]
        %178 = vst [vmem:[%s38 + $0x228] sm:$0xff] %v177
        %v179 = vld [vmem:[%s37 + $0x230] sm:$0xff]
        %180 = vst [vmem:[%s38 + $0x230] sm:$0xff] %v179
        %v181 = vld [vmem:[%s37 + $0x238] sm:$0xff]
        %182 = vst [vmem:[%s38 + $0x238] sm:$0xff] %v181
        %v183 = vld [vmem:[%s37 + $0x240] sm:$0xff]
        %184 = vst [vmem:[%s38 + $0x240] sm:$0xff] %v183
        %v185 = vld [vmem:[%s37 + $0x248] sm:$0xff]
        %186 = vst [vmem:[%s38 + $0x248] sm:$0xff] %v185
        %v187 = vld [vmem:[%s37 + $0x250] sm:$0xff]
        %188 = vst [vmem:[%s38 + $0x250] sm:$0xff] %v187
        %v189 = vld [vmem:[%s37 + $0x258] sm:$0xff]
        %190 = vst [vmem:[%s38 + $0x258] sm:$0xff] %v189
        %v191 = vld [vmem:[%s37 + $0x260] sm:$0xff]
        %192 = vst [vmem:[%s38 + $0x260] sm:$0xff] %v191
        %v193 = vld [vmem:[%s37 + $0x268] sm:$0xff]
        %194 = vst [vmem:[%s38 + $0x268] sm:$0xff] %v193
        %v195 = vld [vmem:[%s37 + $0x270] sm:$0xff]
        %196 = vst [vmem:[%s38 + $0x270] sm:$0xff] %v195
        %v197 = vld [vmem:[%s37 + $0x278] sm:$0xff]
        %198 = vst [vmem:[%s38 + $0x278] sm:$0xff] %v197
        %v199 = vld [vmem:[%s37 + $0x280] sm:$0xff]
        %200 = vst [vmem:[%s38 + $0x280] sm:$0xff] %v199
        %v201 = vld [vmem:[%s37 + $0x288] sm:$0xff]
        %202 = vst [vmem:[%s38 + $0x288] sm:$0xff] %v201
        %v203 = vld [vmem:[%s37 + $0x290] sm:$0xff]
        %204 = vst [vmem:[%s38 + $0x290] sm:$0xff] %v203
        %v205 = vld [vmem:[%s37 + $0x298] sm:$0xff]
        %206 = vst [vmem:[%s38 + $0x298] sm:$0xff] %v205
        %v207 = vld [vmem:[%s37 + $0x2a0] sm:$0xff]
        %208 = vst [vmem:[%s38 + $0x2a0] sm:$0xff] %v207
        %v209 = vld [vmem:[%s37 + $0x2a8] sm:$0xff]
        %210 = vst [vmem:[%s38 + $0x2a8] sm:$0xff] %v209
        %v211 = vld [vmem:[%s37 + $0x2b0] sm:$0xff]
        %212 = vst [vmem:[%s38 + $0x2b0] sm:$0xff] %v211
        %v213 = vld [vmem:[%s37 + $0x2b8] sm:$0xff]
        %214 = vst [vmem:[%s38 + $0x2b8] sm:$0xff] %v213
        %v215 = vld [vmem:[%s37 + $0x2c0] sm:$0xff]
        %216 = vst [vmem:[%s38 + $0x2c0] sm:$0xff] %v215
        %v217 = vld [vmem:[%s37 + $0x2c8] sm:$0xff]
        %218 = vst [vmem:[%s38 + $0x2c8] sm:$0xff] %v217
        %v219 = vld [vmem:[%s37 + $0x2d0] sm:$0xff]
        %220 = vst [vmem:[%s38 + $0x2d0] sm:$0xff] %v219
        %v221 = vld [vmem:[%s37 + $0x2d8] sm:$0xff]
        %222 = vst [vmem:[%s38 + $0x2d8] sm:$0xff] %v221
        %v223 = vld [vmem:[%s37 + $0x2e0] sm:$0xff]
        %224 = vst [vmem:[%s38 + $0x2e0] sm:$0xff] %v223
        %v225 = vld [vmem:[%s37 + $0x2e8] sm:$0xff]
        %226 = vst [vmem:[%s38 + $0x2e8] sm:$0xff] %v225
        %v227 = vld [vmem:[%s37 + $0x2f0] sm:$0xff]
        %228 = vst [vmem:[%s38 + $0x2f0] sm:$0xff] %v227
        %v229 = vld [vmem:[%s37 + $0x2f8] sm:$0xff]
        %230 = vst [vmem:[%s38 + $0x2f8] sm:$0xff] %v229
        %v231 = vld [vmem:[%s37 + $0x300] sm:$0xff]
        %232 = vst [vmem:[%s38 + $0x300] sm:$0xff] %v231
        %v233 = vld [vmem:[%s37 + $0x308] sm:$0xff]
        %234 = vst [vmem:[%s38 + $0x308] sm:$0xff] %v233
        %v235 = vld [vmem:[%s37 + $0x310] sm:$0xff]
        %236 = vst [vmem:[%s38 + $0x310] sm:$0xff] %v235
        %v237 = vld [vmem:[%s37 + $0x318] sm:$0xff]
        %238 = vst [vmem:[%s38 + $0x318] sm:$0xff] %v237
        %v239 = vld [vmem:[%s37 + $0x320] sm:$0xff]
        %240 = vst [vmem:[%s38 + $0x320] sm:$0xff] %v239
        %v241 = vld [vmem:[%s37 + $0x328] sm:$0xff]
        %242 = vst [vmem:[%s38 + $0x328] sm:$0xff] %v241
        %v243 = vld [vmem:[%s37 + $0x330] sm:$0xff]
        %244 = vst [vmem:[%s38 + $0x330] sm:$0xff] %v243
        %v245 = vld [vmem:[%s37 + $0x338] sm:$0xff]
        %246 = vst [vmem:[%s38 + $0x338] sm:$0xff] %v245
        %v247 = vld [vmem:[%s37 + $0x340] sm:$0xff]
        %248 = vst [vmem:[%s38 + $0x340] sm:$0xff] %v247
        %v249 = vld [vmem:[%s37 + $0x348] sm:$0xff]
        %250 = vst [vmem:[%s38 + $0x348] sm:$0xff] %v249
        %v251 = vld [vmem:[%s37 + $0x350] sm:$0xff]
        %252 = vst [vmem:[%s38 + $0x350] sm:$0xff] %v251
        %v253 = vld [vmem:[%s37 + $0x358] sm:$0xff]
        %254 = vst [vmem:[%s38 + $0x358] sm:$0xff] %v253
        %v255 = vld [vmem:[%s37 + $0x360] sm:$0xff]
        %256 = vst [vmem:[%s38 + $0x360] sm:$0xff] %v255
        %v257 = vld [vmem:[%s37 + $0x368] sm:$0xff]
        %258 = vst [vmem:[%s38 + $0x368] sm:$0xff] %v257
        %v259 = vld [vmem:[%s37 + $0x370] sm:$0xff]
        %260 = vst [vmem:[%s38 + $0x370] sm:$0xff] %v259
        %v261 = vld [vmem:[%s37 + $0x378] sm:$0xff]
        %262 = vst [vmem:[%s38 + $0x378] sm:$0xff] %v261
        %v263 = vld [vmem:[%s37 + $0x380] sm:$0xff]
        %264 = vst [vmem:[%s38 + $0x380] sm:$0xff] %v263
        %v265 = vld [vmem:[%s37 + $0x388] sm:$0xff]
        %266 = vst [vmem:[%s38 + $0x388] sm:$0xff] %v265
        %v267 = vld [vmem:[%s37 + $0x390] sm:$0xff]
        %268 = vst [vmem:[%s38 + $0x390] sm:$0xff] %v267
        %v269 = vld [vmem:[%s37 + $0x398] sm:$0xff]
        %270 = vst [vmem:[%s38 + $0x398] sm:$0xff] %v269
        %v271 = vld [vmem:[%s37 + $0x3a0] sm:$0xff]
        %272 = vst [vmem:[%s38 + $0x3a0] sm:$0xff] %v271
        %v273 = vld [vmem:[%s37 + $0x3a8] sm:$0xff]
        %274 = vst [vmem:[%s38 + $0x3a8] sm:$0xff] %v273
        %v275 = vld [vmem:[%s37 + $0x3b0] sm:$0xff]
        %276 = vst [vmem:[%s38 + $0x3b0] sm:$0xff] %v275
        %v277 = vld [vmem:[%s37 + $0x3b8] sm:$0xff]
        %278 = vst [vmem:[%s38 + $0x3b8] sm:$0xff] %v277
        %v279 = vld [vmem:[%s37 + $0x3c0] sm:$0xff]
        %280 = vst [vmem:[%s38 + $0x3c0] sm:$0xff] %v279
        %v281 = vld [vmem:[%s37 + $0x3c8] sm:$0xff]
        %282 = vst [vmem:[%s38 + $0x3c8] sm:$0xff] %v281
        %v283 = vld [vmem:[%s37 + $0x3d0] sm:$0xff]
        %284 = vst [vmem:[%s38 + $0x3d0] sm:$0xff] %v283
        %v285 = vld [vmem:[%s37 + $0x3d8] sm:$0xff]
        %286 = vst [vmem:[%s38 + $0x3d8] sm:$0xff] %v285
        %v287 = vld [vmem:[%s37 + $0x3e0] sm:$0xff]
        %288 = vst [vmem:[%s38 + $0x3e0] sm:$0xff] %v287
        %v289 = vld [vmem:[%s37 + $0x3e8] sm:$0xff]
        %290 = vst [vmem:[%s38 + $0x3e8] sm:$0xff] %v289
        %v291 = vld [vmem:[%s37 + $0x3f0] sm:$0xff]
        %292 = vst [vmem:[%s38 + $0x3f0] sm:$0xff] %v291
        %v293 = vld [vmem:[%s37 + $0x3f8] sm:$0xff]
        %294 = vst [vmem:[%s38 + $0x3f8] sm:$0xff] %v293
        %v295 = vld [vmem:[%s37 + $0x400] sm:$0xff]
        %296 = vst [vmem:[%s38 + $0x400] sm:$0xff] %v295
        %v297 = vld [vmem:[%s37 + $0x408] sm:$0xff]
        %298 = vst [vmem:[%s38 + $0x408] sm:$0xff] %v297
        %v299 = vld [vmem:[%s37 + $0x410] sm:$0xff]
        %300 = vst [vmem:[%s38 + $0x410] sm:$0xff] %v299
        %v301 = vld [vmem:[%s37 + $0x418] sm:$0xff]
        %302 = vst [vmem:[%s38 + $0x418] sm:$0xff] %v301
        %v303 = vld [vmem:[%s37 + $0x420] sm:$0xff]
        %304 = vst [vmem:[%s38 + $0x420] sm:$0xff] %v303
        %v305 = vld [vmem:[%s37 + $0x428] sm:$0xff]
        %306 = vst [vmem:[%s38 + $0x428] sm:$0xff] %v305
        %v307 = vld [vmem:[%s37 + $0x430] sm:$0xff]
        %308 = vst [vmem:[%s38 + $0x430] sm:$0xff] %v307
        %v309 = vld [vmem:[%s37 + $0x438] sm:$0xff]
        %310 = vst [vmem:[%s38 + $0x438] sm:$0xff] %v309
        %v311 = vld [vmem:[%s37 + $0x440] sm:$0xff]
        %312 = vst [vmem:[%s38 + $0x440] sm:$0xff] %v311
        %v313 = vld [vmem:[%s37 + $0x448] sm:$0xff]
        %314 = vst [vmem:[%s38 + $0x448] sm:$0xff] %v313
        %v315 = vld [vmem:[%s37 + $0x450] sm:$0xff]
        %316 = vst [vmem:[%s38 + $0x450] sm:$0xff] %v315
        %v317 = vld [vmem:[%s37 + $0x458] sm:$0xff]
        %318 = vst [vmem:[%s38 + $0x458] sm:$0xff] %v317
        %v319 = vld [vmem:[%s37 + $0x460] sm:$0xff]
        %320 = vst [vmem:[%s38 + $0x460] sm:$0xff] %v319
        %v321 = vld [vmem:[%s37 + $0x468] sm:$0xff]
        %322 = vst [vmem:[%s38 + $0x468] sm:$0xff] %v321
        %v323 = vld [vmem:[%s37 + $0x470] sm:$0xff]
        %324 = vst [vmem:[%s38 + $0x470] sm:$0xff] %v323
        %v325 = vld [vmem:[%s37 + $0x478] sm:$0xff]
        %326 = vst [vmem:[%s38 + $0x478] sm:$0xff] %v325
        %v327 = vld [vmem:[%s37 + $0x480] sm:$0xff]
        %328 = vst [vmem:[%s38 + $0x480] sm:$0xff] %v327
        %v329 = vld [vmem:[%s37 + $0x488] sm:$0xff]
        %330 = vst [vmem:[%s38 + $0x488] sm:$0xff] %v329
        %v331 = vld [vmem:[%s37 + $0x490] sm:$0xff]
        %332 = vst [vmem:[%s38 + $0x490] sm:$0xff] %v331
        %v333 = vld [vmem:[%s37 + $0x498] sm:$0xff]
        %334 = vst [vmem:[%s38 + $0x498] sm:$0xff] %v333
        %v335 = vld [vmem:[%s37 + $0x4a0] sm:$0xff]
        %336 = vst [vmem:[%s38 + $0x4a0] sm:$0xff] %v335
        %v337 = vld [vmem:[%s37 + $0x4a8] sm:$0xff]
        %338 = vst [vmem:[%s38 + $0x4a8] sm:$0xff] %v337
        %v339 = vld [vmem:[%s37 + $0x4b0] sm:$0xff]
        %340 = vst [vmem:[%s38 + $0x4b0] sm:$0xff] %v339
        %v341 = vld [vmem:[%s37 + $0x4b8] sm:$0xff]
        %342 = vst [vmem:[%s38 + $0x4b8] sm:$0xff] %v341
        %v343 = vld [vmem:[%s37 + $0x4c0] sm:$0xff]
        %344 = vst [vmem:[%s38 + $0x4c0] sm:$0xff] %v343
        %v345 = vld [vmem:[%s37 + $0x4c8] sm:$0xff]
        %346 = vst [vmem:[%s38 + $0x4c8] sm:$0xff] %v345
        %v347 = vld [vmem:[%s37 + $0x4d0] sm:$0xff]
        %348 = vst [vmem:[%s38 + $0x4d0] sm:$0xff] %v347
        %v349 = vld [vmem:[%s37 + $0x4d8] sm:$0xff]
        %350 = vst [vmem:[%s38 + $0x4d8] sm:$0xff] %v349
        %v351 = vld [vmem:[%s37 + $0x4e0] sm:$0xff]
        %352 = vst [vmem:[%s38 + $0x4e0] sm:$0xff] %v351
        %v353 = vld [vmem:[%s37 + $0x4e8] sm:$0xff]
        %354 = vst [vmem:[%s38 + $0x4e8] sm:$0xff] %v353
        %v355 = vld [vmem:[%s37 + $0x4f0] sm:$0xff]
        %356 = vst [vmem:[%s38 + $0x4f0] sm:$0xff] %v355
        %v357 = vld [vmem:[%s37 + $0x4f8] sm:$0xff]
        %358 = vst [vmem:[%s38 + $0x4f8] sm:$0xff] %v357
        %v359 = vld [vmem:[%s37 + $0x500] sm:$0xff]
        %360 = vst [vmem:[%s38 + $0x500] sm:$0xff] %v359
        %v361 = vld [vmem:[%s37 + $0x508] sm:$0xff]
        %362 = vst [vmem:[%s38 + $0x508] sm:$0xff] %v361
        %v363 = vld [vmem:[%s37 + $0x510] sm:$0xff]
        %364 = vst [vmem:[%s38 + $0x510] sm:$0xff] %v363
        %v365 = vld [vmem:[%s37 + $0x518] sm:$0xff]
        %366 = vst [vmem:[%s38 + $0x518] sm:$0xff] %v365
        %v367 = vld [vmem:[%s37 + $0x520] sm:$0xff]
        %368 = vst [vmem:[%s38 + $0x520] sm:$0xff] %v367
        %v369 = vld [vmem:[%s37 + $0x528] sm:$0xff]
        %370 = vst [vmem:[%s38 + $0x528] sm:$0xff] %v369
        %v371 = vld [vmem:[%s37 + $0x530] sm:$0xff]
        %372 = vst [vmem:[%s38 + $0x530] sm:$0xff] %v371
        %v373 = vld [vmem:[%s37 + $0x538] sm:$0xff]
        %374 = vst [vmem:[%s38 + $0x538] sm:$0xff] %v373
        %v375 = vld [vmem:[%s37 + $0x540] sm:$0xff]
        %376 = vst [vmem:[%s38 + $0x540] sm:$0xff] %v375
        %v377 = vld [vmem:[%s37 + $0x548] sm:$0xff]
        %378 = vst [vmem:[%s38 + $0x548] sm:$0xff] %v377
        %v379 = vld [vmem:[%s37 + $0x550] sm:$0xff]
        %380 = vst [vmem:[%s38 + $0x550] sm:$0xff] %v379
        %v381 = vld [vmem:[%s37 + $0x558] sm:$0xff]
        %382 = vst [vmem:[%s38 + $0x558] sm:$0xff] %v381
        %v383 = vld [vmem:[%s37 + $0x560] sm:$0xff]
        %384 = vst [vmem:[%s38 + $0x560] sm:$0xff] %v383
        %v385 = vld [vmem:[%s37 + $0x568] sm:$0xff]
        %386 = vst [vmem:[%s38 + $0x568] sm:$0xff] %v385
        %v387 = vld [vmem:[%s37 + $0x570] sm:$0xff]
        %388 = vst [vmem:[%s38 + $0x570] sm:$0xff] %v387
        %v389 = vld [vmem:[%s37 + $0x578] sm:$0xff]
        %390 = vst [vmem:[%s38 + $0x578] sm:$0xff] %v389
        %v391 = vld [vmem:[%s37 + $0x580] sm:$0xff]
        %392 = vst [vmem:[%s38 + $0x580] sm:$0xff] %v391
        %v393 = vld [vmem:[%s37 + $0x588] sm:$0xff]
        %394 = vst [vmem:[%s38 + $0x588] sm:$0xff] %v393
        %v395 = vld [vmem:[%s37 + $0x590] sm:$0xff]
        %396 = vst [vmem:[%s38 + $0x590] sm:$0xff] %v395
        %v397 = vld [vmem:[%s37 + $0x598] sm:$0xff]
        %398 = vst [vmem:[%s38 + $0x598] sm:$0xff] %v397
        %v399 = vld [vmem:[%s37 + $0x5a0] sm:$0xff]
        %400 = vst [vmem:[%s38 + $0x5a0] sm:$0xff] %v399
        %v401 = vld [vmem:[%s37 + $0x5a8] sm:$0xff]
        %402 = vst [vmem:[%s38 + $0x5a8] sm:$0xff] %v401
        %v403 = vld [vmem:[%s37 + $0x5b0] sm:$0xff]
        %404 = vst [vmem:[%s38 + $0x5b0] sm:$0xff] %v403
        %v405 = vld [vmem:[%s37 + $0x5b8] sm:$0xff]
        %406 = vst [vmem:[%s38 + $0x5b8] sm:$0xff] %v405
        %v407 = vld [vmem:[%s37 + $0x5c0] sm:$0xff]
        %408 = vst [vmem:[%s38 + $0x5c0] sm:$0xff] %v407
        %v409 = vld [vmem:[%s37 + $0x5c8] sm:$0xff]
        %410 = vst [vmem:[%s38 + $0x5c8] sm:$0xff] %v409
        %v411 = vld [vmem:[%s37 + $0x5d0] sm:$0xff]
        %412 = vst [vmem:[%s38 + $0x5d0] sm:$0xff] %v411
        %v413 = vld [vmem:[%s37 + $0x5d8] sm:$0xff]
        %414 = vst [vmem:[%s38 + $0x5d8] sm:$0xff] %v413
        %v415 = vld [vmem:[%s37 + $0x5e0] sm:$0xff]
        %416 = vst [vmem:[%s38 + $0x5e0] sm:$0xff] %v415
        %v417 = vld [vmem:[%s37 + $0x5e8] sm:$0xff]
        %418 = vst [vmem:[%s38 + $0x5e8] sm:$0xff] %v417
        %v419 = vld [vmem:[%s37 + $0x5f0] sm:$0xff]
        %420 = vst [vmem:[%s38 + $0x5f0] sm:$0xff] %v419
        %v421 = vld [vmem:[%s37 + $0x5f8] sm:$0xff]
        %422 = vst [vmem:[%s38 + $0x5f8] sm:$0xff] %v421
        %v423 = vld [vmem:[%s37 + $0x600] sm:$0xff]
        %424 = vst [vmem:[%s38 + $0x600] sm:$0xff] %v423
        %v425 = vld [vmem:[%s37 + $0x608] sm:$0xff]
        %426 = vst [vmem:[%s38 + $0x608] sm:$0xff] %v425
        %v427 = vld [vmem:[%s37 + $0x610] sm:$0xff]
        %428 = vst [vmem:[%s38 + $0x610] sm:$0xff] %v427
        %v429 = vld [vmem:[%s37 + $0x618] sm:$0xff]
        %430 = vst [vmem:[%s38 + $0x618] sm:$0xff] %v429
        %v431 = vld [vmem:[%s37 + $0x620] sm:$0xff]
        %432 = vst [vmem:[%s38 + $0x620] sm:$0xff] %v431
        %v433 = vld [vmem:[%s37 + $0x628] sm:$0xff]
        %434 = vst [vmem:[%s38 + $0x628] sm:$0xff] %v433
        %v435 = vld [vmem:[%s37 + $0x630] sm:$0xff]
        %436 = vst [vmem:[%s38 + $0x630] sm:$0xff] %v435
        %v437 = vld [vmem:[%s37 + $0x638] sm:$0xff]
        %438 = vst [vmem:[%s38 + $0x638] sm:$0xff] %v437
        %v439 = vld [vmem:[%s37 + $0x640] sm:$0xff]
        %440 = vst [vmem:[%s38 + $0x640] sm:$0xff] %v439
        %v441 = vld [vmem:[%s37 + $0x648] sm:$0xff]
        %442 = vst [vmem:[%s38 + $0x648] sm:$0xff] %v441
        %v443 = vld [vmem:[%s37 + $0x650] sm:$0xff]
        %444 = vst [vmem:[%s38 + $0x650] sm:$0xff] %v443
        %v445 = vld [vmem:[%s37 + $0x658] sm:$0xff]
        %446 = vst [vmem:[%s38 + $0x658] sm:$0xff] %v445
        %v447 = vld [vmem:[%s37 + $0x660] sm:$0xff]
        %448 = vst [vmem:[%s38 + $0x660] sm:$0xff] %v447
        %v449 = vld [vmem:[%s37 + $0x668] sm:$0xff]
        %450 = vst [vmem:[%s38 + $0x668] sm:$0xff] %v449
        %v451 = vld [vmem:[%s37 + $0x670] sm:$0xff]
        %452 = vst [vmem:[%s38 + $0x670] sm:$0xff] %v451
        %v453 = vld [vmem:[%s37 + $0x678] sm:$0xff]
        %454 = vst [vmem:[%s38 + $0x678] sm:$0xff] %v453
        %v455 = vld [vmem:[%s37 + $0x680] sm:$0xff]
        %456 = vst [vmem:[%s38 + $0x680] sm:$0xff] %v455
        %v457 = vld [vmem:[%s37 + $0x688] sm:$0xff]
        %458 = vst [vmem:[%s38 + $0x688] sm:$0xff] %v457
        %v459 = vld [vmem:[%s37 + $0x690] sm:$0xff]
        %460 = vst [vmem:[%s38 + $0x690] sm:$0xff] %v459
        %v461 = vld [vmem:[%s37 + $0x698] sm:$0xff]
        %462 = vst [vmem:[%s38 + $0x698] sm:$0xff] %v461
        %v463 = vld [vmem:[%s37 + $0x6a0] sm:$0xff]
        %464 = vst [vmem:[%s38 + $0x6a0] sm:$0xff] %v463
        %v465 = vld [vmem:[%s37 + $0x6a8] sm:$0xff]
        %466 = vst [vmem:[%s38 + $0x6a8] sm:$0xff] %v465
        %v467 = vld [vmem:[%s37 + $0x6b0] sm:$0xff]
        %468 = vst [vmem:[%s38 + $0x6b0] sm:$0xff] %v467
        %v469 = vld [vmem:[%s37 + $0x6b8] sm:$0xff]
        %470 = vst [vmem:[%s38 + $0x6b8] sm:$0xff] %v469
        %v471 = vld [vmem:[%s37 + $0x6c0] sm:$0xff]
        %472 = vst [vmem:[%s38 + $0x6c0] sm:$0xff] %v471
        %v473 = vld [vmem:[%s37 + $0x6c8] sm:$0xff]
        %474 = vst [vmem:[%s38 + $0x6c8] sm:$0xff] %v473
        %v475 = vld [vmem:[%s37 + $0x6d0] sm:$0xff]
        %476 = vst [vmem:[%s38 + $0x6d0] sm:$0xff] %v475
        %v477 = vld [vmem:[%s37 + $0x6d8] sm:$0xff]
        %478 = vst [vmem:[%s38 + $0x6d8] sm:$0xff] %v477
        %v479 = vld [vmem:[%s37 + $0x6e0] sm:$0xff]
        %480 = vst [vmem:[%s38 + $0x6e0] sm:$0xff] %v479
        %v481 = vld [vmem:[%s37 + $0x6e8] sm:$0xff]
        %482 = vst [vmem:[%s38 + $0x6e8] sm:$0xff] %v481
        %v483 = vld [vmem:[%s37 + $0x6f0] sm:$0xff]
        %484 = vst [vmem:[%s38 + $0x6f0] sm:$0xff] %v483
        %v485 = vld [vmem:[%s37 + $0x6f8] sm:$0xff]
        %486 = vst [vmem:[%s38 + $0x6f8] sm:$0xff] %v485
        %v487 = vld [vmem:[%s37 + $0x700] sm:$0xff]
        %488 = vst [vmem:[%s38 + $0x700] sm:$0xff] %v487
        %v489 = vld [vmem:[%s37 + $0x708] sm:$0xff]
        %490 = vst [vmem:[%s38 + $0x708] sm:$0xff] %v489
        %v491 = vld [vmem:[%s37 + $0x710] sm:$0xff]
        %492 = vst [vmem:[%s38 + $0x710] sm:$0xff] %v491
        %v493 = vld [vmem:[%s37 + $0x718] sm:$0xff]
        %494 = vst [vmem:[%s38 + $0x718] sm:$0xff] %v493
        %v495 = vld [vmem:[%s37 + $0x720] sm:$0xff]
        %496 = vst [vmem:[%s38 + $0x720] sm:$0xff] %v495
        %v497 = vld [vmem:[%s37 + $0x728] sm:$0xff]
        %498 = vst [vmem:[%s38 + $0x728] sm:$0xff] %v497
        %v499 = vld [vmem:[%s37 + $0x730] sm:$0xff]
        %500 = vst [vmem:[%s38 + $0x730] sm:$0xff] %v499
        %v501 = vld [vmem:[%s37 + $0x738] sm:$0xff]
        %502 = vst [vmem:[%s38 + $0x738] sm:$0xff] %v501
        %v503 = vld [vmem:[%s37 + $0x740] sm:$0xff]
        %504 = vst [vmem:[%s38 + $0x740] sm:$0xff] %v503
        %v505 = vld [vmem:[%s37 + $0x748] sm:$0xff]
        %506 = vst [vmem:[%s38 + $0x748] sm:$0xff] %v505
        %v507 = vld [vmem:[%s37 + $0x750] sm:$0xff]
        %508 = vst [vmem:[%s38 + $0x750] sm:$0xff] %v507
        %v509 = vld [vmem:[%s37 + $0x758] sm:$0xff]
        %510 = vst [vmem:[%s38 + $0x758] sm:$0xff] %v509
        %v511 = vld [vmem:[%s37 + $0x760] sm:$0xff]
        %512 = vst [vmem:[%s38 + $0x760] sm:$0xff] %v511
        %v513 = vld [vmem:[%s37 + $0x768] sm:$0xff]
        %514 = vst [vmem:[%s38 + $0x768] sm:$0xff] %v513
        %v515 = vld [vmem:[%s37 + $0x770] sm:$0xff]
        %516 = vst [vmem:[%s38 + $0x770] sm:$0xff] %v515
        %v517 = vld [vmem:[%s37 + $0x778] sm:$0xff]
        %518 = vst [vmem:[%s38 + $0x778] sm:$0xff] %v517
        %v519 = vld [vmem:[%s37 + $0x780] sm:$0xff]
        %520 = vst [vmem:[%s38 + $0x780] sm:$0xff] %v519
        %v521 = vld [vmem:[%s37 + $0x788] sm:$0xff]
        %522 = vst [vmem:[%s38 + $0x788] sm:$0xff] %v521
        %v523 = vld [vmem:[%s37 + $0x790] sm:$0xff]
        %524 = vst [vmem:[%s38 + $0x790] sm:$0xff] %v523
        %v525 = vld [vmem:[%s37 + $0x798] sm:$0xff]
        %526 = vst [vmem:[%s38 + $0x798] sm:$0xff] %v525
        %v527 = vld [vmem:[%s37 + $0x7a0] sm:$0xff]
        %528 = vst [vmem:[%s38 + $0x7a0] sm:$0xff] %v527
        %v529 = vld [vmem:[%s37 + $0x7a8] sm:$0xff]
        %530 = vst [vmem:[%s38 + $0x7a8] sm:$0xff] %v529
        %v531 = vld [vmem:[%s37 + $0x7b0] sm:$0xff]
        %532 = vst [vmem:[%s38 + $0x7b0] sm:$0xff] %v531
        %v533 = vld [vmem:[%s37 + $0x7b8] sm:$0xff]
        %534 = vst [vmem:[%s38 + $0x7b8] sm:$0xff] %v533
        %v535 = vld [vmem:[%s37 + $0x7c0] sm:$0xff]
        %536 = vst [vmem:[%s38 + $0x7c0] sm:$0xff] %v535
        %v537 = vld [vmem:[%s37 + $0x7c8] sm:$0xff]
        %538 = vst [vmem:[%s38 + $0x7c8] sm:$0xff] %v537
        %v539 = vld [vmem:[%s37 + $0x7d0] sm:$0xff]
        %540 = vst [vmem:[%s38 + $0x7d0] sm:$0xff] %v539
        %v541 = vld [vmem:[%s37 + $0x7d8] sm:$0xff]
        %542 = vst [vmem:[%s38 + $0x7d8] sm:$0xff] %v541
        %v543 = vld [vmem:[%s37 + $0x7e0] sm:$0xff]
        %544 = vst [vmem:[%s38 + $0x7e0] sm:$0xff] %v543
        %v545 = vld [vmem:[%s37 + $0x7e8] sm:$0xff]
        %546 = vst [vmem:[%s38 + $0x7e8] sm:$0xff] %v545
        %v547 = vld [vmem:[%s37 + $0x7f0] sm:$0xff]
        %548 = vst [vmem:[%s38 + $0x7f0] sm:$0xff] %v547
        %v549 = vld [vmem:[%s37 + $0x7f8] sm:$0xff]
        %550 = vst [vmem:[%s38 + $0x7f8] sm:$0xff] %v549
        %v551 = vld [vmem:[%s37 + $0x800] sm:$0xff]
        %552 = vst [vmem:[%s38 + $0x800] sm:$0xff] %v551
        %v553 = vld [vmem:[%s37 + $0x808] sm:$0xff]
        %554 = vst [vmem:[%s38 + $0x808] sm:$0xff] %v553
        %v555 = vld [vmem:[%s37 + $0x810] sm:$0xff]
        %556 = vst [vmem:[%s38 + $0x810] sm:$0xff] %v555
        %v557 = vld [vmem:[%s37 + $0x818] sm:$0xff]
        %558 = vst [vmem:[%s38 + $0x818] sm:$0xff] %v557
        %v559 = vld [vmem:[%s37 + $0x820] sm:$0xff]
        %560 = vst [vmem:[%s38 + $0x820] sm:$0xff] %v559
        %v561 = vld [vmem:[%s37 + $0x828] sm:$0xff]
        %562 = vst [vmem:[%s38 + $0x828] sm:$0xff] %v561
        %v563 = vld [vmem:[%s37 + $0x830] sm:$0xff]
        %564 = vst [vmem:[%s38 + $0x830] sm:$0xff] %v563
        %v565 = vld [vmem:[%s37 + $0x838] sm:$0xff]
        %566 = vst [vmem:[%s38 + $0x838] sm:$0xff] %v565
        %v567 = vld [vmem:[%s37 + $0x840] sm:$0xff]
        %568 = vst [vmem:[%s38 + $0x840] sm:$0xff] %v567
        %v569 = vld [vmem:[%s37 + $0x848] sm:$0xff]
        %570 = vst [vmem:[%s38 + $0x848] sm:$0xff] %v569
        %v571 = vld [vmem:[%s37 + $0x850] sm:$0xff]
        %572 = vst [vmem:[%s38 + $0x850] sm:$0xff] %v571
        %v573 = vld [vmem:[%s37 + $0x858] sm:$0xff]
        %574 = vst [vmem:[%s38 + $0x858] sm:$0xff] %v573
        %v575 = vld [vmem:[%s37 + $0x860] sm:$0xff]
        %576 = vst [vmem:[%s38 + $0x860] sm:$0xff] %v575
        %v577 = vld [vmem:[%s37 + $0x868] sm:$0xff]
        %578 = vst [vmem:[%s38 + $0x868] sm:$0xff] %v577
        %v579 = vld [vmem:[%s37 + $0x870] sm:$0xff]
        %580 = vst [vmem:[%s38 + $0x870] sm:$0xff] %v579
        %v581 = vld [vmem:[%s37 + $0x878] sm:$0xff]
        %582 = vst [vmem:[%s38 + $0x878] sm:$0xff] %v581
        %v583 = vld [vmem:[%s37 + $0x880] sm:$0xff]
        %584 = vst [vmem:[%s38 + $0x880] sm:$0xff] %v583
        %v585 = vld [vmem:[%s37 + $0x888] sm:$0xff]
        %586 = vst [vmem:[%s38 + $0x888] sm:$0xff] %v585
        %v587 = vld [vmem:[%s37 + $0x890] sm:$0xff]
        %588 = vst [vmem:[%s38 + $0x890] sm:$0xff] %v587
        %v589 = vld [vmem:[%s37 + $0x898] sm:$0xff]
        %590 = vst [vmem:[%s38 + $0x898] sm:$0xff] %v589
        %v591 = vld [vmem:[%s37 + $0x8a0] sm:$0xff]
        %592 = vst [vmem:[%s38 + $0x8a0] sm:$0xff] %v591
        %v593 = vld [vmem:[%s37 + $0x8a8] sm:$0xff]
        %594 = vst [vmem:[%s38 + $0x8a8] sm:$0xff] %v593
        %v595 = vld [vmem:[%s37 + $0x8b0] sm:$0xff]
        %596 = vst [vmem:[%s38 + $0x8b0] sm:$0xff] %v595
        %v597 = vld [vmem:[%s37 + $0x8b8] sm:$0xff]
        %598 = vst [vmem:[%s38 + $0x8b8] sm:$0xff] %v597
        %v599 = vld [vmem:[%s37 + $0x8c0] sm:$0xff]
        %600 = vst [vmem:[%s38 + $0x8c0] sm:$0xff] %v599
        %v601 = vld [vmem:[%s37 + $0x8c8] sm:$0xff]
        %602 = vst [vmem:[%s38 + $0x8c8] sm:$0xff] %v601
        %v603 = vld [vmem:[%s37 + $0x8d0] sm:$0xff]
        %604 = vst [vmem:[%s38 + $0x8d0] sm:$0xff] %v603
        %v605 = vld [vmem:[%s37 + $0x8d8] sm:$0xff]
        %606 = vst [vmem:[%s38 + $0x8d8] sm:$0xff] %v605
        %v607 = vld [vmem:[%s37 + $0x8e0] sm:$0xff]
        %608 = vst [vmem:[%s38 + $0x8e0] sm:$0xff] %v607
        %v609 = vld [vmem:[%s37 + $0x8e8] sm:$0xff]
        %610 = vst [vmem:[%s38 + $0x8e8] sm:$0xff] %v609
        %v611 = vld [vmem:[%s37 + $0x8f0] sm:$0xff]
        %612 = vst [vmem:[%s38 + $0x8f0] sm:$0xff] %v611
        %v613 = vld [vmem:[%s37 + $0x8f8] sm:$0xff]
        %614 = vst [vmem:[%s38 + $0x8f8] sm:$0xff] %v613
        %v615 = vld [vmem:[%s37 + $0x900] sm:$0xff]
        %616 = vst [vmem:[%s38 + $0x900] sm:$0xff] %v615
        %v617 = vld [vmem:[%s37 + $0x908] sm:$0xff]
        %618 = vst [vmem:[%s38 + $0x908] sm:$0xff] %v617
        %v619 = vld [vmem:[%s37 + $0x910] sm:$0xff]
        %620 = vst [vmem:[%s38 + $0x910] sm:$0xff] %v619
        %v621 = vld [vmem:[%s37 + $0x918] sm:$0xff]
        %622 = vst [vmem:[%s38 + $0x918] sm:$0xff] %v621
        %v623 = vld [vmem:[%s37 + $0x920] sm:$0xff]
        %624 = vst [vmem:[%s38 + $0x920] sm:$0xff] %v623
        %v625 = vld [vmem:[%s37 + $0x928] sm:$0xff]
        %626 = vst [vmem:[%s38 + $0x928] sm:$0xff] %v625
        %v627 = vld [vmem:[%s37 + $0x930] sm:$0xff]
        %628 = vst [vmem:[%s38 + $0x930] sm:$0xff] %v627
        %v629 = vld [vmem:[%s37 + $0x938] sm:$0xff]
        %630 = vst [vmem:[%s38 + $0x938] sm:$0xff] %v629
        %v631 = vld [vmem:[%s37 + $0x940] sm:$0xff]
        %632 = vst [vmem:[%s38 + $0x940] sm:$0xff] %v631
        %v633 = vld [vmem:[%s37 + $0x948] sm:$0xff]
        %634 = vst [vmem:[%s38 + $0x948] sm:$0xff] %v633
        %v635 = vld [vmem:[%s37 + $0x950] sm:$0xff]
        %636 = vst [vmem:[%s38 + $0x950] sm:$0xff] %v635
        %v637 = vld [vmem:[%s37 + $0x958] sm:$0xff]
        %638 = vst [vmem:[%s38 + $0x958] sm:$0xff] %v637
        %v639 = vld [vmem:[%s37 + $0x960] sm:$0xff]
        %640 = vst [vmem:[%s38 + $0x960] sm:$0xff] %v639
        %v641 = vld [vmem:[%s37 + $0x968] sm:$0xff]
        %642 = vst [vmem:[%s38 + $0x968] sm:$0xff] %v641
        %v643 = vld [vmem:[%s37 + $0x970] sm:$0xff]
        %644 = vst [vmem:[%s38 + $0x970] sm:$0xff] %v643
        %v645 = vld [vmem:[%s37 + $0x978] sm:$0xff]
        %646 = vst [vmem:[%s38 + $0x978] sm:$0xff] %v645
        %v647 = vld [vmem:[%s37 + $0x980] sm:$0xff]
        %648 = vst [vmem:[%s38 + $0x980] sm:$0xff] %v647
        %v649 = vld [vmem:[%s37 + $0x988] sm:$0xff]
        %650 = vst [vmem:[%s38 + $0x988] sm:$0xff] %v649
        %v651 = vld [vmem:[%s37 + $0x990] sm:$0xff]
        %652 = vst [vmem:[%s38 + $0x990] sm:$0xff] %v651
        %v653 = vld [vmem:[%s37 + $0x998] sm:$0xff]
        %654 = vst [vmem:[%s38 + $0x998] sm:$0xff] %v653
        %v655 = vld [vmem:[%s37 + $0x9a0] sm:$0xff]
        %656 = vst [vmem:[%s38 + $0x9a0] sm:$0xff] %v655
        %v657 = vld [vmem:[%s37 + $0x9a8] sm:$0xff]
        %658 = vst [vmem:[%s38 + $0x9a8] sm:$0xff] %v657
        %v659 = vld [vmem:[%s37 + $0x9b0] sm:$0xff]
        %660 = vst [vmem:[%s38 + $0x9b0] sm:$0xff] %v659
        %v661 = vld [vmem:[%s37 + $0x9b8] sm:$0xff]
        %662 = vst [vmem:[%s38 + $0x9b8] sm:$0xff] %v661
        %v663 = vld [vmem:[%s37 + $0x9c0] sm:$0xff]
        %664 = vst [vmem:[%s38 + $0x9c0] sm:$0xff] %v663
        %v665 = vld [vmem:[%s37 + $0x9c8] sm:$0xff]
        %666 = vst [vmem:[%s38 + $0x9c8] sm:$0xff] %v665
        %v667 = vld [vmem:[%s37 + $0x9d0] sm:$0xff]
        %668 = vst [vmem:[%s38 + $0x9d0] sm:$0xff] %v667
        %v669 = vld [vmem:[%s37 + $0x9d8] sm:$0xff]
        %670 = vst [vmem:[%s38 + $0x9d8] sm:$0xff] %v669
        %v671 = vld [vmem:[%s37 + $0x9e0] sm:$0xff]
        %672 = vst [vmem:[%s38 + $0x9e0] sm:$0xff] %v671
        %v673 = vld [vmem:[%s37 + $0x9e8] sm:$0xff]
        %674 = vst [vmem:[%s38 + $0x9e8] sm:$0xff] %v673
        %v675 = vld [vmem:[%s37 + $0x9f0] sm:$0xff]
        %676 = vst [vmem:[%s38 + $0x9f0] sm:$0xff] %v675
        %v677 = vld [vmem:[%s37 + $0x9f8] sm:$0xff]
        %678 = vst [vmem:[%s38 + $0x9f8] sm:$0xff] %v677
        %v679 = vld [vmem:[%s37 + $0xa00] sm:$0xff]
        %680 = vst [vmem:[%s38 + $0xa00] sm:$0xff] %v679
        %v681 = vld [vmem:[%s37 + $0xa08] sm:$0xff]
        %682 = vst [vmem:[%s38 + $0xa08] sm:$0xff] %v681
        %v683 = vld [vmem:[%s37 + $0xa10] sm:$0xff]
        %684 = vst [vmem:[%s38 + $0xa10] sm:$0xff] %v683
        %v685 = vld [vmem:[%s37 + $0xa18] sm:$0xff]
        %686 = vst [vmem:[%s38 + $0xa18] sm:$0xff] %v685
        %v687 = vld [vmem:[%s37 + $0xa20] sm:$0xff]
        %688 = vst [vmem:[%s38 + $0xa20] sm:$0xff] %v687
        %v689 = vld [vmem:[%s37 + $0xa28] sm:$0xff]
        %690 = vst [vmem:[%s38 + $0xa28] sm:$0xff] %v689
        %v691 = vld [vmem:[%s37 + $0xa30] sm:$0xff]
        %692 = vst [vmem:[%s38 + $0xa30] sm:$0xff] %v691
        %v693 = vld [vmem:[%s37 + $0xa38] sm:$0xff]
        %694 = vst [vmem:[%s38 + $0xa38] sm:$0xff] %v693
        %v695 = vld [vmem:[%s37 + $0xa40] sm:$0xff]
        %696 = vst [vmem:[%s38 + $0xa40] sm:$0xff] %v695
        %v697 = vld [vmem:[%s37 + $0xa48] sm:$0xff]
        %698 = vst [vmem:[%s38 + $0xa48] sm:$0xff] %v697
        %v699 = vld [vmem:[%s37 + $0xa50] sm:$0xff]
        %700 = vst [vmem:[%s38 + $0xa50] sm:$0xff] %v699
        %v701 = vld [vmem:[%s37 + $0xa58] sm:$0xff]
        %702 = vst [vmem:[%s38 + $0xa58] sm:$0xff] %v701
        %v703 = vld [vmem:[%s37 + $0xa60] sm:$0xff]
        %704 = vst [vmem:[%s38 + $0xa60] sm:$0xff] %v703
        %v705 = vld [vmem:[%s37 + $0xa68] sm:$0xff]
        %706 = vst [vmem:[%s38 + $0xa68] sm:$0xff] %v705
        %v707 = vld [vmem:[%s37 + $0xa70] sm:$0xff]
        %708 = vst [vmem:[%s38 + $0xa70] sm:$0xff] %v707
        %v709 = vld [vmem:[%s37 + $0xa78] sm:$0xff]
        %710 = vst [vmem:[%s38 + $0xa78] sm:$0xff] %v709
        %v711 = vld [vmem:[%s37 + $0xa80] sm:$0xff]
        %712 = vst [vmem:[%s38 + $0xa80] sm:$0xff] %v711
        %v713 = vld [vmem:[%s37 + $0xa88] sm:$0xff]
        %714 = vst [vmem:[%s38 + $0xa88] sm:$0xff] %v713
        %v715 = vld [vmem:[%s37 + $0xa90] sm:$0xff]
        %716 = vst [vmem:[%s38 + $0xa90] sm:$0xff] %v715
        %v717 = vld [vmem:[%s37 + $0xa98] sm:$0xff]
        %718 = vst [vmem:[%s38 + $0xa98] sm:$0xff] %v717
        %v719 = vld [vmem:[%s37 + $0xaa0] sm:$0xff]
        %720 = vst [vmem:[%s38 + $0xaa0] sm:$0xff] %v719
        %v721 = vld [vmem:[%s37 + $0xaa8] sm:$0xff]
        %722 = vst [vmem:[%s38 + $0xaa8] sm:$0xff] %v721
        %v723 = vld [vmem:[%s37 + $0xab0] sm:$0xff]
        %724 = vst [vmem:[%s38 + $0xab0] sm:$0xff] %v723
        %v725 = vld [vmem:[%s37 + $0xab8] sm:$0xff]
        %726 = vst [vmem:[%s38 + $0xab8] sm:$0xff] %v725
        %v727 = vld [vmem:[%s37 + $0xac0] sm:$0xff]
        %728 = vst [vmem:[%s38 + $0xac0] sm:$0xff] %v727
        %v729 = vld [vmem:[%s37 + $0xac8] sm:$0xff]
        %730 = vst [vmem:[%s38 + $0xac8] sm:$0xff] %v729
        %v731 = vld [vmem:[%s37 + $0xad0] sm:$0xff]
        %732 = vst [vmem:[%s38 + $0xad0] sm:$0xff] %v731
        %v733 = vld [vmem:[%s37 + $0xad8] sm:$0xff]
        %734 = vst [vmem:[%s38 + $0xad8] sm:$0xff] %v733
        %v735 = vld [vmem:[%s37 + $0xae0] sm:$0xff]
        %736 = vst [vmem:[%s38 + $0xae0] sm:$0xff] %v735
        %v737 = vld [vmem:[%s37 + $0xae8] sm:$0xff]
        %738 = vst [vmem:[%s38 + $0xae8] sm:$0xff] %v737
        %v739 = vld [vmem:[%s37 + $0xaf0] sm:$0xff]
        %740 = vst [vmem:[%s38 + $0xaf0] sm:$0xff] %v739
        %v741 = vld [vmem:[%s37 + $0xaf8] sm:$0xff]
        %742 = vst [vmem:[%s38 + $0xaf8] sm:$0xff] %v741
        %v743 = vld [vmem:[%s37 + $0xb00] sm:$0xff]
        %744 = vst [vmem:[%s38 + $0xb00] sm:$0xff] %v743
        %v745 = vld [vmem:[%s37 + $0xb08] sm:$0xff]
        %746 = vst [vmem:[%s38 + $0xb08] sm:$0xff] %v745
        %v747 = vld [vmem:[%s37 + $0xb10] sm:$0xff]
        %748 = vst [vmem:[%s38 + $0xb10] sm:$0xff] %v747
        %v749 = vld [vmem:[%s37 + $0xb18] sm:$0xff]
        %750 = vst [vmem:[%s38 + $0xb18] sm:$0xff] %v749
        %v751 = vld [vmem:[%s37 + $0xb20] sm:$0xff]
        %752 = vst [vmem:[%s38 + $0xb20] sm:$0xff] %v751
        %v753 = vld [vmem:[%s37 + $0xb28] sm:$0xff]
        %754 = vst [vmem:[%s38 + $0xb28] sm:$0xff] %v753
        %v755 = vld [vmem:[%s37 + $0xb30] sm:$0xff]
        %756 = vst [vmem:[%s38 + $0xb30] sm:$0xff] %v755
        %v757 = vld [vmem:[%s37 + $0xb38] sm:$0xff]
        %758 = vst [vmem:[%s38 + $0xb38] sm:$0xff] %v757
        %v759 = vld [vmem:[%s37 + $0xb40] sm:$0xff]
        %760 = vst [vmem:[%s38 + $0xb40] sm:$0xff] %v759
        %v761 = vld [vmem:[%s37 + $0xb48] sm:$0xff]
        %762 = vst [vmem:[%s38 + $0xb48] sm:$0xff] %v761
        %v763 = vld [vmem:[%s37 + $0xb50] sm:$0xff]
        %764 = vst [vmem:[%s38 + $0xb50] sm:$0xff] %v763
        %v765 = vld [vmem:[%s37 + $0xb58] sm:$0xff]
        %766 = vst [vmem:[%s38 + $0xb58] sm:$0xff] %v765
        %v767 = vld [vmem:[%s37 + $0xb60] sm:$0xff]
        %768 = vst [vmem:[%s38 + $0xb60] sm:$0xff] %v767
        %v769 = vld [vmem:[%s37 + $0xb68] sm:$0xff]
        %770 = vst [vmem:[%s38 + $0xb68] sm:$0xff] %v769
        %v771 = vld [vmem:[%s37 + $0xb70] sm:$0xff]
        %772 = vst [vmem:[%s38 + $0xb70] sm:$0xff] %v771
        %v773 = vld [vmem:[%s37 + $0xb78] sm:$0xff]
        %774 = vst [vmem:[%s38 + $0xb78] sm:$0xff] %v773
        %v775 = vld [vmem:[%s37 + $0xb80] sm:$0xff]
        %776 = vst [vmem:[%s38 + $0xb80] sm:$0xff] %v775
        %v777 = vld [vmem:[%s37 + $0xb88] sm:$0xff]
        %778 = vst [vmem:[%s38 + $0xb88] sm:$0xff] %v777
        %v779 = vld [vmem:[%s37 + $0xb90] sm:$0xff]
        %780 = vst [vmem:[%s38 + $0xb90] sm:$0xff] %v779
        %v781 = vld [vmem:[%s37 + $0xb98] sm:$0xff]
        %782 = vst [vmem:[%s38 + $0xb98] sm:$0xff] %v781
        %v783 = vld [vmem:[%s37 + $0xba0] sm:$0xff]
        %784 = vst [vmem:[%s38 + $0xba0] sm:$0xff] %v783
        %v785 = vld [vmem:[%s37 + $0xba8] sm:$0xff]
        %786 = vst [vmem:[%s38 + $0xba8] sm:$0xff] %v785
        %v787 = vld [vmem:[%s37 + $0xbb0] sm:$0xff]
        %788 = vst [vmem:[%s38 + $0xbb0] sm:$0xff] %v787
        %v789 = vld [vmem:[%s37 + $0xbb8] sm:$0xff]
        %790 = vst [vmem:[%s38 + $0xbb8] sm:$0xff] %v789
        %v791 = vld [vmem:[%s37 + $0xbc0] sm:$0xff]
        %792 = vst [vmem:[%s38 + $0xbc0] sm:$0xff] %v791
        %v793 = vld [vmem:[%s37 + $0xbc8] sm:$0xff]
        %794 = vst [vmem:[%s38 + $0xbc8] sm:$0xff] %v793
        %v795 = vld [vmem:[%s37 + $0xbd0] sm:$0xff]
        %796 = vst [vmem:[%s38 + $0xbd0] sm:$0xff] %v795
        %v797 = vld [vmem:[%s37 + $0xbd8] sm:$0xff]
        %798 = vst [vmem:[%s38 + $0xbd8] sm:$0xff] %v797
        %v799 = vld [vmem:[%s37 + $0xbe0] sm:$0xff]
        %800 = vst [vmem:[%s38 + $0xbe0] sm:$0xff] %v799
        %v801 = vld [vmem:[%s37 + $0xbe8] sm:$0xff]
        %802 = vst [vmem:[%s38 + $0xbe8] sm:$0xff] %v801
        %v803 = vld [vmem:[%s37 + $0xbf0] sm:$0xff]
        %804 = vst [vmem:[%s38 + $0xbf0] sm:$0xff] %v803
        %v805 = vld [vmem:[%s37 + $0xbf8] sm:$0xff]
        %806 = vst [vmem:[%s38 + $0xbf8] sm:$0xff] %v805
        %v807 = vld [vmem:[%s37 + $0xc00] sm:$0xff]
        %808 = vst [vmem:[%s38 + $0xc00] sm:$0xff] %v807
        %v809 = vld [vmem:[%s37 + $0xc08] sm:$0xff]
        %810 = vst [vmem:[%s38 + $0xc08] sm:$0xff] %v809
        %v811 = vld [vmem:[%s37 + $0xc10] sm:$0xff]
        %812 = vst [vmem:[%s38 + $0xc10] sm:$0xff] %v811
        %v813 = vld [vmem:[%s37 + $0xc18] sm:$0xff]
        %814 = vst [vmem:[%s38 + $0xc18] sm:$0xff] %v813
        %v815 = vld [vmem:[%s37 + $0xc20] sm:$0xff]
        %816 = vst [vmem:[%s38 + $0xc20] sm:$0xff] %v815
        %v817 = vld [vmem:[%s37 + $0xc28] sm:$0xff]
        %818 = vst [vmem:[%s38 + $0xc28] sm:$0xff] %v817
        %v819 = vld [vmem:[%s37 + $0xc30] sm:$0xff]
        %820 = vst [vmem:[%s38 + $0xc30] sm:$0xff] %v819
        %v821 = vld [vmem:[%s37 + $0xc38] sm:$0xff]
        %822 = vst [vmem:[%s38 + $0xc38] sm:$0xff] %v821
        %v823 = vld [vmem:[%s37 + $0xc40] sm:$0xff]
        %824 = vst [vmem:[%s38 + $0xc40] sm:$0xff] %v823
        %v825 = vld [vmem:[%s37 + $0xc48] sm:$0xff]
        %826 = vst [vmem:[%s38 + $0xc48] sm:$0xff] %v825
        %v827 = vld [vmem:[%s37 + $0xc50] sm:$0xff]
        %828 = vst [vmem:[%s38 + $0xc50] sm:$0xff] %v827
        %v829 = vld [vmem:[%s37 + $0xc58] sm:$0xff]
        %830 = vst [vmem:[%s38 + $0xc58] sm:$0xff] %v829
        %v831 = vld [vmem:[%s37 + $0xc60] sm:$0xff]
        %832 = vst [vmem:[%s38 + $0xc60] sm:$0xff] %v831
        %v833 = vld [vmem:[%s37 + $0xc68] sm:$0xff]
        %834 = vst [vmem:[%s38 + $0xc68] sm:$0xff] %v833
        %v835 = vld [vmem:[%s37 + $0xc70] sm:$0xff]
        %836 = vst [vmem:[%s38 + $0xc70] sm:$0xff] %v835
        %v837 = vld [vmem:[%s37 + $0xc78] sm:$0xff]
        %838 = vst [vmem:[%s38 + $0xc78] sm:$0xff] %v837
        %v839 = vld [vmem:[%s37 + $0xc80] sm:$0xff]
        %840 = vst [vmem:[%s38 + $0xc80] sm:$0xff] %v839
        %v841 = vld [vmem:[%s37 + $0xc88] sm:$0xff]
        %842 = vst [vmem:[%s38 + $0xc88] sm:$0xff] %v841
        %v843 = vld [vmem:[%s37 + $0xc90] sm:$0xff]
        %844 = vst [vmem:[%s38 + $0xc90] sm:$0xff] %v843
        %v845 = vld [vmem:[%s37 + $0xc98] sm:$0xff]
        %846 = vst [vmem:[%s38 + $0xc98] sm:$0xff] %v845
        %v847 = vld [vmem:[%s37 + $0xca0] sm:$0xff]
        %848 = vst [vmem:[%s38 + $0xca0] sm:$0xff] %v847
        %v849 = vld [vmem:[%s37 + $0xca8] sm:$0xff]
        %850 = vst [vmem:[%s38 + $0xca8] sm:$0xff] %v849
        %v851 = vld [vmem:[%s37 + $0xcb0] sm:$0xff]
        %852 = vst [vmem:[%s38 + $0xcb0] sm:$0xff] %v851
        %v853 = vld [vmem:[%s37 + $0xcb8] sm:$0xff]
        %854 = vst [vmem:[%s38 + $0xcb8] sm:$0xff] %v853
        %v855 = vld [vmem:[%s37 + $0xcc0] sm:$0xff]
        %856 = vst [vmem:[%s38 + $0xcc0] sm:$0xff] %v855
        %v857 = vld [vmem:[%s37 + $0xcc8] sm:$0xff]
        %858 = vst [vmem:[%s38 + $0xcc8] sm:$0xff] %v857
        %v859 = vld [vmem:[%s37 + $0xcd0] sm:$0xff]
        %860 = vst [vmem:[%s38 + $0xcd0] sm:$0xff] %v859
        %v861 = vld [vmem:[%s37 + $0xcd8] sm:$0xff]
        %862 = vst [vmem:[%s38 + $0xcd8] sm:$0xff] %v861
        %v863 = vld [vmem:[%s37 + $0xce0] sm:$0xff]
        %864 = vst [vmem:[%s38 + $0xce0] sm:$0xff] %v863
        %v865 = vld [vmem:[%s37 + $0xce8] sm:$0xff]
        %866 = vst [vmem:[%s38 + $0xce8] sm:$0xff] %v865
        %v867 = vld [vmem:[%s37 + $0xcf0] sm:$0xff]
        %868 = vst [vmem:[%s38 + $0xcf0] sm:$0xff] %v867
        %v869 = vld [vmem:[%s37 + $0xcf8] sm:$0xff]
        %870 = vst [vmem:[%s38 + $0xcf8] sm:$0xff] %v869
        %v871 = vld [vmem:[%s37 + $0xd00] sm:$0xff]
        %872 = vst [vmem:[%s38 + $0xd00] sm:$0xff] %v871
        %v873 = vld [vmem:[%s37 + $0xd08] sm:$0xff]
        %874 = vst [vmem:[%s38 + $0xd08] sm:$0xff] %v873
        %v875 = vld [vmem:[%s37 + $0xd10] sm:$0xff]
        %876 = vst [vmem:[%s38 + $0xd10] sm:$0xff] %v875
        %v877 = vld [vmem:[%s37 + $0xd18] sm:$0xff]
        %878 = vst [vmem:[%s38 + $0xd18] sm:$0xff] %v877
        %v879 = vld [vmem:[%s37 + $0xd20] sm:$0xff]
        %880 = vst [vmem:[%s38 + $0xd20] sm:$0xff] %v879
        %v881 = vld [vmem:[%s37 + $0xd28] sm:$0xff]
        %882 = vst [vmem:[%s38 + $0xd28] sm:$0xff] %v881
        %v883 = vld [vmem:[%s37 + $0xd30] sm:$0xff]
        %884 = vst [vmem:[%s38 + $0xd30] sm:$0xff] %v883
        %v885 = vld [vmem:[%s37 + $0xd38] sm:$0xff]
        %886 = vst [vmem:[%s38 + $0xd38] sm:$0xff] %v885
        %v887 = vld [vmem:[%s37 + $0xd40] sm:$0xff]
        %888 = vst [vmem:[%s38 + $0xd40] sm:$0xff] %v887
        %v889 = vld [vmem:[%s37 + $0xd48] sm:$0xff]
        %890 = vst [vmem:[%s38 + $0xd48] sm:$0xff] %v889
        %v891 = vld [vmem:[%s37 + $0xd50] sm:$0xff]
        %892 = vst [vmem:[%s38 + $0xd50] sm:$0xff] %v891
        %v893 = vld [vmem:[%s37 + $0xd58] sm:$0xff]
        %894 = vst [vmem:[%s38 + $0xd58] sm:$0xff] %v893
        %v895 = vld [vmem:[%s37 + $0xd60] sm:$0xff]
        %896 = vst [vmem:[%s38 + $0xd60] sm:$0xff] %v895
        %v897 = vld [vmem:[%s37 + $0xd68] sm:$0xff]
        %898 = vst [vmem:[%s38 + $0xd68] sm:$0xff] %v897
        %v899 = vld [vmem:[%s37 + $0xd70] sm:$0xff]
        %900 = vst [vmem:[%s38 + $0xd70] sm:$0xff] %v899
        %v901 = vld [vmem:[%s37 + $0xd78] sm:$0xff]
        %902 = vst [vmem:[%s38 + $0xd78] sm:$0xff] %v901
        %v903 = vld [vmem:[%s37 + $0xd80] sm:$0xff]
        %904 = vst [vmem:[%s38 + $0xd80] sm:$0xff] %v903
        %v905 = vld [vmem:[%s37 + $0xd88] sm:$0xff]
        %906 = vst [vmem:[%s38 + $0xd88] sm:$0xff] %v905
        %v907 = vld [vmem:[%s37 + $0xd90] sm:$0xff]
        %908 = vst [vmem:[%s38 + $0xd90] sm:$0xff] %v907
        %v909 = vld [vmem:[%s37 + $0xd98] sm:$0xff]
        %910 = vst [vmem:[%s38 + $0xd98] sm:$0xff] %v909
        %v911 = vld [vmem:[%s37 + $0xda0] sm:$0xff]
        %912 = vst [vmem:[%s38 + $0xda0] sm:$0xff] %v911
        %v913 = vld [vmem:[%s37 + $0xda8] sm:$0xff]
        %914 = vst [vmem:[%s38 + $0xda8] sm:$0xff] %v913
        %v915 = vld [vmem:[%s37 + $0xdb0] sm:$0xff]
        %916 = vst [vmem:[%s38 + $0xdb0] sm:$0xff] %v915
        %v917 = vld [vmem:[%s37 + $0xdb8] sm:$0xff]
        %918 = vst [vmem:[%s38 + $0xdb8] sm:$0xff] %v917
        %v919 = vld [vmem:[%s37 + $0xdc0] sm:$0xff]
        %920 = vst [vmem:[%s38 + $0xdc0] sm:$0xff] %v919
        %v921 = vld [vmem:[%s37 + $0xdc8] sm:$0xff]
        %922 = vst [vmem:[%s38 + $0xdc8] sm:$0xff] %v921
        %v923 = vld [vmem:[%s37 + $0xdd0] sm:$0xff]
        %924 = vst [vmem:[%s38 + $0xdd0] sm:$0xff] %v923
        %v925 = vld [vmem:[%s37 + $0xdd8] sm:$0xff]
        %926 = vst [vmem:[%s38 + $0xdd8] sm:$0xff] %v925
        %v927 = vld [vmem:[%s37 + $0xde0] sm:$0xff]
        %928 = vst [vmem:[%s38 + $0xde0] sm:$0xff] %v927
        %v929 = vld [vmem:[%s37 + $0xde8] sm:$0xff]
        %930 = vst [vmem:[%s38 + $0xde8] sm:$0xff] %v929
        %v931 = vld [vmem:[%s37 + $0xdf0] sm:$0xff]
        %932 = vst [vmem:[%s38 + $0xdf0] sm:$0xff] %v931
        %v933 = vld [vmem:[%s37 + $0xdf8] sm:$0xff]
        %934 = vst [vmem:[%s38 + $0xdf8] sm:$0xff] %v933
        %v935 = vld [vmem:[%s37 + $0xe00] sm:$0xff]
        %936 = vst [vmem:[%s38 + $0xe00] sm:$0xff] %v935
        %v937 = vld [vmem:[%s37 + $0xe08] sm:$0xff]
        %938 = vst [vmem:[%s38 + $0xe08] sm:$0xff] %v937
        %v939 = vld [vmem:[%s37 + $0xe10] sm:$0xff]
        %940 = vst [vmem:[%s38 + $0xe10] sm:$0xff] %v939
        %v941 = vld [vmem:[%s37 + $0xe18] sm:$0xff]
        %942 = vst [vmem:[%s38 + $0xe18] sm:$0xff] %v941
        %v943 = vld [vmem:[%s37 + $0xe20] sm:$0xff]
        %944 = vst [vmem:[%s38 + $0xe20] sm:$0xff] %v943
        %v945 = vld [vmem:[%s37 + $0xe28] sm:$0xff]
        %946 = vst [vmem:[%s38 + $0xe28] sm:$0xff] %v945
        %v947 = vld [vmem:[%s37 + $0xe30] sm:$0xff]
        %948 = vst [vmem:[%s38 + $0xe30] sm:$0xff] %v947
        %v949 = vld [vmem:[%s37 + $0xe38] sm:$0xff]
        %950 = vst [vmem:[%s38 + $0xe38] sm:$0xff] %v949
        %v951 = vld [vmem:[%s37 + $0xe40] sm:$0xff]
        %952 = vst [vmem:[%s38 + $0xe40] sm:$0xff] %v951
        %v953 = vld [vmem:[%s37 + $0xe48] sm:$0xff]
        %954 = vst [vmem:[%s38 + $0xe48] sm:$0xff] %v953
        %v955 = vld [vmem:[%s37 + $0xe50] sm:$0xff]
        %956 = vst [vmem:[%s38 + $0xe50] sm:$0xff] %v955
        %v957 = vld [vmem:[%s37 + $0xe58] sm:$0xff]
        %958 = vst [vmem:[%s38 + $0xe58] sm:$0xff] %v957
        %v959 = vld [vmem:[%s37 + $0xe60] sm:$0xff]
        %960 = vst [vmem:[%s38 + $0xe60] sm:$0xff] %v959
        %v961 = vld [vmem:[%s37 + $0xe68] sm:$0xff]
        %962 = vst [vmem:[%s38 + $0xe68] sm:$0xff] %v961
        %v963 = vld [vmem:[%s37 + $0xe70] sm:$0xff]
        %964 = vst [vmem:[%s38 + $0xe70] sm:$0xff] %v963
        %v965 = vld [vmem:[%s37 + $0xe78] sm:$0xff]
        %966 = vst [vmem:[%s38 + $0xe78] sm:$0xff] %v965
        %v967 = vld [vmem:[%s37 + $0xe80] sm:$0xff]
        %968 = vst [vmem:[%s38 + $0xe80] sm:$0xff] %v967
        %v969 = vld [vmem:[%s37 + $0xe88] sm:$0xff]
        %970 = vst [vmem:[%s38 + $0xe88] sm:$0xff] %v969
        %v971 = vld [vmem:[%s37 + $0xe90] sm:$0xff]
        %972 = vst [vmem:[%s38 + $0xe90] sm:$0xff] %v971
        %v973 = vld [vmem:[%s37 + $0xe98] sm:$0xff]
        %974 = vst [vmem:[%s38 + $0xe98] sm:$0xff] %v973
        %v975 = vld [vmem:[%s37 + $0xea0] sm:$0xff]
        %976 = vst [vmem:[%s38 + $0xea0] sm:$0xff] %v975
        %v977 = vld [vmem:[%s37 + $0xea8] sm:$0xff]
        %978 = vst [vmem:[%s38 + $0xea8] sm:$0xff] %v977
        %v979 = vld [vmem:[%s37 + $0xeb0] sm:$0xff]
        %980 = vst [vmem:[%s38 + $0xeb0] sm:$0xff] %v979
        %v981 = vld [vmem:[%s37 + $0xeb8] sm:$0xff]
        %982 = vst [vmem:[%s38 + $0xeb8] sm:$0xff] %v981
        %v983 = vld [vmem:[%s37 + $0xec0] sm:$0xff]
        %984 = vst [vmem:[%s38 + $0xec0] sm:$0xff] %v983
        %v985 = vld [vmem:[%s37 + $0xec8] sm:$0xff]
        %986 = vst [vmem:[%s38 + $0xec8] sm:$0xff] %v985
        %v987 = vld [vmem:[%s37 + $0xed0] sm:$0xff]
        %988 = vst [vmem:[%s38 + $0xed0] sm:$0xff] %v987
        %v989 = vld [vmem:[%s37 + $0xed8] sm:$0xff]
        %990 = vst [vmem:[%s38 + $0xed8] sm:$0xff] %v989
        %v991 = vld [vmem:[%s37 + $0xee0] sm:$0xff]
        %992 = vst [vmem:[%s38 + $0xee0] sm:$0xff] %v991
        %v993 = vld [vmem:[%s37 + $0xee8] sm:$0xff]
        %994 = vst [vmem:[%s38 + $0xee8] sm:$0xff] %v993
        %v995 = vld [vmem:[%s37 + $0xef0] sm:$0xff]
        %996 = vst [vmem:[%s38 + $0xef0] sm:$0xff] %v995
        %v997 = vld [vmem:[%s37 + $0xef8] sm:$0xff]
        %998 = vst [vmem:[%s38 + $0xef8] sm:$0xff] %v997
        %v999 = vld [vmem:[%s37 + $0xf00] sm:$0xff]
        %1000 = vst [vmem:[%s38 + $0xf00] sm:$0xff] %v999
        %v1001 = vld [vmem:[%s37 + $0xf08] sm:$0xff]
        %1002 = vst [vmem:[%s38 + $0xf08] sm:$0xff] %v1001
        %v1003 = vld [vmem:[%s37 + $0xf10] sm:$0xff]
        %1004 = vst [vmem:[%s38 + $0xf10] sm:$0xff] %v1003
        %v1005 = vld [vmem:[%s37 + $0xf18] sm:$0xff]
        %1006 = vst [vmem:[%s38 + $0xf18] sm:$0xff] %v1005
        %v1007 = vld [vmem:[%s37 + $0xf20] sm:$0xff]
        %1008 = vst [vmem:[%s38 + $0xf20] sm:$0xff] %v1007
        %v1009 = vld [vmem:[%s37 + $0xf28] sm:$0xff]
        %1010 = vst [vmem:[%s38 + $0xf28] sm:$0xff] %v1009
        %v1011 = vld [vmem:[%s37 + $0xf30] sm:$0xff]
        %1012 = vst [vmem:[%s38 + $0xf30] sm:$0xff] %v1011
        %v1013 = vld [vmem:[%s37 + $0xf38] sm:$0xff]
        %1014 = vst [vmem:[%s38 + $0xf38] sm:$0xff] %v1013
        %v1015 = vld [vmem:[%s37 + $0xf40] sm:$0xff]
        %1016 = vst [vmem:[%s38 + $0xf40] sm:$0xff] %v1015
        %v1017 = vld [vmem:[%s37 + $0xf48] sm:$0xff]
        %1018 = vst [vmem:[%s38 + $0xf48] sm:$0xff] %v1017
        %v1019 = vld [vmem:[%s37 + $0xf50] sm:$0xff]
        %1020 = vst [vmem:[%s38 + $0xf50] sm:$0xff] %v1019
        %v1021 = vld [vmem:[%s37 + $0xf58] sm:$0xff]
        %1022 = vst [vmem:[%s38 + $0xf58] sm:$0xff] %v1021
        %v1023 = vld [vmem:[%s37 + $0xf60] sm:$0xff]
        %1024 = vst [vmem:[%s38 + $0xf60] sm:$0xff] %v1023
        %v1025 = vld [vmem:[%s37 + $0xf68] sm:$0xff]
        %1026 = vst [vmem:[%s38 + $0xf68] sm:$0xff] %v1025
        %v1027 = vld [vmem:[%s37 + $0xf70] sm:$0xff]
        %1028 = vst [vmem:[%s38 + $0xf70] sm:$0xff] %v1027
        %v1029 = vld [vmem:[%s37 + $0xf78] sm:$0xff]
        %1030 = vst [vmem:[%s38 + $0xf78] sm:$0xff] %v1029
        %v1031 = vld [vmem:[%s37 + $0xf80] sm:$0xff]
        %1032 = vst [vmem:[%s38 + $0xf80] sm:$0xff] %v1031
        %v1033 = vld [vmem:[%s37 + $0xf88] sm:$0xff]
        %1034 = vst [vmem:[%s38 + $0xf88] sm:$0xff] %v1033
        %v1035 = vld [vmem:[%s37 + $0xf90] sm:$0xff]
        %1036 = vst [vmem:[%s38 + $0xf90] sm:$0xff] %v1035
        %v1037 = vld [vmem:[%s37 + $0xf98] sm:$0xff]
        %1038 = vst [vmem:[%s38 + $0xf98] sm:$0xff] %v1037
        %v1039 = vld [vmem:[%s37 + $0xfa0] sm:$0xff]
        %1040 = vst [vmem:[%s38 + $0xfa0] sm:$0xff] %v1039
        %v1041 = vld [vmem:[%s37 + $0xfa8] sm:$0xff]
        %1042 = vst [vmem:[%s38 + $0xfa8] sm:$0xff] %v1041
        %v1043 = vld [vmem:[%s37 + $0xfb0] sm:$0xff]
        %1044 = vst [vmem:[%s38 + $0xfb0] sm:$0xff] %v1043
        %v1045 = vld [vmem:[%s37 + $0xfb8] sm:$0xff]
        %1046 = vst [vmem:[%s38 + $0xfb8] sm:$0xff] %v1045
        %v1047 = vld [vmem:[%s37 + $0xfc0] sm:$0xff]
        %1048 = vst [vmem:[%s38 + $0xfc0] sm:$0xff] %v1047
        %v1049 = vld [vmem:[%s37 + $0xfc8] sm:$0xff]
        %1050 = vst [vmem:[%s38 + $0xfc8] sm:$0xff] %v1049
        %v1051 = vld [vmem:[%s37 + $0xfd0] sm:$0xff]
        %1052 = vst [vmem:[%s38 + $0xfd0] sm:$0xff] %v1051
        %v1053 = vld [vmem:[%s37 + $0xfd8] sm:$0xff]
        %1054 = vst [vmem:[%s38 + $0xfd8] sm:$0xff] %v1053
        %v1055 = vld [vmem:[%s37 + $0xfe0] sm:$0xff]
        %1056 = vst [vmem:[%s38 + $0xfe0] sm:$0xff] %v1055
        %v1057 = vld [vmem:[%s37 + $0xfe8] sm:$0xff]
        %1058 = vst [vmem:[%s38 + $0xfe8] sm:$0xff] %v1057
        %v1059 = vld [vmem:[%s37 + $0xff0] sm:$0xff]
        %1060 = vst [vmem:[%s38 + $0xff0] sm:$0xff] %v1059
        %v1061 = vld [vmem:[%s37 + $0xff8] sm:$0xff]
        %1062 = vst [vmem:[%s38 + $0xff8] sm:$0xff] %v1061
        %v1063 = vld [vmem:[%s37 + $0x1000] sm:$0xff]
        %1064 = vst [vmem:[%s38 + $0x1000] sm:$0xff] %v1063
        %v1065 = vld [vmem:[%s37 + $0x1008] sm:$0xff]
        %1066 = vst [vmem:[%s38 + $0x1008] sm:$0xff] %v1065
        %v1067 = vld [vmem:[%s37 + $0x1010] sm:$0xff]
        %1068 = vst [vmem:[%s38 + $0x1010] sm:$0xff] %v1067
        %v1069 = vld [vmem:[%s37 + $0x1018] sm:$0xff]
        %1070 = vst [vmem:[%s38 + $0x1018] sm:$0xff] %v1069
        %v1071 = vld [vmem:[%s37 + $0x1020] sm:$0xff]
        %1072 = vst [vmem:[%s38 + $0x1020] sm:$0xff] %v1071
        %v1073 = vld [vmem:[%s37 + $0x1028] sm:$0xff]
        %1074 = vst [vmem:[%s38 + $0x1028] sm:$0xff] %v1073
        %v1075 = vld [vmem:[%s37 + $0x1030] sm:$0xff]
        %1076 = vst [vmem:[%s38 + $0x1030] sm:$0xff] %v1075
        %v1077 = vld [vmem:[%s37 + $0x1038] sm:$0xff]
        %1078 = vst [vmem:[%s38 + $0x1038] sm:$0xff] %v1077
        %v1079 = vld [vmem:[%s37 + $0x1040] sm:$0xff]
        %1080 = vst [vmem:[%s38 + $0x1040] sm:$0xff] %v1079
        %v1081 = vld [vmem:[%s37 + $0x1048] sm:$0xff]
        %1082 = vst [vmem:[%s38 + $0x1048] sm:$0xff] %v1081
        %v1083 = vld [vmem:[%s37 + $0x1050] sm:$0xff]
        %1084 = vst [vmem:[%s38 + $0x1050] sm:$0xff] %v1083
        %v1085 = vld [vmem:[%s37 + $0x1058] sm:$0xff]
        %1086 = vst [vmem:[%s38 + $0x1058] sm:$0xff] %v1085
        %v1087 = vld [vmem:[%s37 + $0x1060] sm:$0xff]
        %1088 = vst [vmem:[%s38 + $0x1060] sm:$0xff] %v1087
        %v1089 = vld [vmem:[%s37 + $0x1068] sm:$0xff]
        %1090 = vst [vmem:[%s38 + $0x1068] sm:$0xff] %v1089
        %v1091 = vld [vmem:[%s37 + $0x1070] sm:$0xff]
        %1092 = vst [vmem:[%s38 + $0x1070] sm:$0xff] %v1091
        %v1093 = vld [vmem:[%s37 + $0x1078] sm:$0xff]
        %1094 = vst [vmem:[%s38 + $0x1078] sm:$0xff] %v1093
        %v1095 = vld [vmem:[%s37 + $0x1080] sm:$0xff]
        %1096 = vst [vmem:[%s38 + $0x1080] sm:$0xff] %v1095
        %v1097 = vld [vmem:[%s37 + $0x1088] sm:$0xff]
        %1098 = vst [vmem:[%s38 + $0x1088] sm:$0xff] %v1097
        %v1099 = vld [vmem:[%s37 + $0x1090] sm:$0xff]
        %1100 = vst [vmem:[%s38 + $0x1090] sm:$0xff] %v1099
        %v1101 = vld [vmem:[%s37 + $0x1098] sm:$0xff]
        %1102 = vst [vmem:[%s38 + $0x1098] sm:$0xff] %v1101
        %v1103 = vld [vmem:[%s37 + $0x10a0] sm:$0xff]
        %1104 = vst [vmem:[%s38 + $0x10a0] sm:$0xff] %v1103
        %v1105 = vld [vmem:[%s37 + $0x10a8] sm:$0xff]
        %1106 = vst [vmem:[%s38 + $0x10a8] sm:$0xff] %v1105
        %v1107 = vld [vmem:[%s37 + $0x10b0] sm:$0xff]
        %1108 = vst [vmem:[%s38 + $0x10b0] sm:$0xff] %v1107
        %v1109 = vld [vmem:[%s37 + $0x10b8] sm:$0xff]
        %1110 = vst [vmem:[%s38 + $0x10b8] sm:$0xff] %v1109
        %v1111 = vld [vmem:[%s37 + $0x10c0] sm:$0xff]
        %1112 = vst [vmem:[%s38 + $0x10c0] sm:$0xff] %v1111
        %v1113 = vld [vmem:[%s37 + $0x10c8] sm:$0xff]
        %1114 = vst [vmem:[%s38 + $0x10c8] sm:$0xff] %v1113
        %v1115 = vld [vmem:[%s37 + $0x10d0] sm:$0xff]
        %1116 = vst [vmem:[%s38 + $0x10d0] sm:$0xff] %v1115
        %v1117 = vld [vmem:[%s37 + $0x10d8] sm:$0xff]
        %1118 = vst [vmem:[%s38 + $0x10d8] sm:$0xff] %v1117
        %v1119 = vld [vmem:[%s37 + $0x10e0] sm:$0xff]
        %1120 = vst [vmem:[%s38 + $0x10e0] sm:$0xff] %v1119
        %v1121 = vld [vmem:[%s37 + $0x10e8] sm:$0xff]
        %1122 = vst [vmem:[%s38 + $0x10e8] sm:$0xff] %v1121
        %v1123 = vld [vmem:[%s37 + $0x10f0] sm:$0xff]
        %1124 = vst [vmem:[%s38 + $0x10f0] sm:$0xff] %v1123
        %v1125 = vld [vmem:[%s37 + $0x10f8] sm:$0xff]
        %1126 = vst [vmem:[%s38 + $0x10f8] sm:$0xff] %v1125
        %v1127 = vld [vmem:[%s37 + $0x1100] sm:$0xff]
        %1128 = vst [vmem:[%s38 + $0x1100] sm:$0xff] %v1127
        %v1129 = vld [vmem:[%s37 + $0x1108] sm:$0xff]
        %1130 = vst [vmem:[%s38 + $0x1108] sm:$0xff] %v1129
        %v1131 = vld [vmem:[%s37 + $0x1110] sm:$0xff]
        %1132 = vst [vmem:[%s38 + $0x1110] sm:$0xff] %v1131
        %v1133 = vld [vmem:[%s37 + $0x1118] sm:$0xff]
        %1134 = vst [vmem:[%s38 + $0x1118] sm:$0xff] %v1133
        %v1135 = vld [vmem:[%s37 + $0x1120] sm:$0xff]
        %1136 = vst [vmem:[%s38 + $0x1120] sm:$0xff] %v1135
        %v1137 = vld [vmem:[%s37 + $0x1128] sm:$0xff]
        %1138 = vst [vmem:[%s38 + $0x1128] sm:$0xff] %v1137
        %v1139 = vld [vmem:[%s37 + $0x1130] sm:$0xff]
        %1140 = vst [vmem:[%s38 + $0x1130] sm:$0xff] %v1139
        %v1141 = vld [vmem:[%s37 + $0x1138] sm:$0xff]
        %1142 = vst [vmem:[%s38 + $0x1138] sm:$0xff] %v1141
        %v1143 = vld [vmem:[%s37 + $0x1140] sm:$0xff]
        %1144 = vst [vmem:[%s38 + $0x1140] sm:$0xff] %v1143
        %v1145 = vld [vmem:[%s37 + $0x1148] sm:$0xff]
        %1146 = vst [vmem:[%s38 + $0x1148] sm:$0xff] %v1145
        %v1147 = vld [vmem:[%s37 + $0x1150] sm:$0xff]
        %1148 = vst [vmem:[%s38 + $0x1150] sm:$0xff] %v1147
        %v1149 = vld [vmem:[%s37 + $0x1158] sm:$0xff]
        %1150 = vst [vmem:[%s38 + $0x1158] sm:$0xff] %v1149
        %v1151 = vld [vmem:[%s37 + $0x1160] sm:$0xff]
        %1152 = vst [vmem:[%s38 + $0x1160] sm:$0xff] %v1151
        %v1153 = vld [vmem:[%s37 + $0x1168] sm:$0xff]
        %1154 = vst [vmem:[%s38 + $0x1168] sm:$0xff] %v1153
        %v1155 = vld [vmem:[%s37 + $0x1170] sm:$0xff]
        %1156 = vst [vmem:[%s38 + $0x1170] sm:$0xff] %v1155
        %v1157 = vld [vmem:[%s37 + $0x1178] sm:$0xff]
        %1158 = vst [vmem:[%s38 + $0x1178] sm:$0xff] %v1157
        %v1159 = vld [vmem:[%s37 + $0x1180] sm:$0xff]
        %1160 = vst [vmem:[%s38 + $0x1180] sm:$0xff] %v1159
        %v1161 = vld [vmem:[%s37 + $0x1188] sm:$0xff]
        %1162 = vst [vmem:[%s38 + $0x1188] sm:$0xff] %v1161
        %v1163 = vld [vmem:[%s37 + $0x1190] sm:$0xff]
        %1164 = vst [vmem:[%s38 + $0x1190] sm:$0xff] %v1163
        %v1165 = vld [vmem:[%s37 + $0x1198] sm:$0xff]
        %1166 = vst [vmem:[%s38 + $0x1198] sm:$0xff] %v1165
        %v1167 = vld [vmem:[%s37 + $0x11a0] sm:$0xff]
        %1168 = vst [vmem:[%s38 + $0x11a0] sm:$0xff] %v1167
        %v1169 = vld [vmem:[%s37 + $0x11a8] sm:$0xff]
        %1170 = vst [vmem:[%s38 + $0x11a8] sm:$0xff] %v1169
        %v1171 = vld [vmem:[%s37 + $0x11b0] sm:$0xff]
        %1172 = vst [vmem:[%s38 + $0x11b0] sm:$0xff] %v1171
        %v1173 = vld [vmem:[%s37 + $0x11b8] sm:$0xff]
        %1174 = vst [vmem:[%s38 + $0x11b8] sm:$0xff] %v1173
        %v1175 = vld [vmem:[%s37 + $0x11c0] sm:$0xff]
        %1176 = vst [vmem:[%s38 + $0x11c0] sm:$0xff] %v1175
        %v1177 = vld [vmem:[%s37 + $0x11c8] sm:$0xff]
        %1178 = vst [vmem:[%s38 + $0x11c8] sm:$0xff] %v1177
        %v1179 = vld [vmem:[%s37 + $0x11d0] sm:$0xff]
        %1180 = vst [vmem:[%s38 + $0x11d0] sm:$0xff] %v1179
        %v1181 = vld [vmem:[%s37 + $0x11d8] sm:$0xff]
        %1182 = vst [vmem:[%s38 + $0x11d8] sm:$0xff] %v1181
        %v1183 = vld [vmem:[%s37 + $0x11e0] sm:$0xff]
        %1184 = vst [vmem:[%s38 + $0x11e0] sm:$0xff] %v1183
        %v1185 = vld [vmem:[%s37 + $0x11e8] sm:$0xff]
        %1186 = vst [vmem:[%s38 + $0x11e8] sm:$0xff] %v1185
        %v1187 = vld [vmem:[%s37 + $0x11f0] sm:$0xff]
        %1188 = vst [vmem:[%s38 + $0x11f0] sm:$0xff] %v1187
        %v1189 = vld [vmem:[%s37 + $0x11f8] sm:$0xff]
        %1190 = vst [vmem:[%s38 + $0x11f8] sm:$0xff] %v1189
        %v1191 = vld [vmem:[%s37 + $0x1200] sm:$0xff]
        %1192 = vst [vmem:[%s38 + $0x1200] sm:$0xff] %v1191
        %v1193 = vld [vmem:[%s37 + $0x1208] sm:$0xff]
        %1194 = vst [vmem:[%s38 + $0x1208] sm:$0xff] %v1193
        %v1195 = vld [vmem:[%s37 + $0x1210] sm:$0xff]
        %1196 = vst [vmem:[%s38 + $0x1210] sm:$0xff] %v1195
        %v1197 = vld [vmem:[%s37 + $0x1218] sm:$0xff]
        %1198 = vst [vmem:[%s38 + $0x1218] sm:$0xff] %v1197
        %v1199 = vld [vmem:[%s37 + $0x1220] sm:$0xff]
        %1200 = vst [vmem:[%s38 + $0x1220] sm:$0xff] %v1199
        %v1201 = vld [vmem:[%s37 + $0x1228] sm:$0xff]
        %1202 = vst [vmem:[%s38 + $0x1228] sm:$0xff] %v1201
        %v1203 = vld [vmem:[%s37 + $0x1230] sm:$0xff]
        %1204 = vst [vmem:[%s38 + $0x1230] sm:$0xff] %v1203
        %v1205 = vld [vmem:[%s37 + $0x1238] sm:$0xff]
        %1206 = vst [vmem:[%s38 + $0x1238] sm:$0xff] %v1205
        %v1207 = vld [vmem:[%s37 + $0x1240] sm:$0xff]
        %1208 = vst [vmem:[%s38 + $0x1240] sm:$0xff] %v1207
        %v1209 = vld [vmem:[%s37 + $0x1248] sm:$0xff]
        %1210 = vst [vmem:[%s38 + $0x1248] sm:$0xff] %v1209
        %v1211 = vld [vmem:[%s37 + $0x1250] sm:$0xff]
        %1212 = vst [vmem:[%s38 + $0x1250] sm:$0xff] %v1211
        %v1213 = vld [vmem:[%s37 + $0x1258] sm:$0xff]
        %1214 = vst [vmem:[%s38 + $0x1258] sm:$0xff] %v1213
        %v1215 = vld [vmem:[%s37 + $0x1260] sm:$0xff]
        %1216 = vst [vmem:[%s38 + $0x1260] sm:$0xff] %v1215
        %v1217 = vld [vmem:[%s37 + $0x1268] sm:$0xff]
        %1218 = vst [vmem:[%s38 + $0x1268] sm:$0xff] %v1217
        %v1219 = vld [vmem:[%s37 + $0x1270] sm:$0xff]
        %1220 = vst [vmem:[%s38 + $0x1270] sm:$0xff] %v1219
        %v1221 = vld [vmem:[%s37 + $0x1278] sm:$0xff]
        %1222 = vst [vmem:[%s38 + $0x1278] sm:$0xff] %v1221
        %v1223 = vld [vmem:[%s37 + $0x1280] sm:$0xff]
        %1224 = vst [vmem:[%s38 + $0x1280] sm:$0xff] %v1223
        %v1225 = vld [vmem:[%s37 + $0x1288] sm:$0xff]
        %1226 = vst [vmem:[%s38 + $0x1288] sm:$0xff] %v1225
        %v1227 = vld [vmem:[%s37 + $0x1290] sm:$0xff]
        %1228 = vst [vmem:[%s38 + $0x1290] sm:$0xff] %v1227
        %v1229 = vld [vmem:[%s37 + $0x1298] sm:$0xff]
        %1230 = vst [vmem:[%s38 + $0x1298] sm:$0xff] %v1229
        %v1231 = vld [vmem:[%s37 + $0x12a0] sm:$0xff]
        %1232 = vst [vmem:[%s38 + $0x12a0] sm:$0xff] %v1231
        %v1233 = vld [vmem:[%s37 + $0x12a8] sm:$0xff]
        %1234 = vst [vmem:[%s38 + $0x12a8] sm:$0xff] %v1233
        %v1235 = vld [vmem:[%s37 + $0x12b0] sm:$0xff]
        %1236 = vst [vmem:[%s38 + $0x12b0] sm:$0xff] %v1235
        %v1237 = vld [vmem:[%s37 + $0x12b8] sm:$0xff]
        %1238 = vst [vmem:[%s38 + $0x12b8] sm:$0xff] %v1237
        %v1239 = vld [vmem:[%s37 + $0x12c0] sm:$0xff]
        %1240 = vst [vmem:[%s38 + $0x12c0] sm:$0xff] %v1239
        %v1241 = vld [vmem:[%s37 + $0x12c8] sm:$0xff]
        %1242 = vst [vmem:[%s38 + $0x12c8] sm:$0xff] %v1241
        %v1243 = vld [vmem:[%s37 + $0x12d0] sm:$0xff]
        %1244 = vst [vmem:[%s38 + $0x12d0] sm:$0xff] %v1243
        %v1245 = vld [vmem:[%s37 + $0x12d8] sm:$0xff]
        %1246 = vst [vmem:[%s38 + $0x12d8] sm:$0xff] %v1245
        %v1247 = vld [vmem:[%s37 + $0x12e0] sm:$0xff]
        %1248 = vst [vmem:[%s38 + $0x12e0] sm:$0xff] %v1247
        %v1249 = vld [vmem:[%s37 + $0x12e8] sm:$0xff]
        %1250 = vst [vmem:[%s38 + $0x12e8] sm:$0xff] %v1249
        %v1251 = vld [vmem:[%s37 + $0x12f0] sm:$0xff]
        %1252 = vst [vmem:[%s38 + $0x12f0] sm:$0xff] %v1251
        %v1253 = vld [vmem:[%s37 + $0x12f8] sm:$0xff]
        %1254 = vst [vmem:[%s38 + $0x12f8] sm:$0xff] %v1253
        %v1255 = vld [vmem:[%s37 + $0x1300] sm:$0xff]
        %1256 = vst [vmem:[%s38 + $0x1300] sm:$0xff] %v1255
        %v1257 = vld [vmem:[%s37 + $0x1308] sm:$0xff]
        %1258 = vst [vmem:[%s38 + $0x1308] sm:$0xff] %v1257
        %v1259 = vld [vmem:[%s37 + $0x1310] sm:$0xff]
        %1260 = vst [vmem:[%s38 + $0x1310] sm:$0xff] %v1259
        %v1261 = vld [vmem:[%s37 + $0x1318] sm:$0xff]
        %1262 = vst [vmem:[%s38 + $0x1318] sm:$0xff] %v1261
        %v1263 = vld [vmem:[%s37 + $0x1320] sm:$0xff]
        %1264 = vst [vmem:[%s38 + $0x1320] sm:$0xff] %v1263
        %v1265 = vld [vmem:[%s37 + $0x1328] sm:$0xff]
        %1266 = vst [vmem:[%s38 + $0x1328] sm:$0xff] %v1265
        %v1267 = vld [vmem:[%s37 + $0x1330] sm:$0xff]
        %1268 = vst [vmem:[%s38 + $0x1330] sm:$0xff] %v1267
        %v1269 = vld [vmem:[%s37 + $0x1338] sm:$0xff]
        %1270 = vst [vmem:[%s38 + $0x1338] sm:$0xff] %v1269
        %v1271 = vld [vmem:[%s37 + $0x1340] sm:$0xff]
        %1272 = vst [vmem:[%s38 + $0x1340] sm:$0xff] %v1271
        %v1273 = vld [vmem:[%s37 + $0x1348] sm:$0xff]
        %1274 = vst [vmem:[%s38 + $0x1348] sm:$0xff] %v1273
        %v1275 = vld [vmem:[%s37 + $0x1350] sm:$0xff]
        %1276 = vst [vmem:[%s38 + $0x1350] sm:$0xff] %v1275
        %v1277 = vld [vmem:[%s37 + $0x1358] sm:$0xff]
        %1278 = vst [vmem:[%s38 + $0x1358] sm:$0xff] %v1277
        %v1279 = vld [vmem:[%s37 + $0x1360] sm:$0xff]
        %1280 = vst [vmem:[%s38 + $0x1360] sm:$0xff] %v1279
        %v1281 = vld [vmem:[%s37 + $0x1368] sm:$0xff]
        %1282 = vst [vmem:[%s38 + $0x1368] sm:$0xff] %v1281
        %v1283 = vld [vmem:[%s37 + $0x1370] sm:$0xff]
        %1284 = vst [vmem:[%s38 + $0x1370] sm:$0xff] %v1283
        %v1285 = vld [vmem:[%s37 + $0x1378] sm:$0xff]
        %1286 = vst [vmem:[%s38 + $0x1378] sm:$0xff] %v1285
        %v1287 = vld [vmem:[%s37 + $0x1380] sm:$0xff]
        %1288 = vst [vmem:[%s38 + $0x1380] sm:$0xff] %v1287
        %v1289 = vld [vmem:[%s37 + $0x1388] sm:$0xff]
        %1290 = vst [vmem:[%s38 + $0x1388] sm:$0xff] %v1289
        %v1291 = vld [vmem:[%s37 + $0x1390] sm:$0xff]
        %1292 = vst [vmem:[%s38 + $0x1390] sm:$0xff] %v1291
        %v1293 = vld [vmem:[%s37 + $0x1398] sm:$0xff]
        %1294 = vst [vmem:[%s38 + $0x1398] sm:$0xff] %v1293
        %v1295 = vld [vmem:[%s37 + $0x13a0] sm:$0xff]
        %1296 = vst [vmem:[%s38 + $0x13a0] sm:$0xff] %v1295
        %v1297 = vld [vmem:[%s37 + $0x13a8] sm:$0xff]
        %1298 = vst [vmem:[%s38 + $0x13a8] sm:$0xff] %v1297
        %v1299 = vld [vmem:[%s37 + $0x13b0] sm:$0xff]
        %1300 = vst [vmem:[%s38 + $0x13b0] sm:$0xff] %v1299
        %v1301 = vld [vmem:[%s37 + $0x13b8] sm:$0xff]
        %1302 = vst [vmem:[%s38 + $0x13b8] sm:$0xff] %v1301
        %v1303 = vld [vmem:[%s37 + $0x13c0] sm:$0xff]
        %1304 = vst [vmem:[%s38 + $0x13c0] sm:$0xff] %v1303
        %v1305 = vld [vmem:[%s37 + $0x13c8] sm:$0xff]
        %1306 = vst [vmem:[%s38 + $0x13c8] sm:$0xff] %v1305
        %v1307 = vld [vmem:[%s37 + $0x13d0] sm:$0xff]
        %1308 = vst [vmem:[%s38 + $0x13d0] sm:$0xff] %v1307
        %v1309 = vld [vmem:[%s37 + $0x13d8] sm:$0xff]
        %1310 = vst [vmem:[%s38 + $0x13d8] sm:$0xff] %v1309
        %v1311 = vld [vmem:[%s37 + $0x13e0] sm:$0xff]
        %1312 = vst [vmem:[%s38 + $0x13e0] sm:$0xff] %v1311
        %v1313 = vld [vmem:[%s37 + $0x13e8] sm:$0xff]
        %1314 = vst [vmem:[%s38 + $0x13e8] sm:$0xff] %v1313
        %v1315 = vld [vmem:[%s37 + $0x13f0] sm:$0xff]
        %1316 = vst [vmem:[%s38 + $0x13f0] sm:$0xff] %v1315
        %v1317 = vld [vmem:[%s37 + $0x13f8] sm:$0xff]
        %1318 = vst [vmem:[%s38 + $0x13f8] sm:$0xff] %v1317
        %v1319 = vld [vmem:[%s37 + $0x1400] sm:$0xff]
        %1320 = vst [vmem:[%s38 + $0x1400] sm:$0xff] %v1319
        %v1321 = vld [vmem:[%s37 + $0x1408] sm:$0xff]
        %1322 = vst [vmem:[%s38 + $0x1408] sm:$0xff] %v1321
        %v1323 = vld [vmem:[%s37 + $0x1410] sm:$0xff]
        %1324 = vst [vmem:[%s38 + $0x1410] sm:$0xff] %v1323
        %v1325 = vld [vmem:[%s37 + $0x1418] sm:$0xff]
        %1326 = vst [vmem:[%s38 + $0x1418] sm:$0xff] %v1325
        %v1327 = vld [vmem:[%s37 + $0x1420] sm:$0xff]
        %1328 = vst [vmem:[%s38 + $0x1420] sm:$0xff] %v1327
        %v1329 = vld [vmem:[%s37 + $0x1428] sm:$0xff]
        %1330 = vst [vmem:[%s38 + $0x1428] sm:$0xff] %v1329
        %v1331 = vld [vmem:[%s37 + $0x1430] sm:$0xff]
        %1332 = vst [vmem:[%s38 + $0x1430] sm:$0xff] %v1331
        %v1333 = vld [vmem:[%s37 + $0x1438] sm:$0xff]
        %1334 = vst [vmem:[%s38 + $0x1438] sm:$0xff] %v1333
        %v1335 = vld [vmem:[%s37 + $0x1440] sm:$0xff]
        %1336 = vst [vmem:[%s38 + $0x1440] sm:$0xff] %v1335
        %v1337 = vld [vmem:[%s37 + $0x1448] sm:$0xff]
        %1338 = vst [vmem:[%s38 + $0x1448] sm:$0xff] %v1337
        %v1339 = vld [vmem:[%s37 + $0x1450] sm:$0xff]
        %1340 = vst [vmem:[%s38 + $0x1450] sm:$0xff] %v1339
        %v1341 = vld [vmem:[%s37 + $0x1458] sm:$0xff]
        %1342 = vst [vmem:[%s38 + $0x1458] sm:$0xff] %v1341
        %v1343 = vld [vmem:[%s37 + $0x1460] sm:$0xff]
        %1344 = vst [vmem:[%s38 + $0x1460] sm:$0xff] %v1343
        %v1345 = vld [vmem:[%s37 + $0x1468] sm:$0xff]
        %1346 = vst [vmem:[%s38 + $0x1468] sm:$0xff] %v1345
        %v1347 = vld [vmem:[%s37 + $0x1470] sm:$0xff]
        %1348 = vst [vmem:[%s38 + $0x1470] sm:$0xff] %v1347
        %v1349 = vld [vmem:[%s37 + $0x1478] sm:$0xff]
        %1350 = vst [vmem:[%s38 + $0x1478] sm:$0xff] %v1349
        %v1351 = vld [vmem:[%s37 + $0x1480] sm:$0xff]
        %1352 = vst [vmem:[%s38 + $0x1480] sm:$0xff] %v1351
        %v1353 = vld [vmem:[%s37 + $0x1488] sm:$0xff]
        %1354 = vst [vmem:[%s38 + $0x1488] sm:$0xff] %v1353
        %v1355 = vld [vmem:[%s37 + $0x1490] sm:$0xff]
        %1356 = vst [vmem:[%s38 + $0x1490] sm:$0xff] %v1355
        %v1357 = vld [vmem:[%s37 + $0x1498] sm:$0xff]
        %1358 = vst [vmem:[%s38 + $0x1498] sm:$0xff] %v1357
        %v1359 = vld [vmem:[%s37 + $0x14a0] sm:$0xff]
        %1360 = vst [vmem:[%s38 + $0x14a0] sm:$0xff] %v1359
        %v1361 = vld [vmem:[%s37 + $0x14a8] sm:$0xff]
        %1362 = vst [vmem:[%s38 + $0x14a8] sm:$0xff] %v1361
        %v1363 = vld [vmem:[%s37 + $0x14b0] sm:$0xff]
        %1364 = vst [vmem:[%s38 + $0x14b0] sm:$0xff] %v1363
        %v1365 = vld [vmem:[%s37 + $0x14b8] sm:$0xff]
        %1366 = vst [vmem:[%s38 + $0x14b8] sm:$0xff] %v1365
        %v1367 = vld [vmem:[%s37 + $0x14c0] sm:$0xff]
        %1368 = vst [vmem:[%s38 + $0x14c0] sm:$0xff] %v1367
        %v1369 = vld [vmem:[%s37 + $0x14c8] sm:$0xff]
        %1370 = vst [vmem:[%s38 + $0x14c8] sm:$0xff] %v1369
        %v1371 = vld [vmem:[%s37 + $0x14d0] sm:$0xff]
        %1372 = vst [vmem:[%s38 + $0x14d0] sm:$0xff] %v1371
        %v1373 = vld [vmem:[%s37 + $0x14d8] sm:$0xff]
        %1374 = vst [vmem:[%s38 + $0x14d8] sm:$0xff] %v1373
        %v1375 = vld [vmem:[%s37 + $0x14e0] sm:$0xff]
        %1376 = vst [vmem:[%s38 + $0x14e0] sm:$0xff] %v1375
        %v1377 = vld [vmem:[%s37 + $0x14e8] sm:$0xff]
        %1378 = vst [vmem:[%s38 + $0x14e8] sm:$0xff] %v1377
        %v1379 = vld [vmem:[%s37 + $0x14f0] sm:$0xff]
        %1380 = vst [vmem:[%s38 + $0x14f0] sm:$0xff] %v1379
        %v1381 = vld [vmem:[%s37 + $0x14f8] sm:$0xff]
        %1382 = vst [vmem:[%s38 + $0x14f8] sm:$0xff] %v1381
        %v1383 = vld [vmem:[%s37 + $0x1500] sm:$0xff]
        %1384 = vst [vmem:[%s38 + $0x1500] sm:$0xff] %v1383
        %v1385 = vld [vmem:[%s37 + $0x1508] sm:$0xff]
        %1386 = vst [vmem:[%s38 + $0x1508] sm:$0xff] %v1385
        %v1387 = vld [vmem:[%s37 + $0x1510] sm:$0xff]
        %1388 = vst [vmem:[%s38 + $0x1510] sm:$0xff] %v1387
        %v1389 = vld [vmem:[%s37 + $0x1518] sm:$0xff]
        %1390 = vst [vmem:[%s38 + $0x1518] sm:$0xff] %v1389
        %v1391 = vld [vmem:[%s37 + $0x1520] sm:$0xff]
        %1392 = vst [vmem:[%s38 + $0x1520] sm:$0xff] %v1391
        %v1393 = vld [vmem:[%s37 + $0x1528] sm:$0xff]
        %1394 = vst [vmem:[%s38 + $0x1528] sm:$0xff] %v1393
        %v1395 = vld [vmem:[%s37 + $0x1530] sm:$0xff]
        %1396 = vst [vmem:[%s38 + $0x1530] sm:$0xff] %v1395
        %v1397 = vld [vmem:[%s37 + $0x1538] sm:$0xff]
        %1398 = vst [vmem:[%s38 + $0x1538] sm:$0xff] %v1397
        %v1399 = vld [vmem:[%s37 + $0x1540] sm:$0xff]
        %1400 = vst [vmem:[%s38 + $0x1540] sm:$0xff] %v1399
        %v1401 = vld [vmem:[%s37 + $0x1548] sm:$0xff]
        %1402 = vst [vmem:[%s38 + $0x1548] sm:$0xff] %v1401
        %v1403 = vld [vmem:[%s37 + $0x1550] sm:$0xff]
        %1404 = vst [vmem:[%s38 + $0x1550] sm:$0xff] %v1403
        %v1405 = vld [vmem:[%s37 + $0x1558] sm:$0xff]
        %1406 = vst [vmem:[%s38 + $0x1558] sm:$0xff] %v1405
        %v1407 = vld [vmem:[%s37 + $0x1560] sm:$0xff]
        %1408 = vst [vmem:[%s38 + $0x1560] sm:$0xff] %v1407
        %v1409 = vld [vmem:[%s37 + $0x1568] sm:$0xff]
        %1410 = vst [vmem:[%s38 + $0x1568] sm:$0xff] %v1409
        %v1411 = vld [vmem:[%s37 + $0x1570] sm:$0xff]
        %1412 = vst [vmem:[%s38 + $0x1570] sm:$0xff] %v1411
        %v1413 = vld [vmem:[%s37 + $0x1578] sm:$0xff]
        %1414 = vst [vmem:[%s38 + $0x1578] sm:$0xff] %v1413
        %v1415 = vld [vmem:[%s37 + $0x1580] sm:$0xff]
        %1416 = vst [vmem:[%s38 + $0x1580] sm:$0xff] %v1415
        %v1417 = vld [vmem:[%s37 + $0x1588] sm:$0xff]
        %1418 = vst [vmem:[%s38 + $0x1588] sm:$0xff] %v1417
        %v1419 = vld [vmem:[%s37 + $0x1590] sm:$0xff]
        %1420 = vst [vmem:[%s38 + $0x1590] sm:$0xff] %v1419
        %v1421 = vld [vmem:[%s37 + $0x1598] sm:$0xff]
        %1422 = vst [vmem:[%s38 + $0x1598] sm:$0xff] %v1421
        %v1423 = vld [vmem:[%s37 + $0x15a0] sm:$0xff]
        %1424 = vst [vmem:[%s38 + $0x15a0] sm:$0xff] %v1423
        %v1425 = vld [vmem:[%s37 + $0x15a8] sm:$0xff]
        %1426 = vst [vmem:[%s38 + $0x15a8] sm:$0xff] %v1425
        %v1427 = vld [vmem:[%s37 + $0x15b0] sm:$0xff]
        %1428 = vst [vmem:[%s38 + $0x15b0] sm:$0xff] %v1427
        %v1429 = vld [vmem:[%s37 + $0x15b8] sm:$0xff]
        %1430 = vst [vmem:[%s38 + $0x15b8] sm:$0xff] %v1429
        %v1431 = vld [vmem:[%s37 + $0x15c0] sm:$0xff]
        %1432 = vst [vmem:[%s38 + $0x15c0] sm:$0xff] %v1431
        %v1433 = vld [vmem:[%s37 + $0x15c8] sm:$0xff]
        %1434 = vst [vmem:[%s38 + $0x15c8] sm:$0xff] %v1433
        %v1435 = vld [vmem:[%s37 + $0x15d0] sm:$0xff]
        %1436 = vst [vmem:[%s38 + $0x15d0] sm:$0xff] %v1435
        %v1437 = vld [vmem:[%s37 + $0x15d8] sm:$0xff]
        %1438 = vst [vmem:[%s38 + $0x15d8] sm:$0xff] %v1437
        %v1439 = vld [vmem:[%s37 + $0x15e0] sm:$0xff]
        %1440 = vst [vmem:[%s38 + $0x15e0] sm:$0xff] %v1439
        %v1441 = vld [vmem:[%s37 + $0x15e8] sm:$0xff]
        %1442 = vst [vmem:[%s38 + $0x15e8] sm:$0xff] %v1441
        %v1443 = vld [vmem:[%s37 + $0x15f0] sm:$0xff]
        %1444 = vst [vmem:[%s38 + $0x15f0] sm:$0xff] %v1443
        %v1445 = vld [vmem:[%s37 + $0x15f8] sm:$0xff]
        %1446 = vst [vmem:[%s38 + $0x15f8] sm:$0xff] %v1445
        %v1447 = vld [vmem:[%s37 + $0x1600] sm:$0xff]
        %1448 = vst [vmem:[%s38 + $0x1600] sm:$0xff] %v1447
        %v1449 = vld [vmem:[%s37 + $0x1608] sm:$0xff]
        %1450 = vst [vmem:[%s38 + $0x1608] sm:$0xff] %v1449
        %v1451 = vld [vmem:[%s37 + $0x1610] sm:$0xff]
        %1452 = vst [vmem:[%s38 + $0x1610] sm:$0xff] %v1451
        %v1453 = vld [vmem:[%s37 + $0x1618] sm:$0xff]
        %1454 = vst [vmem:[%s38 + $0x1618] sm:$0xff] %v1453
        %v1455 = vld [vmem:[%s37 + $0x1620] sm:$0xff]
        %1456 = vst [vmem:[%s38 + $0x1620] sm:$0xff] %v1455
        %v1457 = vld [vmem:[%s37 + $0x1628] sm:$0xff]
        %1458 = vst [vmem:[%s38 + $0x1628] sm:$0xff] %v1457
        %v1459 = vld [vmem:[%s37 + $0x1630] sm:$0xff]
        %1460 = vst [vmem:[%s38 + $0x1630] sm:$0xff] %v1459
        %v1461 = vld [vmem:[%s37 + $0x1638] sm:$0xff]
        %1462 = vst [vmem:[%s38 + $0x1638] sm:$0xff] %v1461
        %v1463 = vld [vmem:[%s37 + $0x1640] sm:$0xff]
        %1464 = vst [vmem:[%s38 + $0x1640] sm:$0xff] %v1463
        %v1465 = vld [vmem:[%s37 + $0x1648] sm:$0xff]
        %1466 = vst [vmem:[%s38 + $0x1648] sm:$0xff] %v1465
        %v1467 = vld [vmem:[%s37 + $0x1650] sm:$0xff]
        %1468 = vst [vmem:[%s38 + $0x1650] sm:$0xff] %v1467
        %v1469 = vld [vmem:[%s37 + $0x1658] sm:$0xff]
        %1470 = vst [vmem:[%s38 + $0x1658] sm:$0xff] %v1469
        %v1471 = vld [vmem:[%s37 + $0x1660] sm:$0xff]
        %1472 = vst [vmem:[%s38 + $0x1660] sm:$0xff] %v1471
        %v1473 = vld [vmem:[%s37 + $0x1668] sm:$0xff]
        %1474 = vst [vmem:[%s38 + $0x1668] sm:$0xff] %v1473
        %v1475 = vld [vmem:[%s37 + $0x1670] sm:$0xff]
        %1476 = vst [vmem:[%s38 + $0x1670] sm:$0xff] %v1475
        %v1477 = vld [vmem:[%s37 + $0x1678] sm:$0xff]
        %1478 = vst [vmem:[%s38 + $0x1678] sm:$0xff] %v1477
        %v1479 = vld [vmem:[%s37 + $0x1680] sm:$0xff]
        %1480 = vst [vmem:[%s38 + $0x1680] sm:$0xff] %v1479
        %v1481 = vld [vmem:[%s37 + $0x1688] sm:$0xff]
        %1482 = vst [vmem:[%s38 + $0x1688] sm:$0xff] %v1481
        %v1483 = vld [vmem:[%s37 + $0x1690] sm:$0xff]
        %1484 = vst [vmem:[%s38 + $0x1690] sm:$0xff] %v1483
        %v1485 = vld [vmem:[%s37 + $0x1698] sm:$0xff]
        %1486 = vst [vmem:[%s38 + $0x1698] sm:$0xff] %v1485
        %v1487 = vld [vmem:[%s37 + $0x16a0] sm:$0xff]
        %1488 = vst [vmem:[%s38 + $0x16a0] sm:$0xff] %v1487
        %v1489 = vld [vmem:[%s37 + $0x16a8] sm:$0xff]
        %1490 = vst [vmem:[%s38 + $0x16a8] sm:$0xff] %v1489
        %v1491 = vld [vmem:[%s37 + $0x16b0] sm:$0xff]
        %1492 = vst [vmem:[%s38 + $0x16b0] sm:$0xff] %v1491
        %v1493 = vld [vmem:[%s37 + $0x16b8] sm:$0xff]
        %1494 = vst [vmem:[%s38 + $0x16b8] sm:$0xff] %v1493
        %v1495 = vld [vmem:[%s37 + $0x16c0] sm:$0xff]
        %1496 = vst [vmem:[%s38 + $0x16c0] sm:$0xff] %v1495
        %v1497 = vld [vmem:[%s37 + $0x16c8] sm:$0xff]
        %1498 = vst [vmem:[%s38 + $0x16c8] sm:$0xff] %v1497
        %v1499 = vld [vmem:[%s37 + $0x16d0] sm:$0xff]
        %1500 = vst [vmem:[%s38 + $0x16d0] sm:$0xff] %v1499
        %v1501 = vld [vmem:[%s37 + $0x16d8] sm:$0xff]
        %1502 = vst [vmem:[%s38 + $0x16d8] sm:$0xff] %v1501
        %v1503 = vld [vmem:[%s37 + $0x16e0] sm:$0xff]
        %1504 = vst [vmem:[%s38 + $0x16e0] sm:$0xff] %v1503
        %v1505 = vld [vmem:[%s37 + $0x16e8] sm:$0xff]
        %1506 = vst [vmem:[%s38 + $0x16e8] sm:$0xff] %v1505
        %v1507 = vld [vmem:[%s37 + $0x16f0] sm:$0xff]
        %1508 = vst [vmem:[%s38 + $0x16f0] sm:$0xff] %v1507
        %v1509 = vld [vmem:[%s37 + $0x16f8] sm:$0xff]
        %1510 = vst [vmem:[%s38 + $0x16f8] sm:$0xff] %v1509
        %v1511 = vld [vmem:[%s37 + $0x1700] sm:$0xff]
        %1512 = vst [vmem:[%s38 + $0x1700] sm:$0xff] %v1511
        %v1513 = vld [vmem:[%s37 + $0x1708] sm:$0xff]
        %1514 = vst [vmem:[%s38 + $0x1708] sm:$0xff] %v1513
        %v1515 = vld [vmem:[%s37 + $0x1710] sm:$0xff]
        %1516 = vst [vmem:[%s38 + $0x1710] sm:$0xff] %v1515
        %v1517 = vld [vmem:[%s37 + $0x1718] sm:$0xff]
        %1518 = vst [vmem:[%s38 + $0x1718] sm:$0xff] %v1517
        %v1519 = vld [vmem:[%s37 + $0x1720] sm:$0xff]
        %1520 = vst [vmem:[%s38 + $0x1720] sm:$0xff] %v1519
        %v1521 = vld [vmem:[%s37 + $0x1728] sm:$0xff]
        %1522 = vst [vmem:[%s38 + $0x1728] sm:$0xff] %v1521
        %v1523 = vld [vmem:[%s37 + $0x1730] sm:$0xff]
        %1524 = vst [vmem:[%s38 + $0x1730] sm:$0xff] %v1523
        %v1525 = vld [vmem:[%s37 + $0x1738] sm:$0xff]
        %1526 = vst [vmem:[%s38 + $0x1738] sm:$0xff] %v1525
        %v1527 = vld [vmem:[%s37 + $0x1740] sm:$0xff]
        %1528 = vst [vmem:[%s38 + $0x1740] sm:$0xff] %v1527
        %v1529 = vld [vmem:[%s37 + $0x1748] sm:$0xff]
        %1530 = vst [vmem:[%s38 + $0x1748] sm:$0xff] %v1529
        %v1531 = vld [vmem:[%s37 + $0x1750] sm:$0xff]
        %1532 = vst [vmem:[%s38 + $0x1750] sm:$0xff] %v1531
        %v1533 = vld [vmem:[%s37 + $0x1758] sm:$0xff]
        %1534 = vst [vmem:[%s38 + $0x1758] sm:$0xff] %v1533
        %v1535 = vld [vmem:[%s37 + $0x1760] sm:$0xff]
        %1536 = vst [vmem:[%s38 + $0x1760] sm:$0xff] %v1535
        %v1537 = vld [vmem:[%s37 + $0x1768] sm:$0xff]
        %1538 = vst [vmem:[%s38 + $0x1768] sm:$0xff] %v1537
        %v1539 = vld [vmem:[%s37 + $0x1770] sm:$0xff]
        %1540 = vst [vmem:[%s38 + $0x1770] sm:$0xff] %v1539
        %v1541 = vld [vmem:[%s37 + $0x1778] sm:$0xff]
        %1542 = vst [vmem:[%s38 + $0x1778] sm:$0xff] %v1541
        %v1543 = vld [vmem:[%s37 + $0x1780] sm:$0xff]
        %1544 = vst [vmem:[%s38 + $0x1780] sm:$0xff] %v1543
        %v1545 = vld [vmem:[%s37 + $0x1788] sm:$0xff]
        %1546 = vst [vmem:[%s38 + $0x1788] sm:$0xff] %v1545
        %v1547 = vld [vmem:[%s37 + $0x1790] sm:$0xff]
        %1548 = vst [vmem:[%s38 + $0x1790] sm:$0xff] %v1547
        %v1549 = vld [vmem:[%s37 + $0x1798] sm:$0xff]
        %1550 = vst [vmem:[%s38 + $0x1798] sm:$0xff] %v1549
        %v1551 = vld [vmem:[%s37 + $0x17a0] sm:$0xff]
        %1552 = vst [vmem:[%s38 + $0x17a0] sm:$0xff] %v1551
        %v1553 = vld [vmem:[%s37 + $0x17a8] sm:$0xff]
        %1554 = vst [vmem:[%s38 + $0x17a8] sm:$0xff] %v1553
        %v1555 = vld [vmem:[%s37 + $0x17b0] sm:$0xff]
        %1556 = vst [vmem:[%s38 + $0x17b0] sm:$0xff] %v1555
        %v1557 = vld [vmem:[%s37 + $0x17b8] sm:$0xff]
        %1558 = vst [vmem:[%s38 + $0x17b8] sm:$0xff] %v1557
        %v1559 = vld [vmem:[%s37 + $0x17c0] sm:$0xff]
        %1560 = vst [vmem:[%s38 + $0x17c0] sm:$0xff] %v1559
        %v1561 = vld [vmem:[%s37 + $0x17c8] sm:$0xff]
        %1562 = vst [vmem:[%s38 + $0x17c8] sm:$0xff] %v1561
        %v1563 = vld [vmem:[%s37 + $0x17d0] sm:$0xff]
        %1564 = vst [vmem:[%s38 + $0x17d0] sm:$0xff] %v1563
        %v1565 = vld [vmem:[%s37 + $0x17d8] sm:$0xff]
        %1566 = vst [vmem:[%s38 + $0x17d8] sm:$0xff] %v1565
        %v1567 = vld [vmem:[%s37 + $0x17e0] sm:$0xff]
        %1568 = vst [vmem:[%s38 + $0x17e0] sm:$0xff] %v1567
        %v1569 = vld [vmem:[%s37 + $0x17e8] sm:$0xff]
        %1570 = vst [vmem:[%s38 + $0x17e8] sm:$0xff] %v1569
        %v1571 = vld [vmem:[%s37 + $0x17f0] sm:$0xff]
        %1572 = vst [vmem:[%s38 + $0x17f0] sm:$0xff] %v1571
        %v1573 = vld [vmem:[%s37 + $0x17f8] sm:$0xff]
        %1574 = vst [vmem:[%s38 + $0x17f8] sm:$0xff] %v1573
        %v1575 = vld [vmem:[%s37 + $0x1800] sm:$0xff]
        %1576 = vst [vmem:[%s38 + $0x1800] sm:$0xff] %v1575
        %v1577 = vld [vmem:[%s37 + $0x1808] sm:$0xff]
        %1578 = vst [vmem:[%s38 + $0x1808] sm:$0xff] %v1577
        %v1579 = vld [vmem:[%s37 + $0x1810] sm:$0xff]
        %1580 = vst [vmem:[%s38 + $0x1810] sm:$0xff] %v1579
        %v1581 = vld [vmem:[%s37 + $0x1818] sm:$0xff]
        %1582 = vst [vmem:[%s38 + $0x1818] sm:$0xff] %v1581
        %v1583 = vld [vmem:[%s37 + $0x1820] sm:$0xff]
        %1584 = vst [vmem:[%s38 + $0x1820] sm:$0xff] %v1583
        %v1585 = vld [vmem:[%s37 + $0x1828] sm:$0xff]
        %1586 = vst [vmem:[%s38 + $0x1828] sm:$0xff] %v1585
        %v1587 = vld [vmem:[%s37 + $0x1830] sm:$0xff]
        %1588 = vst [vmem:[%s38 + $0x1830] sm:$0xff] %v1587
        %v1589 = vld [vmem:[%s37 + $0x1838] sm:$0xff]
        %1590 = vst [vmem:[%s38 + $0x1838] sm:$0xff] %v1589
        %v1591 = vld [vmem:[%s37 + $0x1840] sm:$0xff]
        %1592 = vst [vmem:[%s38 + $0x1840] sm:$0xff] %v1591
        %v1593 = vld [vmem:[%s37 + $0x1848] sm:$0xff]
        %1594 = vst [vmem:[%s38 + $0x1848] sm:$0xff] %v1593
        %v1595 = vld [vmem:[%s37 + $0x1850] sm:$0xff]
        %1596 = vst [vmem:[%s38 + $0x1850] sm:$0xff] %v1595
        %v1597 = vld [vmem:[%s37 + $0x1858] sm:$0xff]
        %1598 = vst [vmem:[%s38 + $0x1858] sm:$0xff] %v1597
        %v1599 = vld [vmem:[%s37 + $0x1860] sm:$0xff]
        %1600 = vst [vmem:[%s38 + $0x1860] sm:$0xff] %v1599
        %v1601 = vld [vmem:[%s37 + $0x1868] sm:$0xff]
        %1602 = vst [vmem:[%s38 + $0x1868] sm:$0xff] %v1601
        %v1603 = vld [vmem:[%s37 + $0x1870] sm:$0xff]
        %1604 = vst [vmem:[%s38 + $0x1870] sm:$0xff] %v1603
        %v1605 = vld [vmem:[%s37 + $0x1878] sm:$0xff]
        %1606 = vst [vmem:[%s38 + $0x1878] sm:$0xff] %v1605
        %v1607 = vld [vmem:[%s37 + $0x1880] sm:$0xff]
        %1608 = vst [vmem:[%s38 + $0x1880] sm:$0xff] %v1607
        %v1609 = vld [vmem:[%s37 + $0x1888] sm:$0xff]
        %1610 = vst [vmem:[%s38 + $0x1888] sm:$0xff] %v1609
        %v1611 = vld [vmem:[%s37 + $0x1890] sm:$0xff]
        %1612 = vst [vmem:[%s38 + $0x1890] sm:$0xff] %v1611
        %v1613 = vld [vmem:[%s37 + $0x1898] sm:$0xff]
        %1614 = vst [vmem:[%s38 + $0x1898] sm:$0xff] %v1613
        %v1615 = vld [vmem:[%s37 + $0x18a0] sm:$0xff]
        %1616 = vst [vmem:[%s38 + $0x18a0] sm:$0xff] %v1615
        %v1617 = vld [vmem:[%s37 + $0x18a8] sm:$0xff]
        %1618 = vst [vmem:[%s38 + $0x18a8] sm:$0xff] %v1617
        %v1619 = vld [vmem:[%s37 + $0x18b0] sm:$0xff]
        %1620 = vst [vmem:[%s38 + $0x18b0] sm:$0xff] %v1619
        %v1621 = vld [vmem:[%s37 + $0x18b8] sm:$0xff]
        %1622 = vst [vmem:[%s38 + $0x18b8] sm:$0xff] %v1621
        %v1623 = vld [vmem:[%s37 + $0x18c0] sm:$0xff]
        %1624 = vst [vmem:[%s38 + $0x18c0] sm:$0xff] %v1623
        %v1625 = vld [vmem:[%s37 + $0x18c8] sm:$0xff]
        %1626 = vst [vmem:[%s38 + $0x18c8] sm:$0xff] %v1625
        %v1627 = vld [vmem:[%s37 + $0x18d0] sm:$0xff]
        %1628 = vst [vmem:[%s38 + $0x18d0] sm:$0xff] %v1627
        %v1629 = vld [vmem:[%s37 + $0x18d8] sm:$0xff]
        %1630 = vst [vmem:[%s38 + $0x18d8] sm:$0xff] %v1629
        %v1631 = vld [vmem:[%s37 + $0x18e0] sm:$0xff]
        %1632 = vst [vmem:[%s38 + $0x18e0] sm:$0xff] %v1631
        %v1633 = vld [vmem:[%s37 + $0x18e8] sm:$0xff]
        %1634 = vst [vmem:[%s38 + $0x18e8] sm:$0xff] %v1633
        %v1635 = vld [vmem:[%s37 + $0x18f0] sm:$0xff]
        %1636 = vst [vmem:[%s38 + $0x18f0] sm:$0xff] %v1635
        %v1637 = vld [vmem:[%s37 + $0x18f8] sm:$0xff]
        %1638 = vst [vmem:[%s38 + $0x18f8] sm:$0xff] %v1637
        %v1639 = vld [vmem:[%s37 + $0x1900] sm:$0xff]
        %1640 = vst [vmem:[%s38 + $0x1900] sm:$0xff] %v1639
        %v1641 = vld [vmem:[%s37 + $0x1908] sm:$0xff]
        %1642 = vst [vmem:[%s38 + $0x1908] sm:$0xff] %v1641
        %v1643 = vld [vmem:[%s37 + $0x1910] sm:$0xff]
        %1644 = vst [vmem:[%s38 + $0x1910] sm:$0xff] %v1643
        %v1645 = vld [vmem:[%s37 + $0x1918] sm:$0xff]
        %1646 = vst [vmem:[%s38 + $0x1918] sm:$0xff] %v1645
        %v1647 = vld [vmem:[%s37 + $0x1920] sm:$0xff]
        %1648 = vst [vmem:[%s38 + $0x1920] sm:$0xff] %v1647
        %v1649 = vld [vmem:[%s37 + $0x1928] sm:$0xff]
        %1650 = vst [vmem:[%s38 + $0x1928] sm:$0xff] %v1649
        %v1651 = vld [vmem:[%s37 + $0x1930] sm:$0xff]
        %1652 = vst [vmem:[%s38 + $0x1930] sm:$0xff] %v1651
        %v1653 = vld [vmem:[%s37 + $0x1938] sm:$0xff]
        %1654 = vst [vmem:[%s38 + $0x1938] sm:$0xff] %v1653
        %v1655 = vld [vmem:[%s37 + $0x1940] sm:$0xff]
        %1656 = vst [vmem:[%s38 + $0x1940] sm:$0xff] %v1655
        %v1657 = vld [vmem:[%s37 + $0x1948] sm:$0xff]
        %1658 = vst [vmem:[%s38 + $0x1948] sm:$0xff] %v1657
        %v1659 = vld [vmem:[%s37 + $0x1950] sm:$0xff]
        %1660 = vst [vmem:[%s38 + $0x1950] sm:$0xff] %v1659
        %v1661 = vld [vmem:[%s37 + $0x1958] sm:$0xff]
        %1662 = vst [vmem:[%s38 + $0x1958] sm:$0xff] %v1661
        %v1663 = vld [vmem:[%s37 + $0x1960] sm:$0xff]
        %1664 = vst [vmem:[%s38 + $0x1960] sm:$0xff] %v1663
        %v1665 = vld [vmem:[%s37 + $0x1968] sm:$0xff]
        %1666 = vst [vmem:[%s38 + $0x1968] sm:$0xff] %v1665
        %v1667 = vld [vmem:[%s37 + $0x1970] sm:$0xff]
        %1668 = vst [vmem:[%s38 + $0x1970] sm:$0xff] %v1667
        %v1669 = vld [vmem:[%s37 + $0x1978] sm:$0xff]
        %1670 = vst [vmem:[%s38 + $0x1978] sm:$0xff] %v1669
        %v1671 = vld [vmem:[%s37 + $0x1980] sm:$0xff]
        %1672 = vst [vmem:[%s38 + $0x1980] sm:$0xff] %v1671
        %v1673 = vld [vmem:[%s37 + $0x1988] sm:$0xff]
        %1674 = vst [vmem:[%s38 + $0x1988] sm:$0xff] %v1673
        %v1675 = vld [vmem:[%s37 + $0x1990] sm:$0xff]
        %1676 = vst [vmem:[%s38 + $0x1990] sm:$0xff] %v1675
        %v1677 = vld [vmem:[%s37 + $0x1998] sm:$0xff]
        %1678 = vst [vmem:[%s38 + $0x1998] sm:$0xff] %v1677
        %v1679 = vld [vmem:[%s37 + $0x19a0] sm:$0xff]
        %1680 = vst [vmem:[%s38 + $0x19a0] sm:$0xff] %v1679
        %v1681 = vld [vmem:[%s37 + $0x19a8] sm:$0xff]
        %1682 = vst [vmem:[%s38 + $0x19a8] sm:$0xff] %v1681
        %v1683 = vld [vmem:[%s37 + $0x19b0] sm:$0xff]
        %1684 = vst [vmem:[%s38 + $0x19b0] sm:$0xff] %v1683
        %v1685 = vld [vmem:[%s37 + $0x19b8] sm:$0xff]
        %1686 = vst [vmem:[%s38 + $0x19b8] sm:$0xff] %v1685
        %v1687 = vld [vmem:[%s37 + $0x19c0] sm:$0xff]
        %1688 = vst [vmem:[%s38 + $0x19c0] sm:$0xff] %v1687
        %v1689 = vld [vmem:[%s37 + $0x19c8] sm:$0xff]
        %1690 = vst [vmem:[%s38 + $0x19c8] sm:$0xff] %v1689
        %v1691 = vld [vmem:[%s37 + $0x19d0] sm:$0xff]
        %1692 = vst [vmem:[%s38 + $0x19d0] sm:$0xff] %v1691
        %v1693 = vld [vmem:[%s37 + $0x19d8] sm:$0xff]
        %1694 = vst [vmem:[%s38 + $0x19d8] sm:$0xff] %v1693
        %v1695 = vld [vmem:[%s37 + $0x19e0] sm:$0xff]
        %1696 = vst [vmem:[%s38 + $0x19e0] sm:$0xff] %v1695
        %v1697 = vld [vmem:[%s37 + $0x19e8] sm:$0xff]
        %1698 = vst [vmem:[%s38 + $0x19e8] sm:$0xff] %v1697
        %v1699 = vld [vmem:[%s37 + $0x19f0] sm:$0xff]
        %1700 = vst [vmem:[%s38 + $0x19f0] sm:$0xff] %v1699
        %v1701 = vld [vmem:[%s37 + $0x19f8] sm:$0xff]
        %1702 = vst [vmem:[%s38 + $0x19f8] sm:$0xff] %v1701
        %v1703 = vld [vmem:[%s37 + $0x1a00] sm:$0xff]
        %1704 = vst [vmem:[%s38 + $0x1a00] sm:$0xff] %v1703
        %v1705 = vld [vmem:[%s37 + $0x1a08] sm:$0xff]
        %1706 = vst [vmem:[%s38 + $0x1a08] sm:$0xff] %v1705
        %v1707 = vld [vmem:[%s37 + $0x1a10] sm:$0xff]
        %1708 = vst [vmem:[%s38 + $0x1a10] sm:$0xff] %v1707
        %v1709 = vld [vmem:[%s37 + $0x1a18] sm:$0xff]
        %1710 = vst [vmem:[%s38 + $0x1a18] sm:$0xff] %v1709
        %v1711 = vld [vmem:[%s37 + $0x1a20] sm:$0xff]
        %1712 = vst [vmem:[%s38 + $0x1a20] sm:$0xff] %v1711
        %v1713 = vld [vmem:[%s37 + $0x1a28] sm:$0xff]
        %1714 = vst [vmem:[%s38 + $0x1a28] sm:$0xff] %v1713
        %v1715 = vld [vmem:[%s37 + $0x1a30] sm:$0xff]
        %1716 = vst [vmem:[%s38 + $0x1a30] sm:$0xff] %v1715
        %v1717 = vld [vmem:[%s37 + $0x1a38] sm:$0xff]
        %1718 = vst [vmem:[%s38 + $0x1a38] sm:$0xff] %v1717
        %v1719 = vld [vmem:[%s37 + $0x1a40] sm:$0xff]
        %1720 = vst [vmem:[%s38 + $0x1a40] sm:$0xff] %v1719
        %v1721 = vld [vmem:[%s37 + $0x1a48] sm:$0xff]
        %1722 = vst [vmem:[%s38 + $0x1a48] sm:$0xff] %v1721
        %v1723 = vld [vmem:[%s37 + $0x1a50] sm:$0xff]
        %1724 = vst [vmem:[%s38 + $0x1a50] sm:$0xff] %v1723
        %v1725 = vld [vmem:[%s37 + $0x1a58] sm:$0xff]
        %1726 = vst [vmem:[%s38 + $0x1a58] sm:$0xff] %v1725
        %v1727 = vld [vmem:[%s37 + $0x1a60] sm:$0xff]
        %1728 = vst [vmem:[%s38 + $0x1a60] sm:$0xff] %v1727
        %v1729 = vld [vmem:[%s37 + $0x1a68] sm:$0xff]
        %1730 = vst [vmem:[%s38 + $0x1a68] sm:$0xff] %v1729
        %v1731 = vld [vmem:[%s37 + $0x1a70] sm:$0xff]
        %1732 = vst [vmem:[%s38 + $0x1a70] sm:$0xff] %v1731
        %v1733 = vld [vmem:[%s37 + $0x1a78] sm:$0xff]
        %1734 = vst [vmem:[%s38 + $0x1a78] sm:$0xff] %v1733
        %v1735 = vld [vmem:[%s37 + $0x1a80] sm:$0xff]
        %1736 = vst [vmem:[%s38 + $0x1a80] sm:$0xff] %v1735
        %v1737 = vld [vmem:[%s37 + $0x1a88] sm:$0xff]
        %1738 = vst [vmem:[%s38 + $0x1a88] sm:$0xff] %v1737
        %v1739 = vld [vmem:[%s37 + $0x1a90] sm:$0xff]
        %1740 = vst [vmem:[%s38 + $0x1a90] sm:$0xff] %v1739
        %v1741 = vld [vmem:[%s37 + $0x1a98] sm:$0xff]
        %1742 = vst [vmem:[%s38 + $0x1a98] sm:$0xff] %v1741
        %v1743 = vld [vmem:[%s37 + $0x1aa0] sm:$0xff]
        %1744 = vst [vmem:[%s38 + $0x1aa0] sm:$0xff] %v1743
        %v1745 = vld [vmem:[%s37 + $0x1aa8] sm:$0xff]
        %1746 = vst [vmem:[%s38 + $0x1aa8] sm:$0xff] %v1745
        %v1747 = vld [vmem:[%s37 + $0x1ab0] sm:$0xff]
        %1748 = vst [vmem:[%s38 + $0x1ab0] sm:$0xff] %v1747
        %v1749 = vld [vmem:[%s37 + $0x1ab8] sm:$0xff]
        %1750 = vst [vmem:[%s38 + $0x1ab8] sm:$0xff] %v1749
        %v1751 = vld [vmem:[%s37 + $0x1ac0] sm:$0xff]
        %1752 = vst [vmem:[%s38 + $0x1ac0] sm:$0xff] %v1751
        %v1753 = vld [vmem:[%s37 + $0x1ac8] sm:$0xff]
        %1754 = vst [vmem:[%s38 + $0x1ac8] sm:$0xff] %v1753
        %v1755 = vld [vmem:[%s37 + $0x1ad0] sm:$0xff]
        %1756 = vst [vmem:[%s38 + $0x1ad0] sm:$0xff] %v1755
        %v1757 = vld [vmem:[%s37 + $0x1ad8] sm:$0xff]
        %1758 = vst [vmem:[%s38 + $0x1ad8] sm:$0xff] %v1757
        %v1759 = vld [vmem:[%s37 + $0x1ae0] sm:$0xff]
        %1760 = vst [vmem:[%s38 + $0x1ae0] sm:$0xff] %v1759
        %v1761 = vld [vmem:[%s37 + $0x1ae8] sm:$0xff]
        %1762 = vst [vmem:[%s38 + $0x1ae8] sm:$0xff] %v1761
        %v1763 = vld [vmem:[%s37 + $0x1af0] sm:$0xff]
        %1764 = vst [vmem:[%s38 + $0x1af0] sm:$0xff] %v1763
        %v1765 = vld [vmem:[%s37 + $0x1af8] sm:$0xff]
        %1766 = vst [vmem:[%s38 + $0x1af8] sm:$0xff] %v1765
        %v1767 = vld [vmem:[%s37 + $0x1b00] sm:$0xff]
        %1768 = vst [vmem:[%s38 + $0x1b00] sm:$0xff] %v1767
        %v1769 = vld [vmem:[%s37 + $0x1b08] sm:$0xff]
        %1770 = vst [vmem:[%s38 + $0x1b08] sm:$0xff] %v1769
        %v1771 = vld [vmem:[%s37 + $0x1b10] sm:$0xff]
        %1772 = vst [vmem:[%s38 + $0x1b10] sm:$0xff] %v1771
        %v1773 = vld [vmem:[%s37 + $0x1b18] sm:$0xff]
        %1774 = vst [vmem:[%s38 + $0x1b18] sm:$0xff] %v1773
        %v1775 = vld [vmem:[%s37 + $0x1b20] sm:$0xff]
        %1776 = vst [vmem:[%s38 + $0x1b20] sm:$0xff] %v1775
        %v1777 = vld [vmem:[%s37 + $0x1b28] sm:$0xff]
        %1778 = vst [vmem:[%s38 + $0x1b28] sm:$0xff] %v1777
        %v1779 = vld [vmem:[%s37 + $0x1b30] sm:$0xff]
        %1780 = vst [vmem:[%s38 + $0x1b30] sm:$0xff] %v1779
        %v1781 = vld [vmem:[%s37 + $0x1b38] sm:$0xff]
        %1782 = vst [vmem:[%s38 + $0x1b38] sm:$0xff] %v1781
        %v1783 = vld [vmem:[%s37 + $0x1b40] sm:$0xff]
        %1784 = vst [vmem:[%s38 + $0x1b40] sm:$0xff] %v1783
        %v1785 = vld [vmem:[%s37 + $0x1b48] sm:$0xff]
        %1786 = vst [vmem:[%s38 + $0x1b48] sm:$0xff] %v1785
        %v1787 = vld [vmem:[%s37 + $0x1b50] sm:$0xff]
        %1788 = vst [vmem:[%s38 + $0x1b50] sm:$0xff] %v1787
        %v1789 = vld [vmem:[%s37 + $0x1b58] sm:$0xff]
        %1790 = vst [vmem:[%s38 + $0x1b58] sm:$0xff] %v1789
        %v1791 = vld [vmem:[%s37 + $0x1b60] sm:$0xff]
        %1792 = vst [vmem:[%s38 + $0x1b60] sm:$0xff] %v1791
        %v1793 = vld [vmem:[%s37 + $0x1b68] sm:$0xff]
        %1794 = vst [vmem:[%s38 + $0x1b68] sm:$0xff] %v1793
        %v1795 = vld [vmem:[%s37 + $0x1b70] sm:$0xff]
        %1796 = vst [vmem:[%s38 + $0x1b70] sm:$0xff] %v1795
        %v1797 = vld [vmem:[%s37 + $0x1b78] sm:$0xff]
        %1798 = vst [vmem:[%s38 + $0x1b78] sm:$0xff] %v1797
        %v1799 = vld [vmem:[%s37 + $0x1b80] sm:$0xff]
        %1800 = vst [vmem:[%s38 + $0x1b80] sm:$0xff] %v1799
        %v1801 = vld [vmem:[%s37 + $0x1b88] sm:$0xff]
        %1802 = vst [vmem:[%s38 + $0x1b88] sm:$0xff] %v1801
        %v1803 = vld [vmem:[%s37 + $0x1b90] sm:$0xff]
        %1804 = vst [vmem:[%s38 + $0x1b90] sm:$0xff] %v1803
        %v1805 = vld [vmem:[%s37 + $0x1b98] sm:$0xff]
        %1806 = vst [vmem:[%s38 + $0x1b98] sm:$0xff] %v1805
        %v1807 = vld [vmem:[%s37 + $0x1ba0] sm:$0xff]
        %1808 = vst [vmem:[%s38 + $0x1ba0] sm:$0xff] %v1807
        %v1809 = vld [vmem:[%s37 + $0x1ba8] sm:$0xff]
        %1810 = vst [vmem:[%s38 + $0x1ba8] sm:$0xff] %v1809
        %v1811 = vld [vmem:[%s37 + $0x1bb0] sm:$0xff]
        %1812 = vst [vmem:[%s38 + $0x1bb0] sm:$0xff] %v1811
        %v1813 = vld [vmem:[%s37 + $0x1bb8] sm:$0xff]
        %1814 = vst [vmem:[%s38 + $0x1bb8] sm:$0xff] %v1813
        %v1815 = vld [vmem:[%s37 + $0x1bc0] sm:$0xff]
        %1816 = vst [vmem:[%s38 + $0x1bc0] sm:$0xff] %v1815
        %v1817 = vld [vmem:[%s37 + $0x1bc8] sm:$0xff]
        %1818 = vst [vmem:[%s38 + $0x1bc8] sm:$0xff] %v1817
        %v1819 = vld [vmem:[%s37 + $0x1bd0] sm:$0xff]
        %1820 = vst [vmem:[%s38 + $0x1bd0] sm:$0xff] %v1819
        %v1821 = vld [vmem:[%s37 + $0x1bd8] sm:$0xff]
        %1822 = vst [vmem:[%s38 + $0x1bd8] sm:$0xff] %v1821
        %v1823 = vld [vmem:[%s37 + $0x1be0] sm:$0xff]
        %1824 = vst [vmem:[%s38 + $0x1be0] sm:$0xff] %v1823
        %v1825 = vld [vmem:[%s37 + $0x1be8] sm:$0xff]
        %1826 = vst [vmem:[%s38 + $0x1be8] sm:$0xff] %v1825
        %v1827 = vld [vmem:[%s37 + $0x1bf0] sm:$0xff]
        %1828 = vst [vmem:[%s38 + $0x1bf0] sm:$0xff] %v1827
        %v1829 = vld [vmem:[%s37 + $0x1bf8] sm:$0xff]
        %1830 = vst [vmem:[%s38 + $0x1bf8] sm:$0xff] %v1829
        %v1831 = vld [vmem:[%s37 + $0x1c00] sm:$0xff]
        %1832 = vst [vmem:[%s38 + $0x1c00] sm:$0xff] %v1831
        %v1833 = vld [vmem:[%s37 + $0x1c08] sm:$0xff]
        %1834 = vst [vmem:[%s38 + $0x1c08] sm:$0xff] %v1833
        %v1835 = vld [vmem:[%s37 + $0x1c10] sm:$0xff]
        %1836 = vst [vmem:[%s38 + $0x1c10] sm:$0xff] %v1835
        %v1837 = vld [vmem:[%s37 + $0x1c18] sm:$0xff]
        %1838 = vst [vmem:[%s38 + $0x1c18] sm:$0xff] %v1837
        %v1839 = vld [vmem:[%s37 + $0x1c20] sm:$0xff]
        %1840 = vst [vmem:[%s38 + $0x1c20] sm:$0xff] %v1839
        %v1841 = vld [vmem:[%s37 + $0x1c28] sm:$0xff]
        %1842 = vst [vmem:[%s38 + $0x1c28] sm:$0xff] %v1841
        %v1843 = vld [vmem:[%s37 + $0x1c30] sm:$0xff]
        %1844 = vst [vmem:[%s38 + $0x1c30] sm:$0xff] %v1843
        %v1845 = vld [vmem:[%s37 + $0x1c38] sm:$0xff]
        %1846 = vst [vmem:[%s38 + $0x1c38] sm:$0xff] %v1845
        %v1847 = vld [vmem:[%s37 + $0x1c40] sm:$0xff]
        %1848 = vst [vmem:[%s38 + $0x1c40] sm:$0xff] %v1847
        %v1849 = vld [vmem:[%s37 + $0x1c48] sm:$0xff]
        %1850 = vst [vmem:[%s38 + $0x1c48] sm:$0xff] %v1849
        %v1851 = vld [vmem:[%s37 + $0x1c50] sm:$0xff]
        %1852 = vst [vmem:[%s38 + $0x1c50] sm:$0xff] %v1851
        %v1853 = vld [vmem:[%s37 + $0x1c58] sm:$0xff]
        %1854 = vst [vmem:[%s38 + $0x1c58] sm:$0xff] %v1853
        %v1855 = vld [vmem:[%s37 + $0x1c60] sm:$0xff]
        %1856 = vst [vmem:[%s38 + $0x1c60] sm:$0xff] %v1855
        %v1857 = vld [vmem:[%s37 + $0x1c68] sm:$0xff]
        %1858 = vst [vmem:[%s38 + $0x1c68] sm:$0xff] %v1857
        %v1859 = vld [vmem:[%s37 + $0x1c70] sm:$0xff]
        %1860 = vst [vmem:[%s38 + $0x1c70] sm:$0xff] %v1859
        %v1861 = vld [vmem:[%s37 + $0x1c78] sm:$0xff]
        %1862 = vst [vmem:[%s38 + $0x1c78] sm:$0xff] %v1861
        %v1863 = vld [vmem:[%s37 + $0x1c80] sm:$0xff]
        %1864 = vst [vmem:[%s38 + $0x1c80] sm:$0xff] %v1863
        %v1865 = vld [vmem:[%s37 + $0x1c88] sm:$0xff]
        %1866 = vst [vmem:[%s38 + $0x1c88] sm:$0xff] %v1865
        %v1867 = vld [vmem:[%s37 + $0x1c90] sm:$0xff]
        %1868 = vst [vmem:[%s38 + $0x1c90] sm:$0xff] %v1867
        %v1869 = vld [vmem:[%s37 + $0x1c98] sm:$0xff]
        %1870 = vst [vmem:[%s38 + $0x1c98] sm:$0xff] %v1869
        %v1871 = vld [vmem:[%s37 + $0x1ca0] sm:$0xff]
        %1872 = vst [vmem:[%s38 + $0x1ca0] sm:$0xff] %v1871
        %v1873 = vld [vmem:[%s37 + $0x1ca8] sm:$0xff]
        %1874 = vst [vmem:[%s38 + $0x1ca8] sm:$0xff] %v1873
        %v1875 = vld [vmem:[%s37 + $0x1cb0] sm:$0xff]
        %1876 = vst [vmem:[%s38 + $0x1cb0] sm:$0xff] %v1875
        %v1877 = vld [vmem:[%s37 + $0x1cb8] sm:$0xff]
        %1878 = vst [vmem:[%s38 + $0x1cb8] sm:$0xff] %v1877
        %v1879 = vld [vmem:[%s37 + $0x1cc0] sm:$0xff]
        %1880 = vst [vmem:[%s38 + $0x1cc0] sm:$0xff] %v1879
        %v1881 = vld [vmem:[%s37 + $0x1cc8] sm:$0xff]
        %1882 = vst [vmem:[%s38 + $0x1cc8] sm:$0xff] %v1881
        %v1883 = vld [vmem:[%s37 + $0x1cd0] sm:$0xff]
        %1884 = vst [vmem:[%s38 + $0x1cd0] sm:$0xff] %v1883
        %v1885 = vld [vmem:[%s37 + $0x1cd8] sm:$0xff]
        %1886 = vst [vmem:[%s38 + $0x1cd8] sm:$0xff] %v1885
        %v1887 = vld [vmem:[%s37 + $0x1ce0] sm:$0xff]
        %1888 = vst [vmem:[%s38 + $0x1ce0] sm:$0xff] %v1887
        %v1889 = vld [vmem:[%s37 + $0x1ce8] sm:$0xff]
        %1890 = vst [vmem:[%s38 + $0x1ce8] sm:$0xff] %v1889
        %v1891 = vld [vmem:[%s37 + $0x1cf0] sm:$0xff]
        %1892 = vst [vmem:[%s38 + $0x1cf0] sm:$0xff] %v1891
        %v1893 = vld [vmem:[%s37 + $0x1cf8] sm:$0xff]
        %1894 = vst [vmem:[%s38 + $0x1cf8] sm:$0xff] %v1893
        %v1895 = vld [vmem:[%s37 + $0x1d00] sm:$0xff]
        %1896 = vst [vmem:[%s38 + $0x1d00] sm:$0xff] %v1895
        %v1897 = vld [vmem:[%s37 + $0x1d08] sm:$0xff]
        %1898 = vst [vmem:[%s38 + $0x1d08] sm:$0xff] %v1897
        %v1899 = vld [vmem:[%s37 + $0x1d10] sm:$0xff]
        %1900 = vst [vmem:[%s38 + $0x1d10] sm:$0xff] %v1899
        %v1901 = vld [vmem:[%s37 + $0x1d18] sm:$0xff]
        %1902 = vst [vmem:[%s38 + $0x1d18] sm:$0xff] %v1901
        %v1903 = vld [vmem:[%s37 + $0x1d20] sm:$0xff]
        %1904 = vst [vmem:[%s38 + $0x1d20] sm:$0xff] %v1903
        %v1905 = vld [vmem:[%s37 + $0x1d28] sm:$0xff]
        %1906 = vst [vmem:[%s38 + $0x1d28] sm:$0xff] %v1905
        %v1907 = vld [vmem:[%s37 + $0x1d30] sm:$0xff]
        %1908 = vst [vmem:[%s38 + $0x1d30] sm:$0xff] %v1907
        %v1909 = vld [vmem:[%s37 + $0x1d38] sm:$0xff]
        %1910 = vst [vmem:[%s38 + $0x1d38] sm:$0xff] %v1909
        %v1911 = vld [vmem:[%s37 + $0x1d40] sm:$0xff]
        %1912 = vst [vmem:[%s38 + $0x1d40] sm:$0xff] %v1911
        %v1913 = vld [vmem:[%s37 + $0x1d48] sm:$0xff]
        %1914 = vst [vmem:[%s38 + $0x1d48] sm:$0xff] %v1913
        %v1915 = vld [vmem:[%s37 + $0x1d50] sm:$0xff]
        %1916 = vst [vmem:[%s38 + $0x1d50] sm:$0xff] %v1915
        %v1917 = vld [vmem:[%s37 + $0x1d58] sm:$0xff]
        %1918 = vst [vmem:[%s38 + $0x1d58] sm:$0xff] %v1917
        %v1919 = vld [vmem:[%s37 + $0x1d60] sm:$0xff]
        %1920 = vst [vmem:[%s38 + $0x1d60] sm:$0xff] %v1919
        %v1921 = vld [vmem:[%s37 + $0x1d68] sm:$0xff]
        %1922 = vst [vmem:[%s38 + $0x1d68] sm:$0xff] %v1921
        %v1923 = vld [vmem:[%s37 + $0x1d70] sm:$0xff]
        %1924 = vst [vmem:[%s38 + $0x1d70] sm:$0xff] %v1923
        %v1925 = vld [vmem:[%s37 + $0x1d78] sm:$0xff]
        %1926 = vst [vmem:[%s38 + $0x1d78] sm:$0xff] %v1925
        %v1927 = vld [vmem:[%s37 + $0x1d80] sm:$0xff]
        %1928 = vst [vmem:[%s38 + $0x1d80] sm:$0xff] %v1927
        %v1929 = vld [vmem:[%s37 + $0x1d88] sm:$0xff]
        %1930 = vst [vmem:[%s38 + $0x1d88] sm:$0xff] %v1929
        %v1931 = vld [vmem:[%s37 + $0x1d90] sm:$0xff]
        %1932 = vst [vmem:[%s38 + $0x1d90] sm:$0xff] %v1931
        %v1933 = vld [vmem:[%s37 + $0x1d98] sm:$0xff]
        %1934 = vst [vmem:[%s38 + $0x1d98] sm:$0xff] %v1933
        %v1935 = vld [vmem:[%s37 + $0x1da0] sm:$0xff]
        %1936 = vst [vmem:[%s38 + $0x1da0] sm:$0xff] %v1935
        %v1937 = vld [vmem:[%s37 + $0x1da8] sm:$0xff]
        %1938 = vst [vmem:[%s38 + $0x1da8] sm:$0xff] %v1937
        %v1939 = vld [vmem:[%s37 + $0x1db0] sm:$0xff]
        %1940 = vst [vmem:[%s38 + $0x1db0] sm:$0xff] %v1939
        %v1941 = vld [vmem:[%s37 + $0x1db8] sm:$0xff]
        %1942 = vst [vmem:[%s38 + $0x1db8] sm:$0xff] %v1941
        %v1943 = vld [vmem:[%s37 + $0x1dc0] sm:$0xff]
        %1944 = vst [vmem:[%s38 + $0x1dc0] sm:$0xff] %v1943
        %v1945 = vld [vmem:[%s37 + $0x1dc8] sm:$0xff]
        %1946 = vst [vmem:[%s38 + $0x1dc8] sm:$0xff] %v1945
        %v1947 = vld [vmem:[%s37 + $0x1dd0] sm:$0xff]
        %1948 = vst [vmem:[%s38 + $0x1dd0] sm:$0xff] %v1947
        %v1949 = vld [vmem:[%s37 + $0x1dd8] sm:$0xff]
        %1950 = vst [vmem:[%s38 + $0x1dd8] sm:$0xff] %v1949
        %v1951 = vld [vmem:[%s37 + $0x1de0] sm:$0xff]
        %1952 = vst [vmem:[%s38 + $0x1de0] sm:$0xff] %v1951
        %v1953 = vld [vmem:[%s37 + $0x1de8] sm:$0xff]
        %1954 = vst [vmem:[%s38 + $0x1de8] sm:$0xff] %v1953
        %v1955 = vld [vmem:[%s37 + $0x1df0] sm:$0xff]
        %1956 = vst [vmem:[%s38 + $0x1df0] sm:$0xff] %v1955
        %v1957 = vld [vmem:[%s37 + $0x1df8] sm:$0xff]
        %1958 = vst [vmem:[%s38 + $0x1df8] sm:$0xff] %v1957
        %v1959 = vld [vmem:[%s37 + $0x1e00] sm:$0xff]
        %1960 = vst [vmem:[%s38 + $0x1e00] sm:$0xff] %v1959
        %v1961 = vld [vmem:[%s37 + $0x1e08] sm:$0xff]
        %1962 = vst [vmem:[%s38 + $0x1e08] sm:$0xff] %v1961
        %v1963 = vld [vmem:[%s37 + $0x1e10] sm:$0xff]
        %1964 = vst [vmem:[%s38 + $0x1e10] sm:$0xff] %v1963
        %v1965 = vld [vmem:[%s37 + $0x1e18] sm:$0xff]
        %1966 = vst [vmem:[%s38 + $0x1e18] sm:$0xff] %v1965
        %v1967 = vld [vmem:[%s37 + $0x1e20] sm:$0xff]
        %1968 = vst [vmem:[%s38 + $0x1e20] sm:$0xff] %v1967
        %v1969 = vld [vmem:[%s37 + $0x1e28] sm:$0xff]
        %1970 = vst [vmem:[%s38 + $0x1e28] sm:$0xff] %v1969
        %v1971 = vld [vmem:[%s37 + $0x1e30] sm:$0xff]
        %1972 = vst [vmem:[%s38 + $0x1e30] sm:$0xff] %v1971
        %v1973 = vld [vmem:[%s37 + $0x1e38] sm:$0xff]
        %1974 = vst [vmem:[%s38 + $0x1e38] sm:$0xff] %v1973
        %v1975 = vld [vmem:[%s37 + $0x1e40] sm:$0xff]
        %1976 = vst [vmem:[%s38 + $0x1e40] sm:$0xff] %v1975
        %v1977 = vld [vmem:[%s37 + $0x1e48] sm:$0xff]
        %1978 = vst [vmem:[%s38 + $0x1e48] sm:$0xff] %v1977
        %v1979 = vld [vmem:[%s37 + $0x1e50] sm:$0xff]
        %1980 = vst [vmem:[%s38 + $0x1e50] sm:$0xff] %v1979
        %v1981 = vld [vmem:[%s37 + $0x1e58] sm:$0xff]
        %1982 = vst [vmem:[%s38 + $0x1e58] sm:$0xff] %v1981
        %v1983 = vld [vmem:[%s37 + $0x1e60] sm:$0xff]
        %1984 = vst [vmem:[%s38 + $0x1e60] sm:$0xff] %v1983
        %v1985 = vld [vmem:[%s37 + $0x1e68] sm:$0xff]
        %1986 = vst [vmem:[%s38 + $0x1e68] sm:$0xff] %v1985
        %v1987 = vld [vmem:[%s37 + $0x1e70] sm:$0xff]
        %1988 = vst [vmem:[%s38 + $0x1e70] sm:$0xff] %v1987
        %v1989 = vld [vmem:[%s37 + $0x1e78] sm:$0xff]
        %1990 = vst [vmem:[%s38 + $0x1e78] sm:$0xff] %v1989
        %v1991 = vld [vmem:[%s37 + $0x1e80] sm:$0xff]
        %1992 = vst [vmem:[%s38 + $0x1e80] sm:$0xff] %v1991
        %v1993 = vld [vmem:[%s37 + $0x1e88] sm:$0xff]
        %1994 = vst [vmem:[%s38 + $0x1e88] sm:$0xff] %v1993
        %v1995 = vld [vmem:[%s37 + $0x1e90] sm:$0xff]
        %1996 = vst [vmem:[%s38 + $0x1e90] sm:$0xff] %v1995
        %v1997 = vld [vmem:[%s37 + $0x1e98] sm:$0xff]
        %1998 = vst [vmem:[%s38 + $0x1e98] sm:$0xff] %v1997
        %v1999 = vld [vmem:[%s37 + $0x1ea0] sm:$0xff]
        %2000 = vst [vmem:[%s38 + $0x1ea0] sm:$0xff] %v1999
        %v2001 = vld [vmem:[%s37 + $0x1ea8] sm:$0xff]
        %2002 = vst [vmem:[%s38 + $0x1ea8] sm:$0xff] %v2001
        %v2003 = vld [vmem:[%s37 + $0x1eb0] sm:$0xff]
        %2004 = vst [vmem:[%s38 + $0x1eb0] sm:$0xff] %v2003
        %v2005 = vld [vmem:[%s37 + $0x1eb8] sm:$0xff]
        %2006 = vst [vmem:[%s38 + $0x1eb8] sm:$0xff] %v2005
        %v2007 = vld [vmem:[%s37 + $0x1ec0] sm:$0xff]
        %2008 = vst [vmem:[%s38 + $0x1ec0] sm:$0xff] %v2007
        %v2009 = vld [vmem:[%s37 + $0x1ec8] sm:$0xff]
        %2010 = vst [vmem:[%s38 + $0x1ec8] sm:$0xff] %v2009
        %v2011 = vld [vmem:[%s37 + $0x1ed0] sm:$0xff]
        %2012 = vst [vmem:[%s38 + $0x1ed0] sm:$0xff] %v2011
        %v2013 = vld [vmem:[%s37 + $0x1ed8] sm:$0xff]
        %2014 = vst [vmem:[%s38 + $0x1ed8] sm:$0xff] %v2013
        %v2015 = vld [vmem:[%s37 + $0x1ee0] sm:$0xff]
        %2016 = vst [vmem:[%s38 + $0x1ee0] sm:$0xff] %v2015
        %v2017 = vld [vmem:[%s37 + $0x1ee8] sm:$0xff]
        %2018 = vst [vmem:[%s38 + $0x1ee8] sm:$0xff] %v2017
        %v2019 = vld [vmem:[%s37 + $0x1ef0] sm:$0xff]
        %2020 = vst [vmem:[%s38 + $0x1ef0] sm:$0xff] %v2019
        %v2021 = vld [vmem:[%s37 + $0x1ef8] sm:$0xff]
        %2022 = vst [vmem:[%s38 + $0x1ef8] sm:$0xff] %v2021
        %v2023 = vld [vmem:[%s37 + $0x1f00] sm:$0xff]
        %2024 = vst [vmem:[%s38 + $0x1f00] sm:$0xff] %v2023
        %v2025 = vld [vmem:[%s37 + $0x1f08] sm:$0xff]
        %2026 = vst [vmem:[%s38 + $0x1f08] sm:$0xff] %v2025
        %v2027 = vld [vmem:[%s37 + $0x1f10] sm:$0xff]
        %2028 = vst [vmem:[%s38 + $0x1f10] sm:$0xff] %v2027
        %v2029 = vld [vmem:[%s37 + $0x1f18] sm:$0xff]
        %2030 = vst [vmem:[%s38 + $0x1f18] sm:$0xff] %v2029
        %v2031 = vld [vmem:[%s37 + $0x1f20] sm:$0xff]
        %2032 = vst [vmem:[%s38 + $0x1f20] sm:$0xff] %v2031
        %v2033 = vld [vmem:[%s37 + $0x1f28] sm:$0xff]
        %2034 = vst [vmem:[%s38 + $0x1f28] sm:$0xff] %v2033
        %v2035 = vld [vmem:[%s37 + $0x1f30] sm:$0xff]
        %2036 = vst [vmem:[%s38 + $0x1f30] sm:$0xff] %v2035
        %v2037 = vld [vmem:[%s37 + $0x1f38] sm:$0xff]
        %2038 = vst [vmem:[%s38 + $0x1f38] sm:$0xff] %v2037
        %v2039 = vld [vmem:[%s37 + $0x1f40] sm:$0xff]
        %2040 = vst [vmem:[%s38 + $0x1f40] sm:$0xff] %v2039
        %v2041 = vld [vmem:[%s37 + $0x1f48] sm:$0xff]
        %2042 = vst [vmem:[%s38 + $0x1f48] sm:$0xff] %v2041
        %v2043 = vld [vmem:[%s37 + $0x1f50] sm:$0xff]
        %2044 = vst [vmem:[%s38 + $0x1f50] sm:$0xff] %v2043
        %v2045 = vld [vmem:[%s37 + $0x1f58] sm:$0xff]
        %2046 = vst [vmem:[%s38 + $0x1f58] sm:$0xff] %v2045
        %v2047 = vld [vmem:[%s37 + $0x1f60] sm:$0xff]
        %2048 = vst [vmem:[%s38 + $0x1f60] sm:$0xff] %v2047
        %v2049 = vld [vmem:[%s37 + $0x1f68] sm:$0xff]
        %2050 = vst [vmem:[%s38 + $0x1f68] sm:$0xff] %v2049
        %v2051 = vld [vmem:[%s37 + $0x1f70] sm:$0xff]
        %2052 = vst [vmem:[%s38 + $0x1f70] sm:$0xff] %v2051
        %v2053 = vld [vmem:[%s37 + $0x1f78] sm:$0xff]
        %2054 = vst [vmem:[%s38 + $0x1f78] sm:$0xff] %v2053
        %v2055 = vld [vmem:[%s37 + $0x1f80] sm:$0xff]
        %2056 = vst [vmem:[%s38 + $0x1f80] sm:$0xff] %v2055
        %v2057 = vld [vmem:[%s37 + $0x1f88] sm:$0xff]
        %2058 = vst [vmem:[%s38 + $0x1f88] sm:$0xff] %v2057
        %v2059 = vld [vmem:[%s37 + $0x1f90] sm:$0xff]
        %2060 = vst [vmem:[%s38 + $0x1f90] sm:$0xff] %v2059
        %v2061 = vld [vmem:[%s37 + $0x1f98] sm:$0xff]
        %2062 = vst [vmem:[%s38 + $0x1f98] sm:$0xff] %v2061
        %v2063 = vld [vmem:[%s37 + $0x1fa0] sm:$0xff]
        %2064 = vst [vmem:[%s38 + $0x1fa0] sm:$0xff] %v2063
        %v2065 = vld [vmem:[%s37 + $0x1fa8] sm:$0xff]
        %2066 = vst [vmem:[%s38 + $0x1fa8] sm:$0xff] %v2065
        %v2067 = vld [vmem:[%s37 + $0x1fb0] sm:$0xff]
        %2068 = vst [vmem:[%s38 + $0x1fb0] sm:$0xff] %v2067
        %v2069 = vld [vmem:[%s37 + $0x1fb8] sm:$0xff]
        %2070 = vst [vmem:[%s38 + $0x1fb8] sm:$0xff] %v2069
        %v2071 = vld [vmem:[%s37 + $0x1fc0] sm:$0xff]
        %2072 = vst [vmem:[%s38 + $0x1fc0] sm:$0xff] %v2071
        %v2073 = vld [vmem:[%s37 + $0x1fc8] sm:$0xff]
        %2074 = vst [vmem:[%s38 + $0x1fc8] sm:$0xff] %v2073
        %v2075 = vld [vmem:[%s37 + $0x1fd0] sm:$0xff]
        %2076 = vst [vmem:[%s38 + $0x1fd0] sm:$0xff] %v2075
        %v2077 = vld [vmem:[%s37 + $0x1fd8] sm:$0xff]
        %2078 = vst [vmem:[%s38 + $0x1fd8] sm:$0xff] %v2077
        %v2079 = vld [vmem:[%s37 + $0x1fe0] sm:$0xff]
        %2080 = vst [vmem:[%s38 + $0x1fe0] sm:$0xff] %v2079
        %v2081 = vld [vmem:[%s37 + $0x1fe8] sm:$0xff]
        %2082 = vst [vmem:[%s38 + $0x1fe8] sm:$0xff] %v2081
        %v2083 = vld [vmem:[%s37 + $0x1ff0] sm:$0xff]
        %2084 = vst [vmem:[%s38 + $0x1ff0] sm:$0xff] %v2083
        %v2085 = vld [vmem:[%s37 + $0x1ff8] sm:$0xff]
        %2086 = vst [vmem:[%s38 + $0x1ff8] sm:$0xff] %v2085
        %v2087 = vld [vmem:[%s37 + $0x2000] sm:$0xff]
        %2088 = vst [vmem:[%s38 + $0x2000] sm:$0xff] %v2087
        %v2089 = vld [vmem:[%s37 + $0x2008] sm:$0xff]
        %2090 = vst [vmem:[%s38 + $0x2008] sm:$0xff] %v2089
        %v2091 = vld [vmem:[%s37 + $0x2010] sm:$0xff]
        %2092 = vst [vmem:[%s38 + $0x2010] sm:$0xff] %v2091
        %v2093 = vld [vmem:[%s37 + $0x2018] sm:$0xff]
        %2094 = vst [vmem:[%s38 + $0x2018] sm:$0xff] %v2093
        %v2095 = vld [vmem:[%s37 + $0x2020] sm:$0xff]
        %2096 = vst [vmem:[%s38 + $0x2020] sm:$0xff] %v2095
        %v2097 = vld [vmem:[%s37 + $0x2028] sm:$0xff]
        %2098 = vst [vmem:[%s38 + $0x2028] sm:$0xff] %v2097
        %v2099 = vld [vmem:[%s37 + $0x2030] sm:$0xff]
        %2100 = vst [vmem:[%s38 + $0x2030] sm:$0xff] %v2099
        %v2101 = vld [vmem:[%s37 + $0x2038] sm:$0xff]
        %2102 = vst [vmem:[%s38 + $0x2038] sm:$0xff] %v2101
        %v2103 = vld [vmem:[%s37 + $0x2040] sm:$0xff]
        %2104 = vst [vmem:[%s38 + $0x2040] sm:$0xff] %v2103
        %v2105 = vld [vmem:[%s37 + $0x2048] sm:$0xff]
        %2106 = vst [vmem:[%s38 + $0x2048] sm:$0xff] %v2105
        %v2107 = vld [vmem:[%s37 + $0x2050] sm:$0xff]
        %2108 = vst [vmem:[%s38 + $0x2050] sm:$0xff] %v2107
        %v2109 = vld [vmem:[%s37 + $0x2058] sm:$0xff]
        %2110 = vst [vmem:[%s38 + $0x2058] sm:$0xff] %v2109
        %v2111 = vld [vmem:[%s37 + $0x2060] sm:$0xff]
        %2112 = vst [vmem:[%s38 + $0x2060] sm:$0xff] %v2111
        %v2113 = vld [vmem:[%s37 + $0x2068] sm:$0xff]
        %2114 = vst [vmem:[%s38 + $0x2068] sm:$0xff] %v2113
        %v2115 = vld [vmem:[%s37 + $0x2070] sm:$0xff]
        %2116 = vst [vmem:[%s38 + $0x2070] sm:$0xff] %v2115
        %v2117 = vld [vmem:[%s37 + $0x2078] sm:$0xff]
        %2118 = vst [vmem:[%s38 + $0x2078] sm:$0xff] %v2117
        %v2119 = vld [vmem:[%s37 + $0x2080] sm:$0xff]
        %2120 = vst [vmem:[%s38 + $0x2080] sm:$0xff] %v2119
        %v2121 = vld [vmem:[%s37 + $0x2088] sm:$0xff]
        %2122 = vst [vmem:[%s38 + $0x2088] sm:$0xff] %v2121
        %v2123 = vld [vmem:[%s37 + $0x2090] sm:$0xff]
        %2124 = vst [vmem:[%s38 + $0x2090] sm:$0xff] %v2123
        %v2125 = vld [vmem:[%s37 + $0x2098] sm:$0xff]
        %2126 = vst [vmem:[%s38 + $0x2098] sm:$0xff] %v2125
        %v2127 = vld [vmem:[%s37 + $0x20a0] sm:$0xff]
        %2128 = vst [vmem:[%s38 + $0x20a0] sm:$0xff] %v2127
        %v2129 = vld [vmem:[%s37 + $0x20a8] sm:$0xff]
        %2130 = vst [vmem:[%s38 + $0x20a8] sm:$0xff] %v2129
        %v2131 = vld [vmem:[%s37 + $0x20b0] sm:$0xff]
        %2132 = vst [vmem:[%s38 + $0x20b0] sm:$0xff] %v2131
        %v2133 = vld [vmem:[%s37 + $0x20b8] sm:$0xff]
        %2134 = vst [vmem:[%s38 + $0x20b8] sm:$0xff] %v2133
        %v2135 = vld [vmem:[%s37 + $0x20c0] sm:$0xff]
        %2136 = vst [vmem:[%s38 + $0x20c0] sm:$0xff] %v2135
        %v2137 = vld [vmem:[%s37 + $0x20c8] sm:$0xff]
        %2138 = vst [vmem:[%s38 + $0x20c8] sm:$0xff] %v2137
        %v2139 = vld [vmem:[%s37 + $0x20d0] sm:$0xff]
        %2140 = vst [vmem:[%s38 + $0x20d0] sm:$0xff] %v2139
        %v2141 = vld [vmem:[%s37 + $0x20d8] sm:$0xff]
        %2142 = vst [vmem:[%s38 + $0x20d8] sm:$0xff] %v2141
        %v2143 = vld [vmem:[%s37 + $0x20e0] sm:$0xff]
        %2144 = vst [vmem:[%s38 + $0x20e0] sm:$0xff] %v2143
        %v2145 = vld [vmem:[%s37 + $0x20e8] sm:$0xff]
        %2146 = vst [vmem:[%s38 + $0x20e8] sm:$0xff] %v2145
        %v2147 = vld [vmem:[%s37 + $0x20f0] sm:$0xff]
        %2148 = vst [vmem:[%s38 + $0x20f0] sm:$0xff] %v2147
        %v2149 = vld [vmem:[%s37 + $0x20f8] sm:$0xff]
        %2150 = vst [vmem:[%s38 + $0x20f8] sm:$0xff] %v2149
        %v2151 = vld [vmem:[%s37 + $0x2100] sm:$0xff]
        %2152 = vst [vmem:[%s38 + $0x2100] sm:$0xff] %v2151
        %v2153 = vld [vmem:[%s37 + $0x2108] sm:$0xff]
        %2154 = vst [vmem:[%s38 + $0x2108] sm:$0xff] %v2153
        %v2155 = vld [vmem:[%s37 + $0x2110] sm:$0xff]
        %2156 = vst [vmem:[%s38 + $0x2110] sm:$0xff] %v2155
        %v2157 = vld [vmem:[%s37 + $0x2118] sm:$0xff]
        %2158 = vst [vmem:[%s38 + $0x2118] sm:$0xff] %v2157
        %v2159 = vld [vmem:[%s37 + $0x2120] sm:$0xff]
        %2160 = vst [vmem:[%s38 + $0x2120] sm:$0xff] %v2159
        %v2161 = vld [vmem:[%s37 + $0x2128] sm:$0xff]
        %2162 = vst [vmem:[%s38 + $0x2128] sm:$0xff] %v2161
        %v2163 = vld [vmem:[%s37 + $0x2130] sm:$0xff]
        %2164 = vst [vmem:[%s38 + $0x2130] sm:$0xff] %v2163
        %v2165 = vld [vmem:[%s37 + $0x2138] sm:$0xff]
        %2166 = vst [vmem:[%s38 + $0x2138] sm:$0xff] %v2165
        %v2167 = vld [vmem:[%s37 + $0x2140] sm:$0xff]
        %2168 = vst [vmem:[%s38 + $0x2140] sm:$0xff] %v2167
        %v2169 = vld [vmem:[%s37 + $0x2148] sm:$0xff]
        %2170 = vst [vmem:[%s38 + $0x2148] sm:$0xff] %v2169
        %v2171 = vld [vmem:[%s37 + $0x2150] sm:$0xff]
        %2172 = vst [vmem:[%s38 + $0x2150] sm:$0xff] %v2171
        %v2173 = vld [vmem:[%s37 + $0x2158] sm:$0xff]
        %2174 = vst [vmem:[%s38 + $0x2158] sm:$0xff] %v2173
        %v2175 = vld [vmem:[%s37 + $0x2160] sm:$0xff]
        %2176 = vst [vmem:[%s38 + $0x2160] sm:$0xff] %v2175
        %v2177 = vld [vmem:[%s37 + $0x2168] sm:$0xff]
        %2178 = vst [vmem:[%s38 + $0x2168] sm:$0xff] %v2177
        %v2179 = vld [vmem:[%s37 + $0x2170] sm:$0xff]
        %2180 = vst [vmem:[%s38 + $0x2170] sm:$0xff] %v2179
        %v2181 = vld [vmem:[%s37 + $0x2178] sm:$0xff]
        %2182 = vst [vmem:[%s38 + $0x2178] sm:$0xff] %v2181
        %v2183 = vld [vmem:[%s37 + $0x2180] sm:$0xff]
        %2184 = vst [vmem:[%s38 + $0x2180] sm:$0xff] %v2183
        %v2185 = vld [vmem:[%s37 + $0x2188] sm:$0xff]
        %2186 = vst [vmem:[%s38 + $0x2188] sm:$0xff] %v2185
        %v2187 = vld [vmem:[%s37 + $0x2190] sm:$0xff]
        %2188 = vst [vmem:[%s38 + $0x2190] sm:$0xff] %v2187
        %v2189 = vld [vmem:[%s37 + $0x2198] sm:$0xff]
        %2190 = vst [vmem:[%s38 + $0x2198] sm:$0xff] %v2189
        %v2191 = vld [vmem:[%s37 + $0x21a0] sm:$0xff]
        %2192 = vst [vmem:[%s38 + $0x21a0] sm:$0xff] %v2191
        %v2193 = vld [vmem:[%s37 + $0x21a8] sm:$0xff]
        %2194 = vst [vmem:[%s38 + $0x21a8] sm:$0xff] %v2193
        %v2195 = vld [vmem:[%s37 + $0x21b0] sm:$0xff]
        %2196 = vst [vmem:[%s38 + $0x21b0] sm:$0xff] %v2195
        %v2197 = vld [vmem:[%s37 + $0x21b8] sm:$0xff]
        %2198 = vst [vmem:[%s38 + $0x21b8] sm:$0xff] %v2197
        %v2199 = vld [vmem:[%s37 + $0x21c0] sm:$0xff]
        %2200 = vst [vmem:[%s38 + $0x21c0] sm:$0xff] %v2199
        %v2201 = vld [vmem:[%s37 + $0x21c8] sm:$0xff]
        %2202 = vst [vmem:[%s38 + $0x21c8] sm:$0xff] %v2201
        %v2203 = vld [vmem:[%s37 + $0x21d0] sm:$0xff]
        %2204 = vst [vmem:[%s38 + $0x21d0] sm:$0xff] %v2203
        %v2205 = vld [vmem:[%s37 + $0x21d8] sm:$0xff]
        %2206 = vst [vmem:[%s38 + $0x21d8] sm:$0xff] %v2205
        %v2207 = vld [vmem:[%s37 + $0x21e0] sm:$0xff]
        %2208 = vst [vmem:[%s38 + $0x21e0] sm:$0xff] %v2207
        %v2209 = vld [vmem:[%s37 + $0x21e8] sm:$0xff]
        %2210 = vst [vmem:[%s38 + $0x21e8] sm:$0xff] %v2209
        %v2211 = vld [vmem:[%s37 + $0x21f0] sm:$0xff]
        %2212 = vst [vmem:[%s38 + $0x21f0] sm:$0xff] %v2211
        %v2213 = vld [vmem:[%s37 + $0x21f8] sm:$0xff]
        %2214 = vst [vmem:[%s38 + $0x21f8] sm:$0xff] %v2213
        %v2215 = vld [vmem:[%s37 + $0x2200] sm:$0xff]
        %2216 = vst [vmem:[%s38 + $0x2200] sm:$0xff] %v2215
        %v2217 = vld [vmem:[%s37 + $0x2208] sm:$0xff]
        %2218 = vst [vmem:[%s38 + $0x2208] sm:$0xff] %v2217
        %v2219 = vld [vmem:[%s37 + $0x2210] sm:$0xff]
        %2220 = vst [vmem:[%s38 + $0x2210] sm:$0xff] %v2219
        %v2221 = vld [vmem:[%s37 + $0x2218] sm:$0xff]
        %2222 = vst [vmem:[%s38 + $0x2218] sm:$0xff] %v2221
        %v2223 = vld [vmem:[%s37 + $0x2220] sm:$0xff]
        %2224 = vst [vmem:[%s38 + $0x2220] sm:$0xff] %v2223
        %v2225 = vld [vmem:[%s37 + $0x2228] sm:$0xff]
        %2226 = vst [vmem:[%s38 + $0x2228] sm:$0xff] %v2225
        %v2227 = vld [vmem:[%s37 + $0x2230] sm:$0xff]
        %2228 = vst [vmem:[%s38 + $0x2230] sm:$0xff] %v2227
        %v2229 = vld [vmem:[%s37 + $0x2238] sm:$0xff]
        %2230 = vst [vmem:[%s38 + $0x2238] sm:$0xff] %v2229
        %v2231 = vld [vmem:[%s37 + $0x2240] sm:$0xff]
        %2232 = vst [vmem:[%s38 + $0x2240] sm:$0xff] %v2231
        %v2233 = vld [vmem:[%s37 + $0x2248] sm:$0xff]
        %2234 = vst [vmem:[%s38 + $0x2248] sm:$0xff] %v2233
        %v2235 = vld [vmem:[%s37 + $0x2250] sm:$0xff]
        %2236 = vst [vmem:[%s38 + $0x2250] sm:$0xff] %v2235
        %v2237 = vld [vmem:[%s37 + $0x2258] sm:$0xff]
        %2238 = vst [vmem:[%s38 + $0x2258] sm:$0xff] %v2237
        %v2239 = vld [vmem:[%s37 + $0x2260] sm:$0xff]
        %2240 = vst [vmem:[%s38 + $0x2260] sm:$0xff] %v2239
        %v2241 = vld [vmem:[%s37 + $0x2268] sm:$0xff]
        %2242 = vst [vmem:[%s38 + $0x2268] sm:$0xff] %v2241
        %v2243 = vld [vmem:[%s37 + $0x2270] sm:$0xff]
        %2244 = vst [vmem:[%s38 + $0x2270] sm:$0xff] %v2243
        %v2245 = vld [vmem:[%s37 + $0x2278] sm:$0xff]
        %2246 = vst [vmem:[%s38 + $0x2278] sm:$0xff] %v2245
        %v2247 = vld [vmem:[%s37 + $0x2280] sm:$0xff]
        %2248 = vst [vmem:[%s38 + $0x2280] sm:$0xff] %v2247
        %v2249 = vld [vmem:[%s37 + $0x2288] sm:$0xff]
        %2250 = vst [vmem:[%s38 + $0x2288] sm:$0xff] %v2249
        %v2251 = vld [vmem:[%s37 + $0x2290] sm:$0xff]
        %2252 = vst [vmem:[%s38 + $0x2290] sm:$0xff] %v2251
        %v2253 = vld [vmem:[%s37 + $0x2298] sm:$0xff]
        %2254 = vst [vmem:[%s38 + $0x2298] sm:$0xff] %v2253
        %v2255 = vld [vmem:[%s37 + $0x22a0] sm:$0xff]
        %2256 = vst [vmem:[%s38 + $0x22a0] sm:$0xff] %v2255
        %v2257 = vld [vmem:[%s37 + $0x22a8] sm:$0xff]
        %2258 = vst [vmem:[%s38 + $0x22a8] sm:$0xff] %v2257
        %v2259 = vld [vmem:[%s37 + $0x22b0] sm:$0xff]
        %2260 = vst [vmem:[%s38 + $0x22b0] sm:$0xff] %v2259
        %v2261 = vld [vmem:[%s37 + $0x22b8] sm:$0xff]
        %2262 = vst [vmem:[%s38 + $0x22b8] sm:$0xff] %v2261
        %v2263 = vld [vmem:[%s37 + $0x22c0] sm:$0xff]
        %2264 = vst [vmem:[%s38 + $0x22c0] sm:$0xff] %v2263
        %v2265 = vld [vmem:[%s37 + $0x22c8] sm:$0xff]
        %2266 = vst [vmem:[%s38 + $0x22c8] sm:$0xff] %v2265
        %v2267 = vld [vmem:[%s37 + $0x22d0] sm:$0xff]
        %2268 = vst [vmem:[%s38 + $0x22d0] sm:$0xff] %v2267
        %v2269 = vld [vmem:[%s37 + $0x22d8] sm:$0xff]
        %2270 = vst [vmem:[%s38 + $0x22d8] sm:$0xff] %v2269
        %v2271 = vld [vmem:[%s37 + $0x22e0] sm:$0xff]
        %2272 = vst [vmem:[%s38 + $0x22e0] sm:$0xff] %v2271
        %v2273 = vld [vmem:[%s37 + $0x22e8] sm:$0xff]
        %2274 = vst [vmem:[%s38 + $0x22e8] sm:$0xff] %v2273
        %v2275 = vld [vmem:[%s37 + $0x22f0] sm:$0xff]
        %2276 = vst [vmem:[%s38 + $0x22f0] sm:$0xff] %v2275
        %v2277 = vld [vmem:[%s37 + $0x22f8] sm:$0xff]
        %2278 = vst [vmem:[%s38 + $0x22f8] sm:$0xff] %v2277
        %v2279 = vld [vmem:[%s37 + $0x2300] sm:$0xff]
        %2280 = vst [vmem:[%s38 + $0x2300] sm:$0xff] %v2279
        %v2281 = vld [vmem:[%s37 + $0x2308] sm:$0xff]
        %2282 = vst [vmem:[%s38 + $0x2308] sm:$0xff] %v2281
        %v2283 = vld [vmem:[%s37 + $0x2310] sm:$0xff]
        %2284 = vst [vmem:[%s38 + $0x2310] sm:$0xff] %v2283
        %v2285 = vld [vmem:[%s37 + $0x2318] sm:$0xff]
        %2286 = vst [vmem:[%s38 + $0x2318] sm:$0xff] %v2285
        %v2287 = vld [vmem:[%s37 + $0x2320] sm:$0xff]
        %2288 = vst [vmem:[%s38 + $0x2320] sm:$0xff] %v2287
        %v2289 = vld [vmem:[%s37 + $0x2328] sm:$0xff]
        %2290 = vst [vmem:[%s38 + $0x2328] sm:$0xff] %v2289
        %v2291 = vld [vmem:[%s37 + $0x2330] sm:$0xff]
        %2292 = vst [vmem:[%s38 + $0x2330] sm:$0xff] %v2291
        %v2293 = vld [vmem:[%s37 + $0x2338] sm:$0xff]
        %2294 = vst [vmem:[%s38 + $0x2338] sm:$0xff] %v2293
        %v2295 = vld [vmem:[%s37 + $0x2340] sm:$0xff]
        %2296 = vst [vmem:[%s38 + $0x2340] sm:$0xff] %v2295
        %v2297 = vld [vmem:[%s37 + $0x2348] sm:$0xff]
        %2298 = vst [vmem:[%s38 + $0x2348] sm:$0xff] %v2297
        %v2299 = vld [vmem:[%s37 + $0x2350] sm:$0xff]
        %2300 = vst [vmem:[%s38 + $0x2350] sm:$0xff] %v2299
        %v2301 = vld [vmem:[%s37 + $0x2358] sm:$0xff]
        %2302 = vst [vmem:[%s38 + $0x2358] sm:$0xff] %v2301
        %v2303 = vld [vmem:[%s37 + $0x2360] sm:$0xff]
        %2304 = vst [vmem:[%s38 + $0x2360] sm:$0xff] %v2303
        %v2305 = vld [vmem:[%s37 + $0x2368] sm:$0xff]
        %2306 = vst [vmem:[%s38 + $0x2368] sm:$0xff] %v2305
        %v2307 = vld [vmem:[%s37 + $0x2370] sm:$0xff]
        %2308 = vst [vmem:[%s38 + $0x2370] sm:$0xff] %v2307
        %v2309 = vld [vmem:[%s37 + $0x2378] sm:$0xff]
        %2310 = vst [vmem:[%s38 + $0x2378] sm:$0xff] %v2309
        %v2311 = vld [vmem:[%s37 + $0x2380] sm:$0xff]
        %2312 = vst [vmem:[%s38 + $0x2380] sm:$0xff] %v2311
        %v2313 = vld [vmem:[%s37 + $0x2388] sm:$0xff]
        %2314 = vst [vmem:[%s38 + $0x2388] sm:$0xff] %v2313
        %v2315 = vld [vmem:[%s37 + $0x2390] sm:$0xff]
        %2316 = vst [vmem:[%s38 + $0x2390] sm:$0xff] %v2315
        %v2317 = vld [vmem:[%s37 + $0x2398] sm:$0xff]
        %2318 = vst [vmem:[%s38 + $0x2398] sm:$0xff] %v2317
        %v2319 = vld [vmem:[%s37 + $0x23a0] sm:$0xff]
        %2320 = vst [vmem:[%s38 + $0x23a0] sm:$0xff] %v2319
        %v2321 = vld [vmem:[%s37 + $0x23a8] sm:$0xff]
        %2322 = vst [vmem:[%s38 + $0x23a8] sm:$0xff] %v2321
        %v2323 = vld [vmem:[%s37 + $0x23b0] sm:$0xff]
        %2324 = vst [vmem:[%s38 + $0x23b0] sm:$0xff] %v2323
        %v2325 = vld [vmem:[%s37 + $0x23b8] sm:$0xff]
        %2326 = vst [vmem:[%s38 + $0x23b8] sm:$0xff] %v2325
        %v2327 = vld [vmem:[%s37 + $0x23c0] sm:$0xff]
        %2328 = vst [vmem:[%s38 + $0x23c0] sm:$0xff] %v2327
        %v2329 = vld [vmem:[%s37 + $0x23c8] sm:$0xff]
        %2330 = vst [vmem:[%s38 + $0x23c8] sm:$0xff] %v2329
        %v2331 = vld [vmem:[%s37 + $0x23d0] sm:$0xff]
        %2332 = vst [vmem:[%s38 + $0x23d0] sm:$0xff] %v2331
        %v2333 = vld [vmem:[%s37 + $0x23d8] sm:$0xff]
        %2334 = vst [vmem:[%s38 + $0x23d8] sm:$0xff] %v2333
        %v2335 = vld [vmem:[%s37 + $0x23e0] sm:$0xff]
        %2336 = vst [vmem:[%s38 + $0x23e0] sm:$0xff] %v2335
        %v2337 = vld [vmem:[%s37 + $0x23e8] sm:$0xff]
        %2338 = vst [vmem:[%s38 + $0x23e8] sm:$0xff] %v2337
        %v2339 = vld [vmem:[%s37 + $0x23f0] sm:$0xff]
        %2340 = vst [vmem:[%s38 + $0x23f0] sm:$0xff] %v2339
        %v2341 = vld [vmem:[%s37 + $0x23f8] sm:$0xff]
        %2342 = vst [vmem:[%s38 + $0x23f8] sm:$0xff] %v2341
        %v2343 = vld [vmem:[%s37 + $0x2400] sm:$0xff]
        %2344 = vst [vmem:[%s38 + $0x2400] sm:$0xff] %v2343
        %v2345 = vld [vmem:[%s37 + $0x2408] sm:$0xff]
        %2346 = vst [vmem:[%s38 + $0x2408] sm:$0xff] %v2345
        %v2347 = vld [vmem:[%s37 + $0x2410] sm:$0xff]
        %2348 = vst [vmem:[%s38 + $0x2410] sm:$0xff] %v2347
        %v2349 = vld [vmem:[%s37 + $0x2418] sm:$0xff]
        %2350 = vst [vmem:[%s38 + $0x2418] sm:$0xff] %v2349
        %v2351 = vld [vmem:[%s37 + $0x2420] sm:$0xff]
        %2352 = vst [vmem:[%s38 + $0x2420] sm:$0xff] %v2351
        %v2353 = vld [vmem:[%s37 + $0x2428] sm:$0xff]
        %2354 = vst [vmem:[%s38 + $0x2428] sm:$0xff] %v2353
        %v2355 = vld [vmem:[%s37 + $0x2430] sm:$0xff]
        %2356 = vst [vmem:[%s38 + $0x2430] sm:$0xff] %v2355
        %v2357 = vld [vmem:[%s37 + $0x2438] sm:$0xff]
        %2358 = vst [vmem:[%s38 + $0x2438] sm:$0xff] %v2357
        %v2359 = vld [vmem:[%s37 + $0x2440] sm:$0xff]
        %2360 = vst [vmem:[%s38 + $0x2440] sm:$0xff] %v2359
        %v2361 = vld [vmem:[%s37 + $0x2448] sm:$0xff]
        %2362 = vst [vmem:[%s38 + $0x2448] sm:$0xff] %v2361
        %v2363 = vld [vmem:[%s37 + $0x2450] sm:$0xff]
        %2364 = vst [vmem:[%s38 + $0x2450] sm:$0xff] %v2363
        %v2365 = vld [vmem:[%s37 + $0x2458] sm:$0xff]
        %2366 = vst [vmem:[%s38 + $0x2458] sm:$0xff] %v2365
        %v2367 = vld [vmem:[%s37 + $0x2460] sm:$0xff]
        %2368 = vst [vmem:[%s38 + $0x2460] sm:$0xff] %v2367
        %v2369 = vld [vmem:[%s37 + $0x2468] sm:$0xff]
        %2370 = vst [vmem:[%s38 + $0x2468] sm:$0xff] %v2369
        %v2371 = vld [vmem:[%s37 + $0x2470] sm:$0xff]
        %2372 = vst [vmem:[%s38 + $0x2470] sm:$0xff] %v2371
        %v2373 = vld [vmem:[%s37 + $0x2478] sm:$0xff]
        %2374 = vst [vmem:[%s38 + $0x2478] sm:$0xff] %v2373
        %v2375 = vld [vmem:[%s37 + $0x2480] sm:$0xff]
        %2376 = vst [vmem:[%s38 + $0x2480] sm:$0xff] %v2375
        %v2377 = vld [vmem:[%s37 + $0x2488] sm:$0xff]
        %2378 = vst [vmem:[%s38 + $0x2488] sm:$0xff] %v2377
        %v2379 = vld [vmem:[%s37 + $0x2490] sm:$0xff]
        %2380 = vst [vmem:[%s38 + $0x2490] sm:$0xff] %v2379
        %v2381 = vld [vmem:[%s37 + $0x2498] sm:$0xff]
        %2382 = vst [vmem:[%s38 + $0x2498] sm:$0xff] %v2381
        %v2383 = vld [vmem:[%s37 + $0x24a0] sm:$0xff]
        %2384 = vst [vmem:[%s38 + $0x24a0] sm:$0xff] %v2383
        %v2385 = vld [vmem:[%s37 + $0x24a8] sm:$0xff]
        %2386 = vst [vmem:[%s38 + $0x24a8] sm:$0xff] %v2385
        %v2387 = vld [vmem:[%s37 + $0x24b0] sm:$0xff]
        %2388 = vst [vmem:[%s38 + $0x24b0] sm:$0xff] %v2387
        %v2389 = vld [vmem:[%s37 + $0x24b8] sm:$0xff]
        %2390 = vst [vmem:[%s38 + $0x24b8] sm:$0xff] %v2389
        %v2391 = vld [vmem:[%s37 + $0x24c0] sm:$0xff]
        %2392 = vst [vmem:[%s38 + $0x24c0] sm:$0xff] %v2391
        %v2393 = vld [vmem:[%s37 + $0x24c8] sm:$0xff]
        %2394 = vst [vmem:[%s38 + $0x24c8] sm:$0xff] %v2393
        %v2395 = vld [vmem:[%s37 + $0x24d0] sm:$0xff]
        %2396 = vst [vmem:[%s38 + $0x24d0] sm:$0xff] %v2395
        %v2397 = vld [vmem:[%s37 + $0x24d8] sm:$0xff]
        %2398 = vst [vmem:[%s38 + $0x24d8] sm:$0xff] %v2397
        %v2399 = vld [vmem:[%s37 + $0x24e0] sm:$0xff]
        %2400 = vst [vmem:[%s38 + $0x24e0] sm:$0xff] %v2399
        %v2401 = vld [vmem:[%s37 + $0x24e8] sm:$0xff]
        %2402 = vst [vmem:[%s38 + $0x24e8] sm:$0xff] %v2401
        %v2403 = vld [vmem:[%s37 + $0x24f0] sm:$0xff]
        %2404 = vst [vmem:[%s38 + $0x24f0] sm:$0xff] %v2403
        %v2405 = vld [vmem:[%s37 + $0x24f8] sm:$0xff]
        %2406 = vst [vmem:[%s38 + $0x24f8] sm:$0xff] %v2405
        %v2407 = vld [vmem:[%s37 + $0x2500] sm:$0xff]
        %2408 = vst [vmem:[%s38 + $0x2500] sm:$0xff] %v2407
        %v2409 = vld [vmem:[%s37 + $0x2508] sm:$0xff]
        %2410 = vst [vmem:[%s38 + $0x2508] sm:$0xff] %v2409
        %v2411 = vld [vmem:[%s37 + $0x2510] sm:$0xff]
        %2412 = vst [vmem:[%s38 + $0x2510] sm:$0xff] %v2411
        %v2413 = vld [vmem:[%s37 + $0x2518] sm:$0xff]
        %2414 = vst [vmem:[%s38 + $0x2518] sm:$0xff] %v2413
        %v2415 = vld [vmem:[%s37 + $0x2520] sm:$0xff]
        %2416 = vst [vmem:[%s38 + $0x2520] sm:$0xff] %v2415
        %v2417 = vld [vmem:[%s37 + $0x2528] sm:$0xff]
        %2418 = vst [vmem:[%s38 + $0x2528] sm:$0xff] %v2417
        %v2419 = vld [vmem:[%s37 + $0x2530] sm:$0xff]
        %2420 = vst [vmem:[%s38 + $0x2530] sm:$0xff] %v2419
        %v2421 = vld [vmem:[%s37 + $0x2538] sm:$0xff]
        %2422 = vst [vmem:[%s38 + $0x2538] sm:$0xff] %v2421
        %v2423 = vld [vmem:[%s37 + $0x2540] sm:$0xff]
        %2424 = vst [vmem:[%s38 + $0x2540] sm:$0xff] %v2423
        %v2425 = vld [vmem:[%s37 + $0x2548] sm:$0xff]
        %2426 = vst [vmem:[%s38 + $0x2548] sm:$0xff] %v2425
        %v2427 = vld [vmem:[%s37 + $0x2550] sm:$0xff]
        %2428 = vst [vmem:[%s38 + $0x2550] sm:$0xff] %v2427
        %v2429 = vld [vmem:[%s37 + $0x2558] sm:$0xff]
        %2430 = vst [vmem:[%s38 + $0x2558] sm:$0xff] %v2429
        %v2431 = vld [vmem:[%s37 + $0x2560] sm:$0xff]
        %2432 = vst [vmem:[%s38 + $0x2560] sm:$0xff] %v2431
        %v2433 = vld [vmem:[%s37 + $0x2568] sm:$0xff]
        %2434 = vst [vmem:[%s38 + $0x2568] sm:$0xff] %v2433
        %v2435 = vld [vmem:[%s37 + $0x2570] sm:$0xff]
        %2436 = vst [vmem:[%s38 + $0x2570] sm:$0xff] %v2435
        %v2437 = vld [vmem:[%s37 + $0x2578] sm:$0xff]
        %2438 = vst [vmem:[%s38 + $0x2578] sm:$0xff] %v2437
        %v2439 = vld [vmem:[%s37 + $0x2580] sm:$0xff]
        %2440 = vst [vmem:[%s38 + $0x2580] sm:$0xff] %v2439
        %v2441 = vld [vmem:[%s37 + $0x2588] sm:$0xff]
        %2442 = vst [vmem:[%s38 + $0x2588] sm:$0xff] %v2441
        %v2443 = vld [vmem:[%s37 + $0x2590] sm:$0xff]
        %2444 = vst [vmem:[%s38 + $0x2590] sm:$0xff] %v2443
        %v2445 = vld [vmem:[%s37 + $0x2598] sm:$0xff]
        %2446 = vst [vmem:[%s38 + $0x2598] sm:$0xff] %v2445
        %v2447 = vld [vmem:[%s37 + $0x25a0] sm:$0xff]
        %2448 = vst [vmem:[%s38 + $0x25a0] sm:$0xff] %v2447
        %v2449 = vld [vmem:[%s37 + $0x25a8] sm:$0xff]
        %2450 = vst [vmem:[%s38 + $0x25a8] sm:$0xff] %v2449
        %v2451 = vld [vmem:[%s37 + $0x25b0] sm:$0xff]
        %2452 = vst [vmem:[%s38 + $0x25b0] sm:$0xff] %v2451
        %v2453 = vld [vmem:[%s37 + $0x25b8] sm:$0xff]
        %2454 = vst [vmem:[%s38 + $0x25b8] sm:$0xff] %v2453
        %v2455 = vld [vmem:[%s37 + $0x25c0] sm:$0xff]
        %2456 = vst [vmem:[%s38 + $0x25c0] sm:$0xff] %v2455
        %v2457 = vld [vmem:[%s37 + $0x25c8] sm:$0xff]
        %2458 = vst [vmem:[%s38 + $0x25c8] sm:$0xff] %v2457
        %v2459 = vld [vmem:[%s37 + $0x25d0] sm:$0xff]
        %2460 = vst [vmem:[%s38 + $0x25d0] sm:$0xff] %v2459
        %v2461 = vld [vmem:[%s37 + $0x25d8] sm:$0xff]
        %2462 = vst [vmem:[%s38 + $0x25d8] sm:$0xff] %v2461
        %v2463 = vld [vmem:[%s37 + $0x25e0] sm:$0xff]
        %2464 = vst [vmem:[%s38 + $0x25e0] sm:$0xff] %v2463
        %v2465 = vld [vmem:[%s37 + $0x25e8] sm:$0xff]
        %2466 = vst [vmem:[%s38 + $0x25e8] sm:$0xff] %v2465
        %v2467 = vld [vmem:[%s37 + $0x25f0] sm:$0xff]
        %2468 = vst [vmem:[%s38 + $0x25f0] sm:$0xff] %v2467
        %v2469 = vld [vmem:[%s37 + $0x25f8] sm:$0xff]
        %2470 = vst [vmem:[%s38 + $0x25f8] sm:$0xff] %v2469
        %v2471 = vld [vmem:[%s37 + $0x2600] sm:$0xff]
        %2472 = vst [vmem:[%s38 + $0x2600] sm:$0xff] %v2471
        %v2473 = vld [vmem:[%s37 + $0x2608] sm:$0xff]
        %2474 = vst [vmem:[%s38 + $0x2608] sm:$0xff] %v2473
        %v2475 = vld [vmem:[%s37 + $0x2610] sm:$0xff]
        %2476 = vst [vmem:[%s38 + $0x2610] sm:$0xff] %v2475
        %v2477 = vld [vmem:[%s37 + $0x2618] sm:$0xff]
        %2478 = vst [vmem:[%s38 + $0x2618] sm:$0xff] %v2477
        %v2479 = vld [vmem:[%s37 + $0x2620] sm:$0xff]
        %2480 = vst [vmem:[%s38 + $0x2620] sm:$0xff] %v2479
        %v2481 = vld [vmem:[%s37 + $0x2628] sm:$0xff]
        %2482 = vst [vmem:[%s38 + $0x2628] sm:$0xff] %v2481
        %v2483 = vld [vmem:[%s37 + $0x2630] sm:$0xff]
        %2484 = vst [vmem:[%s38 + $0x2630] sm:$0xff] %v2483
        %v2485 = vld [vmem:[%s37 + $0x2638] sm:$0xff]
        %2486 = vst [vmem:[%s38 + $0x2638] sm:$0xff] %v2485
        %v2487 = vld [vmem:[%s37 + $0x2640] sm:$0xff]
        %2488 = vst [vmem:[%s38 + $0x2640] sm:$0xff] %v2487
        %v2489 = vld [vmem:[%s37 + $0x2648] sm:$0xff]
        %2490 = vst [vmem:[%s38 + $0x2648] sm:$0xff] %v2489
        %v2491 = vld [vmem:[%s37 + $0x2650] sm:$0xff]
        %2492 = vst [vmem:[%s38 + $0x2650] sm:$0xff] %v2491
        %v2493 = vld [vmem:[%s37 + $0x2658] sm:$0xff]
        %2494 = vst [vmem:[%s38 + $0x2658] sm:$0xff] %v2493
        %v2495 = vld [vmem:[%s37 + $0x2660] sm:$0xff]
        %2496 = vst [vmem:[%s38 + $0x2660] sm:$0xff] %v2495
        %v2497 = vld [vmem:[%s37 + $0x2668] sm:$0xff]
        %2498 = vst [vmem:[%s38 + $0x2668] sm:$0xff] %v2497
        %v2499 = vld [vmem:[%s37 + $0x2670] sm:$0xff]
        %2500 = vst [vmem:[%s38 + $0x2670] sm:$0xff] %v2499
        %v2501 = vld [vmem:[%s37 + $0x2678] sm:$0xff]
        %2502 = vst [vmem:[%s38 + $0x2678] sm:$0xff] %v2501
        %v2503 = vld [vmem:[%s37 + $0x2680] sm:$0xff]
        %2504 = vst [vmem:[%s38 + $0x2680] sm:$0xff] %v2503
        %v2505 = vld [vmem:[%s37 + $0x2688] sm:$0xff]
        %2506 = vst [vmem:[%s38 + $0x2688] sm:$0xff] %v2505
        %v2507 = vld [vmem:[%s37 + $0x2690] sm:$0xff]
        %2508 = vst [vmem:[%s38 + $0x2690] sm:$0xff] %v2507
        %v2509 = vld [vmem:[%s37 + $0x2698] sm:$0xff]
        %2510 = vst [vmem:[%s38 + $0x2698] sm:$0xff] %v2509
        %v2511 = vld [vmem:[%s37 + $0x26a0] sm:$0xff]
        %2512 = vst [vmem:[%s38 + $0x26a0] sm:$0xff] %v2511
        %v2513 = vld [vmem:[%s37 + $0x26a8] sm:$0xff]
        %2514 = vst [vmem:[%s38 + $0x26a8] sm:$0xff] %v2513
        %v2515 = vld [vmem:[%s37 + $0x26b0] sm:$0xff]
        %2516 = vst [vmem:[%s38 + $0x26b0] sm:$0xff] %v2515
        %v2517 = vld [vmem:[%s37 + $0x26b8] sm:$0xff]
        %2518 = vst [vmem:[%s38 + $0x26b8] sm:$0xff] %v2517
        %v2519 = vld [vmem:[%s37 + $0x26c0] sm:$0xff]
        %2520 = vst [vmem:[%s38 + $0x26c0] sm:$0xff] %v2519
        %v2521 = vld [vmem:[%s37 + $0x26c8] sm:$0xff]
        %2522 = vst [vmem:[%s38 + $0x26c8] sm:$0xff] %v2521
        %v2523 = vld [vmem:[%s37 + $0x26d0] sm:$0xff]
        %2524 = vst [vmem:[%s38 + $0x26d0] sm:$0xff] %v2523
        %v2525 = vld [vmem:[%s37 + $0x26d8] sm:$0xff]
        %2526 = vst [vmem:[%s38 + $0x26d8] sm:$0xff] %v2525
        %v2527 = vld [vmem:[%s37 + $0x26e0] sm:$0xff]
        %2528 = vst [vmem:[%s38 + $0x26e0] sm:$0xff] %v2527
        %v2529 = vld [vmem:[%s37 + $0x26e8] sm:$0xff]
        %2530 = vst [vmem:[%s38 + $0x26e8] sm:$0xff] %v2529
        %v2531 = vld [vmem:[%s37 + $0x26f0] sm:$0xff]
        %2532 = vst [vmem:[%s38 + $0x26f0] sm:$0xff] %v2531
        %v2533 = vld [vmem:[%s37 + $0x26f8] sm:$0xff]
        %2534 = vst [vmem:[%s38 + $0x26f8] sm:$0xff] %v2533
        %v2535 = vld [vmem:[%s37 + $0x2700] sm:$0xff]
        %2536 = vst [vmem:[%s38 + $0x2700] sm:$0xff] %v2535
        %v2537 = vld [vmem:[%s37 + $0x2708] sm:$0xff]
        %2538 = vst [vmem:[%s38 + $0x2708] sm:$0xff] %v2537
        %v2539 = vld [vmem:[%s37 + $0x2710] sm:$0xff]
        %2540 = vst [vmem:[%s38 + $0x2710] sm:$0xff] %v2539
        %v2541 = vld [vmem:[%s37 + $0x2718] sm:$0xff]
        %2542 = vst [vmem:[%s38 + $0x2718] sm:$0xff] %v2541
        %v2543 = vld [vmem:[%s37 + $0x2720] sm:$0xff]
        %2544 = vst [vmem:[%s38 + $0x2720] sm:$0xff] %v2543
        %v2545 = vld [vmem:[%s37 + $0x2728] sm:$0xff]
        %2546 = vst [vmem:[%s38 + $0x2728] sm:$0xff] %v2545
        %v2547 = vld [vmem:[%s37 + $0x2730] sm:$0xff]
        %2548 = vst [vmem:[%s38 + $0x2730] sm:$0xff] %v2547
        %v2549 = vld [vmem:[%s37 + $0x2738] sm:$0xff]
        %2550 = vst [vmem:[%s38 + $0x2738] sm:$0xff] %v2549
        %v2551 = vld [vmem:[%s37 + $0x2740] sm:$0xff]
        %2552 = vst [vmem:[%s38 + $0x2740] sm:$0xff] %v2551
        %v2553 = vld [vmem:[%s37 + $0x2748] sm:$0xff]
        %2554 = vst [vmem:[%s38 + $0x2748] sm:$0xff] %v2553
        %v2555 = vld [vmem:[%s37 + $0x2750] sm:$0xff]
        %2556 = vst [vmem:[%s38 + $0x2750] sm:$0xff] %v2555
        %v2557 = vld [vmem:[%s37 + $0x2758] sm:$0xff]
        %2558 = vst [vmem:[%s38 + $0x2758] sm:$0xff] %v2557
        %v2559 = vld [vmem:[%s37 + $0x2760] sm:$0xff]
        %2560 = vst [vmem:[%s38 + $0x2760] sm:$0xff] %v2559
        %v2561 = vld [vmem:[%s37 + $0x2768] sm:$0xff]
        %2562 = vst [vmem:[%s38 + $0x2768] sm:$0xff] %v2561
        %v2563 = vld [vmem:[%s37 + $0x2770] sm:$0xff]
        %2564 = vst [vmem:[%s38 + $0x2770] sm:$0xff] %v2563
        %v2565 = vld [vmem:[%s37 + $0x2778] sm:$0xff]
        %2566 = vst [vmem:[%s38 + $0x2778] sm:$0xff] %v2565
        %v2567 = vld [vmem:[%s37 + $0x2780] sm:$0xff]
        %2568 = vst [vmem:[%s38 + $0x2780] sm:$0xff] %v2567
        %v2569 = vld [vmem:[%s37 + $0x2788] sm:$0xff]
        %2570 = vst [vmem:[%s38 + $0x2788] sm:$0xff] %v2569
        %v2571 = vld [vmem:[%s37 + $0x2790] sm:$0xff]
        %2572 = vst [vmem:[%s38 + $0x2790] sm:$0xff] %v2571
        %v2573 = vld [vmem:[%s37 + $0x2798] sm:$0xff]
        %2574 = vst [vmem:[%s38 + $0x2798] sm:$0xff] %v2573
        %v2575 = vld [vmem:[%s37 + $0x27a0] sm:$0xff]
        %2576 = vst [vmem:[%s38 + $0x27a0] sm:$0xff] %v2575
        %v2577 = vld [vmem:[%s37 + $0x27a8] sm:$0xff]
        %2578 = vst [vmem:[%s38 + $0x27a8] sm:$0xff] %v2577
        %v2579 = vld [vmem:[%s37 + $0x27b0] sm:$0xff]
        %2580 = vst [vmem:[%s38 + $0x27b0] sm:$0xff] %v2579
        %v2581 = vld [vmem:[%s37 + $0x27b8] sm:$0xff]
        %2582 = vst [vmem:[%s38 + $0x27b8] sm:$0xff] %v2581
        %v2583 = vld [vmem:[%s37 + $0x27c0] sm:$0xff]
        %2584 = vst [vmem:[%s38 + $0x27c0] sm:$0xff] %v2583
        %v2585 = vld [vmem:[%s37 + $0x27c8] sm:$0xff]
        %2586 = vst [vmem:[%s38 + $0x27c8] sm:$0xff] %v2585
        %v2587 = vld [vmem:[%s37 + $0x27d0] sm:$0xff]
        %2588 = vst [vmem:[%s38 + $0x27d0] sm:$0xff] %v2587
        %v2589 = vld [vmem:[%s37 + $0x27d8] sm:$0xff]
        %2590 = vst [vmem:[%s38 + $0x27d8] sm:$0xff] %v2589
        %v2591 = vld [vmem:[%s37 + $0x27e0] sm:$0xff]
        %2592 = vst [vmem:[%s38 + $0x27e0] sm:$0xff] %v2591
        %v2593 = vld [vmem:[%s37 + $0x27e8] sm:$0xff]
        %2594 = vst [vmem:[%s38 + $0x27e8] sm:$0xff] %v2593
        %v2595 = vld [vmem:[%s37 + $0x27f0] sm:$0xff]
        %2596 = vst [vmem:[%s38 + $0x27f0] sm:$0xff] %v2595
        %v2597 = vld [vmem:[%s37 + $0x27f8] sm:$0xff]
        %2598 = vst [vmem:[%s38 + $0x27f8] sm:$0xff] %v2597
        %v2599 = vld [vmem:[%s37 + $0x2800] sm:$0xff]
        %2600 = vst [vmem:[%s38 + $0x2800] sm:$0xff] %v2599
        %v2601 = vld [vmem:[%s37 + $0x2808] sm:$0xff]
        %2602 = vst [vmem:[%s38 + $0x2808] sm:$0xff] %v2601
        %v2603 = vld [vmem:[%s37 + $0x2810] sm:$0xff]
        %2604 = vst [vmem:[%s38 + $0x2810] sm:$0xff] %v2603
        %v2605 = vld [vmem:[%s37 + $0x2818] sm:$0xff]
        %2606 = vst [vmem:[%s38 + $0x2818] sm:$0xff] %v2605
        %v2607 = vld [vmem:[%s37 + $0x2820] sm:$0xff]
        %2608 = vst [vmem:[%s38 + $0x2820] sm:$0xff] %v2607
        %v2609 = vld [vmem:[%s37 + $0x2828] sm:$0xff]
        %2610 = vst [vmem:[%s38 + $0x2828] sm:$0xff] %v2609
        %v2611 = vld [vmem:[%s37 + $0x2830] sm:$0xff]
        %2612 = vst [vmem:[%s38 + $0x2830] sm:$0xff] %v2611
        %v2613 = vld [vmem:[%s37 + $0x2838] sm:$0xff]
        %2614 = vst [vmem:[%s38 + $0x2838] sm:$0xff] %v2613
        %v2615 = vld [vmem:[%s37 + $0x2840] sm:$0xff]
        %2616 = vst [vmem:[%s38 + $0x2840] sm:$0xff] %v2615
        %v2617 = vld [vmem:[%s37 + $0x2848] sm:$0xff]
        %2618 = vst [vmem:[%s38 + $0x2848] sm:$0xff] %v2617
        %v2619 = vld [vmem:[%s37 + $0x2850] sm:$0xff]
        %2620 = vst [vmem:[%s38 + $0x2850] sm:$0xff] %v2619
        %v2621 = vld [vmem:[%s37 + $0x2858] sm:$0xff]
        %2622 = vst [vmem:[%s38 + $0x2858] sm:$0xff] %v2621
        %v2623 = vld [vmem:[%s37 + $0x2860] sm:$0xff]
        %2624 = vst [vmem:[%s38 + $0x2860] sm:$0xff] %v2623
        %v2625 = vld [vmem:[%s37 + $0x2868] sm:$0xff]
        %2626 = vst [vmem:[%s38 + $0x2868] sm:$0xff] %v2625
        %v2627 = vld [vmem:[%s37 + $0x2870] sm:$0xff]
        %2628 = vst [vmem:[%s38 + $0x2870] sm:$0xff] %v2627
        %v2629 = vld [vmem:[%s37 + $0x2878] sm:$0xff]
        %2630 = vst [vmem:[%s38 + $0x2878] sm:$0xff] %v2629
        %v2631 = vld [vmem:[%s37 + $0x2880] sm:$0xff]
        %2632 = vst [vmem:[%s38 + $0x2880] sm:$0xff] %v2631
        %v2633 = vld [vmem:[%s37 + $0x2888] sm:$0xff]
        %2634 = vst [vmem:[%s38 + $0x2888] sm:$0xff] %v2633
        %v2635 = vld [vmem:[%s37 + $0x2890] sm:$0xff]
        %2636 = vst [vmem:[%s38 + $0x2890] sm:$0xff] %v2635
        %v2637 = vld [vmem:[%s37 + $0x2898] sm:$0xff]
        %2638 = vst [vmem:[%s38 + $0x2898] sm:$0xff] %v2637
        %v2639 = vld [vmem:[%s37 + $0x28a0] sm:$0xff]
        %2640 = vst [vmem:[%s38 + $0x28a0] sm:$0xff] %v2639
        %v2641 = vld [vmem:[%s37 + $0x28a8] sm:$0xff]
        %2642 = vst [vmem:[%s38 + $0x28a8] sm:$0xff] %v2641
        %v2643 = vld [vmem:[%s37 + $0x28b0] sm:$0xff]
        %2644 = vst [vmem:[%s38 + $0x28b0] sm:$0xff] %v2643
        %v2645 = vld [vmem:[%s37 + $0x28b8] sm:$0xff]
        %2646 = vst [vmem:[%s38 + $0x28b8] sm:$0xff] %v2645
        %v2647 = vld [vmem:[%s37 + $0x28c0] sm:$0xff]
        %2648 = vst [vmem:[%s38 + $0x28c0] sm:$0xff] %v2647
        %v2649 = vld [vmem:[%s37 + $0x28c8] sm:$0xff]
        %2650 = vst [vmem:[%s38 + $0x28c8] sm:$0xff] %v2649
        %v2651 = vld [vmem:[%s37 + $0x28d0] sm:$0xff]
        %2652 = vst [vmem:[%s38 + $0x28d0] sm:$0xff] %v2651
        %v2653 = vld [vmem:[%s37 + $0x28d8] sm:$0xff]
        %2654 = vst [vmem:[%s38 + $0x28d8] sm:$0xff] %v2653
        %v2655 = vld [vmem:[%s37 + $0x28e0] sm:$0xff]
        %2656 = vst [vmem:[%s38 + $0x28e0] sm:$0xff] %v2655
        %v2657 = vld [vmem:[%s37 + $0x28e8] sm:$0xff]
        %2658 = vst [vmem:[%s38 + $0x28e8] sm:$0xff] %v2657
        %v2659 = vld [vmem:[%s37 + $0x28f0] sm:$0xff]
        %2660 = vst [vmem:[%s38 + $0x28f0] sm:$0xff] %v2659
        %v2661 = vld [vmem:[%s37 + $0x28f8] sm:$0xff]
        %2662 = vst [vmem:[%s38 + $0x28f8] sm:$0xff] %v2661
        %v2663 = vld [vmem:[%s37 + $0x2900] sm:$0xff]
        %2664 = vst [vmem:[%s38 + $0x2900] sm:$0xff] %v2663
        %v2665 = vld [vmem:[%s37 + $0x2908] sm:$0xff]
        %2666 = vst [vmem:[%s38 + $0x2908] sm:$0xff] %v2665
        %v2667 = vld [vmem:[%s37 + $0x2910] sm:$0xff]
        %2668 = vst [vmem:[%s38 + $0x2910] sm:$0xff] %v2667
        %v2669 = vld [vmem:[%s37 + $0x2918] sm:$0xff]
        %2670 = vst [vmem:[%s38 + $0x2918] sm:$0xff] %v2669
        %v2671 = vld [vmem:[%s37 + $0x2920] sm:$0xff]
        %2672 = vst [vmem:[%s38 + $0x2920] sm:$0xff] %v2671
        %v2673 = vld [vmem:[%s37 + $0x2928] sm:$0xff]
        %2674 = vst [vmem:[%s38 + $0x2928] sm:$0xff] %v2673
        %v2675 = vld [vmem:[%s37 + $0x2930] sm:$0xff]
        %2676 = vst [vmem:[%s38 + $0x2930] sm:$0xff] %v2675
        %v2677 = vld [vmem:[%s37 + $0x2938] sm:$0xff]
        %2678 = vst [vmem:[%s38 + $0x2938] sm:$0xff] %v2677
        %v2679 = vld [vmem:[%s37 + $0x2940] sm:$0xff]
        %2680 = vst [vmem:[%s38 + $0x2940] sm:$0xff] %v2679
        %v2681 = vld [vmem:[%s37 + $0x2948] sm:$0xff]
        %2682 = vst [vmem:[%s38 + $0x2948] sm:$0xff] %v2681
        %v2683 = vld [vmem:[%s37 + $0x2950] sm:$0xff]
        %2684 = vst [vmem:[%s38 + $0x2950] sm:$0xff] %v2683
        %v2685 = vld [vmem:[%s37 + $0x2958] sm:$0xff]
        %2686 = vst [vmem:[%s38 + $0x2958] sm:$0xff] %v2685
        %v2687 = vld [vmem:[%s37 + $0x2960] sm:$0xff]
        %2688 = vst [vmem:[%s38 + $0x2960] sm:$0xff] %v2687
        %v2689 = vld [vmem:[%s37 + $0x2968] sm:$0xff]
        %2690 = vst [vmem:[%s38 + $0x2968] sm:$0xff] %v2689
        %v2691 = vld [vmem:[%s37 + $0x2970] sm:$0xff]
        %2692 = vst [vmem:[%s38 + $0x2970] sm:$0xff] %v2691
        %v2693 = vld [vmem:[%s37 + $0x2978] sm:$0xff]
        %2694 = vst [vmem:[%s38 + $0x2978] sm:$0xff] %v2693
        %v2695 = vld [vmem:[%s37 + $0x2980] sm:$0xff]
        %2696 = vst [vmem:[%s38 + $0x2980] sm:$0xff] %v2695
        %v2697 = vld [vmem:[%s37 + $0x2988] sm:$0xff]
        %2698 = vst [vmem:[%s38 + $0x2988] sm:$0xff] %v2697
        %v2699 = vld [vmem:[%s37 + $0x2990] sm:$0xff]
        %2700 = vst [vmem:[%s38 + $0x2990] sm:$0xff] %v2699
        %v2701 = vld [vmem:[%s37 + $0x2998] sm:$0xff]
        %2702 = vst [vmem:[%s38 + $0x2998] sm:$0xff] %v2701
        %v2703 = vld [vmem:[%s37 + $0x29a0] sm:$0xff]
        %2704 = vst [vmem:[%s38 + $0x29a0] sm:$0xff] %v2703
        %v2705 = vld [vmem:[%s37 + $0x29a8] sm:$0xff]
        %2706 = vst [vmem:[%s38 + $0x29a8] sm:$0xff] %v2705
        %v2707 = vld [vmem:[%s37 + $0x29b0] sm:$0xff]
        %2708 = vst [vmem:[%s38 + $0x29b0] sm:$0xff] %v2707
        %v2709 = vld [vmem:[%s37 + $0x29b8] sm:$0xff]
        %2710 = vst [vmem:[%s38 + $0x29b8] sm:$0xff] %v2709
        %v2711 = vld [vmem:[%s37 + $0x29c0] sm:$0xff]
        %2712 = vst [vmem:[%s38 + $0x29c0] sm:$0xff] %v2711
        %v2713 = vld [vmem:[%s37 + $0x29c8] sm:$0xff]
        %2714 = vst [vmem:[%s38 + $0x29c8] sm:$0xff] %v2713
        %v2715 = vld [vmem:[%s37 + $0x29d0] sm:$0xff]
        %2716 = vst [vmem:[%s38 + $0x29d0] sm:$0xff] %v2715
        %v2717 = vld [vmem:[%s37 + $0x29d8] sm:$0xff]
        %2718 = vst [vmem:[%s38 + $0x29d8] sm:$0xff] %v2717
        %v2719 = vld [vmem:[%s37 + $0x29e0] sm:$0xff]
        %2720 = vst [vmem:[%s38 + $0x29e0] sm:$0xff] %v2719
        %v2721 = vld [vmem:[%s37 + $0x29e8] sm:$0xff]
        %2722 = vst [vmem:[%s38 + $0x29e8] sm:$0xff] %v2721
        %v2723 = vld [vmem:[%s37 + $0x29f0] sm:$0xff]
        %2724 = vst [vmem:[%s38 + $0x29f0] sm:$0xff] %v2723
        %v2725 = vld [vmem:[%s37 + $0x29f8] sm:$0xff]
        %2726 = vst [vmem:[%s38 + $0x29f8] sm:$0xff] %v2725
        %v2727 = vld [vmem:[%s37 + $0x2a00] sm:$0xff]
        %2728 = vst [vmem:[%s38 + $0x2a00] sm:$0xff] %v2727
        %v2729 = vld [vmem:[%s37 + $0x2a08] sm:$0xff]
        %2730 = vst [vmem:[%s38 + $0x2a08] sm:$0xff] %v2729
        %v2731 = vld [vmem:[%s37 + $0x2a10] sm:$0xff]
        %2732 = vst [vmem:[%s38 + $0x2a10] sm:$0xff] %v2731
        %v2733 = vld [vmem:[%s37 + $0x2a18] sm:$0xff]
        %2734 = vst [vmem:[%s38 + $0x2a18] sm:$0xff] %v2733
        %v2735 = vld [vmem:[%s37 + $0x2a20] sm:$0xff]
        %2736 = vst [vmem:[%s38 + $0x2a20] sm:$0xff] %v2735
        %v2737 = vld [vmem:[%s37 + $0x2a28] sm:$0xff]
        %2738 = vst [vmem:[%s38 + $0x2a28] sm:$0xff] %v2737
        %v2739 = vld [vmem:[%s37 + $0x2a30] sm:$0xff]
        %2740 = vst [vmem:[%s38 + $0x2a30] sm:$0xff] %v2739
        %v2741 = vld [vmem:[%s37 + $0x2a38] sm:$0xff]
        %2742 = vst [vmem:[%s38 + $0x2a38] sm:$0xff] %v2741
        %v2743 = vld [vmem:[%s37 + $0x2a40] sm:$0xff]
        %2744 = vst [vmem:[%s38 + $0x2a40] sm:$0xff] %v2743
        %v2745 = vld [vmem:[%s37 + $0x2a48] sm:$0xff]
        %2746 = vst [vmem:[%s38 + $0x2a48] sm:$0xff] %v2745
        %v2747 = vld [vmem:[%s37 + $0x2a50] sm:$0xff]
        %2748 = vst [vmem:[%s38 + $0x2a50] sm:$0xff] %v2747
        %v2749 = vld [vmem:[%s37 + $0x2a58] sm:$0xff]
        %2750 = vst [vmem:[%s38 + $0x2a58] sm:$0xff] %v2749
        %v2751 = vld [vmem:[%s37 + $0x2a60] sm:$0xff]
        %2752 = vst [vmem:[%s38 + $0x2a60] sm:$0xff] %v2751
        %v2753 = vld [vmem:[%s37 + $0x2a68] sm:$0xff]
        %2754 = vst [vmem:[%s38 + $0x2a68] sm:$0xff] %v2753
        %v2755 = vld [vmem:[%s37 + $0x2a70] sm:$0xff]
        %2756 = vst [vmem:[%s38 + $0x2a70] sm:$0xff] %v2755
        %v2757 = vld [vmem:[%s37 + $0x2a78] sm:$0xff]
        %2758 = vst [vmem:[%s38 + $0x2a78] sm:$0xff] %v2757
        %v2759 = vld [vmem:[%s37 + $0x2a80] sm:$0xff]
        %2760 = vst [vmem:[%s38 + $0x2a80] sm:$0xff] %v2759
        %v2761 = vld [vmem:[%s37 + $0x2a88] sm:$0xff]
        %2762 = vst [vmem:[%s38 + $0x2a88] sm:$0xff] %v2761
        %v2763 = vld [vmem:[%s37 + $0x2a90] sm:$0xff]
        %2764 = vst [vmem:[%s38 + $0x2a90] sm:$0xff] %v2763
        %v2765 = vld [vmem:[%s37 + $0x2a98] sm:$0xff]
        %2766 = vst [vmem:[%s38 + $0x2a98] sm:$0xff] %v2765
        %v2767 = vld [vmem:[%s37 + $0x2aa0] sm:$0xff]
        %2768 = vst [vmem:[%s38 + $0x2aa0] sm:$0xff] %v2767
        %v2769 = vld [vmem:[%s37 + $0x2aa8] sm:$0xff]
        %2770 = vst [vmem:[%s38 + $0x2aa8] sm:$0xff] %v2769
        %v2771 = vld [vmem:[%s37 + $0x2ab0] sm:$0xff]
        %2772 = vst [vmem:[%s38 + $0x2ab0] sm:$0xff] %v2771
        %v2773 = vld [vmem:[%s37 + $0x2ab8] sm:$0xff]
        %2774 = vst [vmem:[%s38 + $0x2ab8] sm:$0xff] %v2773
        %v2775 = vld [vmem:[%s37 + $0x2ac0] sm:$0xff]
        %2776 = vst [vmem:[%s38 + $0x2ac0] sm:$0xff] %v2775
        %v2777 = vld [vmem:[%s37 + $0x2ac8] sm:$0xff]
        %2778 = vst [vmem:[%s38 + $0x2ac8] sm:$0xff] %v2777
        %v2779 = vld [vmem:[%s37 + $0x2ad0] sm:$0xff]
        %2780 = vst [vmem:[%s38 + $0x2ad0] sm:$0xff] %v2779
        %v2781 = vld [vmem:[%s37 + $0x2ad8] sm:$0xff]
        %2782 = vst [vmem:[%s38 + $0x2ad8] sm:$0xff] %v2781
        %v2783 = vld [vmem:[%s37 + $0x2ae0] sm:$0xff]
        %2784 = vst [vmem:[%s38 + $0x2ae0] sm:$0xff] %v2783
        %v2785 = vld [vmem:[%s37 + $0x2ae8] sm:$0xff]
        %2786 = vst [vmem:[%s38 + $0x2ae8] sm:$0xff] %v2785
        %v2787 = vld [vmem:[%s37 + $0x2af0] sm:$0xff]
        %2788 = vst [vmem:[%s38 + $0x2af0] sm:$0xff] %v2787
        %v2789 = vld [vmem:[%s37 + $0x2af8] sm:$0xff]
        %2790 = vst [vmem:[%s38 + $0x2af8] sm:$0xff] %v2789
        %v2791 = vld [vmem:[%s37 + $0x2b00] sm:$0xff]
        %2792 = vst [vmem:[%s38 + $0x2b00] sm:$0xff] %v2791
        %v2793 = vld [vmem:[%s37 + $0x2b08] sm:$0xff]
        %2794 = vst [vmem:[%s38 + $0x2b08] sm:$0xff] %v2793
        %v2795 = vld [vmem:[%s37 + $0x2b10] sm:$0xff]
        %2796 = vst [vmem:[%s38 + $0x2b10] sm:$0xff] %v2795
        %v2797 = vld [vmem:[%s37 + $0x2b18] sm:$0xff]
        %2798 = vst [vmem:[%s38 + $0x2b18] sm:$0xff] %v2797
        %v2799 = vld [vmem:[%s37 + $0x2b20] sm:$0xff]
        %2800 = vst [vmem:[%s38 + $0x2b20] sm:$0xff] %v2799
        %v2801 = vld [vmem:[%s37 + $0x2b28] sm:$0xff]
        %2802 = vst [vmem:[%s38 + $0x2b28] sm:$0xff] %v2801
        %v2803 = vld [vmem:[%s37 + $0x2b30] sm:$0xff]
        %2804 = vst [vmem:[%s38 + $0x2b30] sm:$0xff] %v2803
        %v2805 = vld [vmem:[%s37 + $0x2b38] sm:$0xff]
        %2806 = vst [vmem:[%s38 + $0x2b38] sm:$0xff] %v2805
        %v2807 = vld [vmem:[%s37 + $0x2b40] sm:$0xff]
        %2808 = vst [vmem:[%s38 + $0x2b40] sm:$0xff] %v2807
        %v2809 = vld [vmem:[%s37 + $0x2b48] sm:$0xff]
        %2810 = vst [vmem:[%s38 + $0x2b48] sm:$0xff] %v2809
        %v2811 = vld [vmem:[%s37 + $0x2b50] sm:$0xff]
        %2812 = vst [vmem:[%s38 + $0x2b50] sm:$0xff] %v2811
        %v2813 = vld [vmem:[%s37 + $0x2b58] sm:$0xff]
        %2814 = vst [vmem:[%s38 + $0x2b58] sm:$0xff] %v2813
        %v2815 = vld [vmem:[%s37 + $0x2b60] sm:$0xff]
        %2816 = vst [vmem:[%s38 + $0x2b60] sm:$0xff] %v2815
        %v2817 = vld [vmem:[%s37 + $0x2b68] sm:$0xff]
        %2818 = vst [vmem:[%s38 + $0x2b68] sm:$0xff] %v2817
        %v2819 = vld [vmem:[%s37 + $0x2b70] sm:$0xff]
        %2820 = vst [vmem:[%s38 + $0x2b70] sm:$0xff] %v2819
        %v2821 = vld [vmem:[%s37 + $0x2b78] sm:$0xff]
        %2822 = vst [vmem:[%s38 + $0x2b78] sm:$0xff] %v2821
        %v2823 = vld [vmem:[%s37 + $0x2b80] sm:$0xff]
        %2824 = vst [vmem:[%s38 + $0x2b80] sm:$0xff] %v2823
        %v2825 = vld [vmem:[%s37 + $0x2b88] sm:$0xff]
        %2826 = vst [vmem:[%s38 + $0x2b88] sm:$0xff] %v2825
        %v2827 = vld [vmem:[%s37 + $0x2b90] sm:$0xff]
        %2828 = vst [vmem:[%s38 + $0x2b90] sm:$0xff] %v2827
        %v2829 = vld [vmem:[%s37 + $0x2b98] sm:$0xff]
        %2830 = vst [vmem:[%s38 + $0x2b98] sm:$0xff] %v2829
        %v2831 = vld [vmem:[%s37 + $0x2ba0] sm:$0xff]
        %2832 = vst [vmem:[%s38 + $0x2ba0] sm:$0xff] %v2831
        %v2833 = vld [vmem:[%s37 + $0x2ba8] sm:$0xff]
        %2834 = vst [vmem:[%s38 + $0x2ba8] sm:$0xff] %v2833
        %v2835 = vld [vmem:[%s37 + $0x2bb0] sm:$0xff]
        %2836 = vst [vmem:[%s38 + $0x2bb0] sm:$0xff] %v2835
        %v2837 = vld [vmem:[%s37 + $0x2bb8] sm:$0xff]
        %2838 = vst [vmem:[%s38 + $0x2bb8] sm:$0xff] %v2837
        %v2839 = vld [vmem:[%s37 + $0x2bc0] sm:$0xff]
        %2840 = vst [vmem:[%s38 + $0x2bc0] sm:$0xff] %v2839
        %v2841 = vld [vmem:[%s37 + $0x2bc8] sm:$0xff]
        %2842 = vst [vmem:[%s38 + $0x2bc8] sm:$0xff] %v2841
        %v2843 = vld [vmem:[%s37 + $0x2bd0] sm:$0xff]
        %2844 = vst [vmem:[%s38 + $0x2bd0] sm:$0xff] %v2843
        %v2845 = vld [vmem:[%s37 + $0x2bd8] sm:$0xff]
        %2846 = vst [vmem:[%s38 + $0x2bd8] sm:$0xff] %v2845
        %v2847 = vld [vmem:[%s37 + $0x2be0] sm:$0xff]
        %2848 = vst [vmem:[%s38 + $0x2be0] sm:$0xff] %v2847
        %v2849 = vld [vmem:[%s37 + $0x2be8] sm:$0xff]
        %2850 = vst [vmem:[%s38 + $0x2be8] sm:$0xff] %v2849
        %v2851 = vld [vmem:[%s37 + $0x2bf0] sm:$0xff]
        %2852 = vst [vmem:[%s38 + $0x2bf0] sm:$0xff] %v2851
        %v2853 = vld [vmem:[%s37 + $0x2bf8] sm:$0xff]
        %2854 = vst [vmem:[%s38 + $0x2bf8] sm:$0xff] %v2853
        %v2855 = vld [vmem:[%s37 + $0x2c00] sm:$0xff]
        %2856 = vst [vmem:[%s38 + $0x2c00] sm:$0xff] %v2855
        %v2857 = vld [vmem:[%s37 + $0x2c08] sm:$0xff]
        %2858 = vst [vmem:[%s38 + $0x2c08] sm:$0xff] %v2857
        %v2859 = vld [vmem:[%s37 + $0x2c10] sm:$0xff]
        %2860 = vst [vmem:[%s38 + $0x2c10] sm:$0xff] %v2859
        %v2861 = vld [vmem:[%s37 + $0x2c18] sm:$0xff]
        %2862 = vst [vmem:[%s38 + $0x2c18] sm:$0xff] %v2861
        %v2863 = vld [vmem:[%s37 + $0x2c20] sm:$0xff]
        %2864 = vst [vmem:[%s38 + $0x2c20] sm:$0xff] %v2863
        %v2865 = vld [vmem:[%s37 + $0x2c28] sm:$0xff]
        %2866 = vst [vmem:[%s38 + $0x2c28] sm:$0xff] %v2865
        %v2867 = vld [vmem:[%s37 + $0x2c30] sm:$0xff]
        %2868 = vst [vmem:[%s38 + $0x2c30] sm:$0xff] %v2867
        %v2869 = vld [vmem:[%s37 + $0x2c38] sm:$0xff]
        %2870 = vst [vmem:[%s38 + $0x2c38] sm:$0xff] %v2869
        %v2871 = vld [vmem:[%s37 + $0x2c40] sm:$0xff]
        %2872 = vst [vmem:[%s38 + $0x2c40] sm:$0xff] %v2871
        %v2873 = vld [vmem:[%s37 + $0x2c48] sm:$0xff]
        %2874 = vst [vmem:[%s38 + $0x2c48] sm:$0xff] %v2873
        %v2875 = vld [vmem:[%s37 + $0x2c50] sm:$0xff]
        %2876 = vst [vmem:[%s38 + $0x2c50] sm:$0xff] %v2875
        %v2877 = vld [vmem:[%s37 + $0x2c58] sm:$0xff]
        %2878 = vst [vmem:[%s38 + $0x2c58] sm:$0xff] %v2877
        %v2879 = vld [vmem:[%s37 + $0x2c60] sm:$0xff]
        %2880 = vst [vmem:[%s38 + $0x2c60] sm:$0xff] %v2879
        %v2881 = vld [vmem:[%s37 + $0x2c68] sm:$0xff]
        %2882 = vst [vmem:[%s38 + $0x2c68] sm:$0xff] %v2881
        %v2883 = vld [vmem:[%s37 + $0x2c70] sm:$0xff]
        %2884 = vst [vmem:[%s38 + $0x2c70] sm:$0xff] %v2883
        %v2885 = vld [vmem:[%s37 + $0x2c78] sm:$0xff]
        %2886 = vst [vmem:[%s38 + $0x2c78] sm:$0xff] %v2885
        %v2887 = vld [vmem:[%s37 + $0x2c80] sm:$0xff]
        %2888 = vst [vmem:[%s38 + $0x2c80] sm:$0xff] %v2887
        %v2889 = vld [vmem:[%s37 + $0x2c88] sm:$0xff]
        %2890 = vst [vmem:[%s38 + $0x2c88] sm:$0xff] %v2889
        %v2891 = vld [vmem:[%s37 + $0x2c90] sm:$0xff]
        %2892 = vst [vmem:[%s38 + $0x2c90] sm:$0xff] %v2891
        %v2893 = vld [vmem:[%s37 + $0x2c98] sm:$0xff]
        %2894 = vst [vmem:[%s38 + $0x2c98] sm:$0xff] %v2893
        %v2895 = vld [vmem:[%s37 + $0x2ca0] sm:$0xff]
        %2896 = vst [vmem:[%s38 + $0x2ca0] sm:$0xff] %v2895
        %v2897 = vld [vmem:[%s37 + $0x2ca8] sm:$0xff]
        %2898 = vst [vmem:[%s38 + $0x2ca8] sm:$0xff] %v2897
        %v2899 = vld [vmem:[%s37 + $0x2cb0] sm:$0xff]
        %2900 = vst [vmem:[%s38 + $0x2cb0] sm:$0xff] %v2899
        %v2901 = vld [vmem:[%s37 + $0x2cb8] sm:$0xff]
        %2902 = vst [vmem:[%s38 + $0x2cb8] sm:$0xff] %v2901
        %v2903 = vld [vmem:[%s37 + $0x2cc0] sm:$0xff]
        %2904 = vst [vmem:[%s38 + $0x2cc0] sm:$0xff] %v2903
        %v2905 = vld [vmem:[%s37 + $0x2cc8] sm:$0xff]
        %2906 = vst [vmem:[%s38 + $0x2cc8] sm:$0xff] %v2905
        %v2907 = vld [vmem:[%s37 + $0x2cd0] sm:$0xff]
        %2908 = vst [vmem:[%s38 + $0x2cd0] sm:$0xff] %v2907
        %v2909 = vld [vmem:[%s37 + $0x2cd8] sm:$0xff]
        %2910 = vst [vmem:[%s38 + $0x2cd8] sm:$0xff] %v2909
        %v2911 = vld [vmem:[%s37 + $0x2ce0] sm:$0xff]
        %2912 = vst [vmem:[%s38 + $0x2ce0] sm:$0xff] %v2911
        %v2913 = vld [vmem:[%s37 + $0x2ce8] sm:$0xff]
        %2914 = vst [vmem:[%s38 + $0x2ce8] sm:$0xff] %v2913
        %v2915 = vld [vmem:[%s37 + $0x2cf0] sm:$0xff]
        %2916 = vst [vmem:[%s38 + $0x2cf0] sm:$0xff] %v2915
        %v2917 = vld [vmem:[%s37 + $0x2cf8] sm:$0xff]
        %2918 = vst [vmem:[%s38 + $0x2cf8] sm:$0xff] %v2917
        %v2919 = vld [vmem:[%s37 + $0x2d00] sm:$0xff]
        %2920 = vst [vmem:[%s38 + $0x2d00] sm:$0xff] %v2919
        %v2921 = vld [vmem:[%s37 + $0x2d08] sm:$0xff]
        %2922 = vst [vmem:[%s38 + $0x2d08] sm:$0xff] %v2921
        %v2923 = vld [vmem:[%s37 + $0x2d10] sm:$0xff]
        %2924 = vst [vmem:[%s38 + $0x2d10] sm:$0xff] %v2923
        %v2925 = vld [vmem:[%s37 + $0x2d18] sm:$0xff]
        %2926 = vst [vmem:[%s38 + $0x2d18] sm:$0xff] %v2925
        %v2927 = vld [vmem:[%s37 + $0x2d20] sm:$0xff]
        %2928 = vst [vmem:[%s38 + $0x2d20] sm:$0xff] %v2927
        %v2929 = vld [vmem:[%s37 + $0x2d28] sm:$0xff]
        %2930 = vst [vmem:[%s38 + $0x2d28] sm:$0xff] %v2929
        %v2931 = vld [vmem:[%s37 + $0x2d30] sm:$0xff]
        %2932 = vst [vmem:[%s38 + $0x2d30] sm:$0xff] %v2931
        %v2933 = vld [vmem:[%s37 + $0x2d38] sm:$0xff]
        %2934 = vst [vmem:[%s38 + $0x2d38] sm:$0xff] %v2933
        %v2935 = vld [vmem:[%s37 + $0x2d40] sm:$0xff]
        %2936 = vst [vmem:[%s38 + $0x2d40] sm:$0xff] %v2935
        %v2937 = vld [vmem:[%s37 + $0x2d48] sm:$0xff]
        %2938 = vst [vmem:[%s38 + $0x2d48] sm:$0xff] %v2937
        %v2939 = vld [vmem:[%s37 + $0x2d50] sm:$0xff]
        %2940 = vst [vmem:[%s38 + $0x2d50] sm:$0xff] %v2939
        %v2941 = vld [vmem:[%s37 + $0x2d58] sm:$0xff]
        %2942 = vst [vmem:[%s38 + $0x2d58] sm:$0xff] %v2941
        %v2943 = vld [vmem:[%s37 + $0x2d60] sm:$0xff]
        %2944 = vst [vmem:[%s38 + $0x2d60] sm:$0xff] %v2943
        %v2945 = vld [vmem:[%s37 + $0x2d68] sm:$0xff]
        %2946 = vst [vmem:[%s38 + $0x2d68] sm:$0xff] %v2945
        %v2947 = vld [vmem:[%s37 + $0x2d70] sm:$0xff]
        %2948 = vst [vmem:[%s38 + $0x2d70] sm:$0xff] %v2947
        %v2949 = vld [vmem:[%s37 + $0x2d78] sm:$0xff]
        %2950 = vst [vmem:[%s38 + $0x2d78] sm:$0xff] %v2949
        %v2951 = vld [vmem:[%s37 + $0x2d80] sm:$0xff]
        %2952 = vst [vmem:[%s38 + $0x2d80] sm:$0xff] %v2951
        %v2953 = vld [vmem:[%s37 + $0x2d88] sm:$0xff]
        %2954 = vst [vmem:[%s38 + $0x2d88] sm:$0xff] %v2953
        %v2955 = vld [vmem:[%s37 + $0x2d90] sm:$0xff]
        %2956 = vst [vmem:[%s38 + $0x2d90] sm:$0xff] %v2955
        %v2957 = vld [vmem:[%s37 + $0x2d98] sm:$0xff]
        %2958 = vst [vmem:[%s38 + $0x2d98] sm:$0xff] %v2957
        %v2959 = vld [vmem:[%s37 + $0x2da0] sm:$0xff]
        %2960 = vst [vmem:[%s38 + $0x2da0] sm:$0xff] %v2959
        %v2961 = vld [vmem:[%s37 + $0x2da8] sm:$0xff]
        %2962 = vst [vmem:[%s38 + $0x2da8] sm:$0xff] %v2961
        %v2963 = vld [vmem:[%s37 + $0x2db0] sm:$0xff]
        %2964 = vst [vmem:[%s38 + $0x2db0] sm:$0xff] %v2963
        %v2965 = vld [vmem:[%s37 + $0x2db8] sm:$0xff]
        %2966 = vst [vmem:[%s38 + $0x2db8] sm:$0xff] %v2965
        %v2967 = vld [vmem:[%s37 + $0x2dc0] sm:$0xff]
        %2968 = vst [vmem:[%s38 + $0x2dc0] sm:$0xff] %v2967
        %v2969 = vld [vmem:[%s37 + $0x2dc8] sm:$0xff]
        %2970 = vst [vmem:[%s38 + $0x2dc8] sm:$0xff] %v2969
        %v2971 = vld [vmem:[%s37 + $0x2dd0] sm:$0xff]
        %2972 = vst [vmem:[%s38 + $0x2dd0] sm:$0xff] %v2971
        %v2973 = vld [vmem:[%s37 + $0x2dd8] sm:$0xff]
        %2974 = vst [vmem:[%s38 + $0x2dd8] sm:$0xff] %v2973
        %v2975 = vld [vmem:[%s37 + $0x2de0] sm:$0xff]
        %2976 = vst [vmem:[%s38 + $0x2de0] sm:$0xff] %v2975
        %v2977 = vld [vmem:[%s37 + $0x2de8] sm:$0xff]
        %2978 = vst [vmem:[%s38 + $0x2de8] sm:$0xff] %v2977
        %v2979 = vld [vmem:[%s37 + $0x2df0] sm:$0xff]
        %2980 = vst [vmem:[%s38 + $0x2df0] sm:$0xff] %v2979
        %v2981 = vld [vmem:[%s37 + $0x2df8] sm:$0xff]
        %2982 = vst [vmem:[%s38 + $0x2df8] sm:$0xff] %v2981
        %v2983 = vld [vmem:[%s37 + $0x2e00] sm:$0xff]
        %2984 = vst [vmem:[%s38 + $0x2e00] sm:$0xff] %v2983
        %v2985 = vld [vmem:[%s37 + $0x2e08] sm:$0xff]
        %2986 = vst [vmem:[%s38 + $0x2e08] sm:$0xff] %v2985
        %v2987 = vld [vmem:[%s37 + $0x2e10] sm:$0xff]
        %2988 = vst [vmem:[%s38 + $0x2e10] sm:$0xff] %v2987
        %v2989 = vld [vmem:[%s37 + $0x2e18] sm:$0xff]
        %2990 = vst [vmem:[%s38 + $0x2e18] sm:$0xff] %v2989
        %v2991 = vld [vmem:[%s37 + $0x2e20] sm:$0xff]
        %2992 = vst [vmem:[%s38 + $0x2e20] sm:$0xff] %v2991
        %v2993 = vld [vmem:[%s37 + $0x2e28] sm:$0xff]
        %2994 = vst [vmem:[%s38 + $0x2e28] sm:$0xff] %v2993
        %v2995 = vld [vmem:[%s37 + $0x2e30] sm:$0xff]
        %2996 = vst [vmem:[%s38 + $0x2e30] sm:$0xff] %v2995
        %v2997 = vld [vmem:[%s37 + $0x2e38] sm:$0xff]
        %2998 = vst [vmem:[%s38 + $0x2e38] sm:$0xff] %v2997
        %v2999 = vld [vmem:[%s37 + $0x2e40] sm:$0xff]
        %3000 = vst [vmem:[%s38 + $0x2e40] sm:$0xff] %v2999
        %v3001 = vld [vmem:[%s37 + $0x2e48] sm:$0xff]
        %3002 = vst [vmem:[%s38 + $0x2e48] sm:$0xff] %v3001
        %v3003 = vld [vmem:[%s37 + $0x2e50] sm:$0xff]
        %3004 = vst [vmem:[%s38 + $0x2e50] sm:$0xff] %v3003
        %v3005 = vld [vmem:[%s37 + $0x2e58] sm:$0xff]
        %3006 = vst [vmem:[%s38 + $0x2e58] sm:$0xff] %v3005
        %v3007 = vld [vmem:[%s37 + $0x2e60] sm:$0xff]
        %3008 = vst [vmem:[%s38 + $0x2e60] sm:$0xff] %v3007
        %v3009 = vld [vmem:[%s37 + $0x2e68] sm:$0xff]
        %3010 = vst [vmem:[%s38 + $0x2e68] sm:$0xff] %v3009
        %v3011 = vld [vmem:[%s37 + $0x2e70] sm:$0xff]
        %3012 = vst [vmem:[%s38 + $0x2e70] sm:$0xff] %v3011
        %v3013 = vld [vmem:[%s37 + $0x2e78] sm:$0xff]
        %3014 = vst [vmem:[%s38 + $0x2e78] sm:$0xff] %v3013
        %v3015 = vld [vmem:[%s37 + $0x2e80] sm:$0xff]
        %3016 = vst [vmem:[%s38 + $0x2e80] sm:$0xff] %v3015
        %v3017 = vld [vmem:[%s37 + $0x2e88] sm:$0xff]
        %3018 = vst [vmem:[%s38 + $0x2e88] sm:$0xff] %v3017
        %v3019 = vld [vmem:[%s37 + $0x2e90] sm:$0xff]
        %3020 = vst [vmem:[%s38 + $0x2e90] sm:$0xff] %v3019
        %v3021 = vld [vmem:[%s37 + $0x2e98] sm:$0xff]
        %3022 = vst [vmem:[%s38 + $0x2e98] sm:$0xff] %v3021
        %v3023 = vld [vmem:[%s37 + $0x2ea0] sm:$0xff]
        %3024 = vst [vmem:[%s38 + $0x2ea0] sm:$0xff] %v3023
        %v3025 = vld [vmem:[%s37 + $0x2ea8] sm:$0xff]
        %3026 = vst [vmem:[%s38 + $0x2ea8] sm:$0xff] %v3025
        %v3027 = vld [vmem:[%s37 + $0x2eb0] sm:$0xff]
        %3028 = vst [vmem:[%s38 + $0x2eb0] sm:$0xff] %v3027
        %v3029 = vld [vmem:[%s37 + $0x2eb8] sm:$0xff]
        %3030 = vst [vmem:[%s38 + $0x2eb8] sm:$0xff] %v3029
        %v3031 = vld [vmem:[%s37 + $0x2ec0] sm:$0xff]
        %3032 = vst [vmem:[%s38 + $0x2ec0] sm:$0xff] %v3031
        %v3033 = vld [vmem:[%s37 + $0x2ec8] sm:$0xff]
        %3034 = vst [vmem:[%s38 + $0x2ec8] sm:$0xff] %v3033
        %v3035 = vld [vmem:[%s37 + $0x2ed0] sm:$0xff]
        %3036 = vst [vmem:[%s38 + $0x2ed0] sm:$0xff] %v3035
        %v3037 = vld [vmem:[%s37 + $0x2ed8] sm:$0xff]
        %3038 = vst [vmem:[%s38 + $0x2ed8] sm:$0xff] %v3037
        %v3039 = vld [vmem:[%s37 + $0x2ee0] sm:$0xff]
        %3040 = vst [vmem:[%s38 + $0x2ee0] sm:$0xff] %v3039
        %v3041 = vld [vmem:[%s37 + $0x2ee8] sm:$0xff]
        %3042 = vst [vmem:[%s38 + $0x2ee8] sm:$0xff] %v3041
        %v3043 = vld [vmem:[%s37 + $0x2ef0] sm:$0xff]
        %3044 = vst [vmem:[%s38 + $0x2ef0] sm:$0xff] %v3043
        %v3045 = vld [vmem:[%s37 + $0x2ef8] sm:$0xff]
        %3046 = vst [vmem:[%s38 + $0x2ef8] sm:$0xff] %v3045
        %v3047 = vld [vmem:[%s37 + $0x2f00] sm:$0xff]
        %3048 = vst [vmem:[%s38 + $0x2f00] sm:$0xff] %v3047
        %v3049 = vld [vmem:[%s37 + $0x2f08] sm:$0xff]
        %3050 = vst [vmem:[%s38 + $0x2f08] sm:$0xff] %v3049
        %v3051 = vld [vmem:[%s37 + $0x2f10] sm:$0xff]
        %3052 = vst [vmem:[%s38 + $0x2f10] sm:$0xff] %v3051
        %v3053 = vld [vmem:[%s37 + $0x2f18] sm:$0xff]
        %3054 = vst [vmem:[%s38 + $0x2f18] sm:$0xff] %v3053
        %v3055 = vld [vmem:[%s37 + $0x2f20] sm:$0xff]
        %3056 = vst [vmem:[%s38 + $0x2f20] sm:$0xff] %v3055
        %v3057 = vld [vmem:[%s37 + $0x2f28] sm:$0xff]
        %3058 = vst [vmem:[%s38 + $0x2f28] sm:$0xff] %v3057
        %v3059 = vld [vmem:[%s37 + $0x2f30] sm:$0xff]
        %3060 = vst [vmem:[%s38 + $0x2f30] sm:$0xff] %v3059
        %v3061 = vld [vmem:[%s37 + $0x2f38] sm:$0xff]
        %3062 = vst [vmem:[%s38 + $0x2f38] sm:$0xff] %v3061
        %v3063 = vld [vmem:[%s37 + $0x2f40] sm:$0xff]
        %3064 = vst [vmem:[%s38 + $0x2f40] sm:$0xff] %v3063
        %v3065 = vld [vmem:[%s37 + $0x2f48] sm:$0xff]
        %3066 = vst [vmem:[%s38 + $0x2f48] sm:$0xff] %v3065
        %v3067 = vld [vmem:[%s37 + $0x2f50] sm:$0xff]
        %3068 = vst [vmem:[%s38 + $0x2f50] sm:$0xff] %v3067
        %v3069 = vld [vmem:[%s37 + $0x2f58] sm:$0xff]
        %3070 = vst [vmem:[%s38 + $0x2f58] sm:$0xff] %v3069
        %v3071 = vld [vmem:[%s37 + $0x2f60] sm:$0xff]
        %3072 = vst [vmem:[%s38 + $0x2f60] sm:$0xff] %v3071
        %v3073 = vld [vmem:[%s37 + $0x2f68] sm:$0xff]
        %3074 = vst [vmem:[%s38 + $0x2f68] sm:$0xff] %v3073
        %v3075 = vld [vmem:[%s37 + $0x2f70] sm:$0xff]
        %3076 = vst [vmem:[%s38 + $0x2f70] sm:$0xff] %v3075
        %v3077 = vld [vmem:[%s37 + $0x2f78] sm:$0xff]
        %3078 = vst [vmem:[%s38 + $0x2f78] sm:$0xff] %v3077
        %v3079 = vld [vmem:[%s37 + $0x2f80] sm:$0xff]
        %3080 = vst [vmem:[%s38 + $0x2f80] sm:$0xff] %v3079
        %v3081 = vld [vmem:[%s37 + $0x2f88] sm:$0xff]
        %3082 = vst [vmem:[%s38 + $0x2f88] sm:$0xff] %v3081
        %v3083 = vld [vmem:[%s37 + $0x2f90] sm:$0xff]
        %3084 = vst [vmem:[%s38 + $0x2f90] sm:$0xff] %v3083
        %v3085 = vld [vmem:[%s37 + $0x2f98] sm:$0xff]
        %3086 = vst [vmem:[%s38 + $0x2f98] sm:$0xff] %v3085
        %v3087 = vld [vmem:[%s37 + $0x2fa0] sm:$0xff]
        %3088 = vst [vmem:[%s38 + $0x2fa0] sm:$0xff] %v3087
        %v3089 = vld [vmem:[%s37 + $0x2fa8] sm:$0xff]
        %3090 = vst [vmem:[%s38 + $0x2fa8] sm:$0xff] %v3089
        %v3091 = vld [vmem:[%s37 + $0x2fb0] sm:$0xff]
        %3092 = vst [vmem:[%s38 + $0x2fb0] sm:$0xff] %v3091
        %v3093 = vld [vmem:[%s37 + $0x2fb8] sm:$0xff]
        %3094 = vst [vmem:[%s38 + $0x2fb8] sm:$0xff] %v3093
        %v3095 = vld [vmem:[%s37 + $0x2fc0] sm:$0xff]
        %3096 = vst [vmem:[%s38 + $0x2fc0] sm:$0xff] %v3095
        %v3097 = vld [vmem:[%s37 + $0x2fc8] sm:$0xff]
        %3098 = vst [vmem:[%s38 + $0x2fc8] sm:$0xff] %v3097
        %v3099 = vld [vmem:[%s37 + $0x2fd0] sm:$0xff]
        %3100 = vst [vmem:[%s38 + $0x2fd0] sm:$0xff] %v3099
        %v3101 = vld [vmem:[%s37 + $0x2fd8] sm:$0xff]
        %3102 = vst [vmem:[%s38 + $0x2fd8] sm:$0xff] %v3101
        %v3103 = vld [vmem:[%s37 + $0x2fe0] sm:$0xff]
        %3104 = vst [vmem:[%s38 + $0x2fe0] sm:$0xff] %v3103
        %v3105 = vld [vmem:[%s37 + $0x2fe8] sm:$0xff]
        %3106 = vst [vmem:[%s38 + $0x2fe8] sm:$0xff] %v3105
        %v3107 = vld [vmem:[%s37 + $0x2ff0] sm:$0xff]
        %3108 = vst [vmem:[%s38 + $0x2ff0] sm:$0xff] %v3107
        %v3109 = vld [vmem:[%s37 + $0x2ff8] sm:$0xff]
        %3110 = vst [vmem:[%s38 + $0x2ff8] sm:$0xff] %v3109
        %v3111 = vld [vmem:[%s37 + $0x3000] sm:$0xff]
        %3112 = vst [vmem:[%s38 + $0x3000] sm:$0xff] %v3111
        %v3113 = vld [vmem:[%s37 + $0x3008] sm:$0xff]
        %3114 = vst [vmem:[%s38 + $0x3008] sm:$0xff] %v3113
        %v3115 = vld [vmem:[%s37 + $0x3010] sm:$0xff]
        %3116 = vst [vmem:[%s38 + $0x3010] sm:$0xff] %v3115
        %v3117 = vld [vmem:[%s37 + $0x3018] sm:$0xff]
        %3118 = vst [vmem:[%s38 + $0x3018] sm:$0xff] %v3117
        %v3119 = vld [vmem:[%s37 + $0x3020] sm:$0xff]
        %3120 = vst [vmem:[%s38 + $0x3020] sm:$0xff] %v3119
        %v3121 = vld [vmem:[%s37 + $0x3028] sm:$0xff]
        %3122 = vst [vmem:[%s38 + $0x3028] sm:$0xff] %v3121
        %v3123 = vld [vmem:[%s37 + $0x3030] sm:$0xff]
        %3124 = vst [vmem:[%s38 + $0x3030] sm:$0xff] %v3123
        %v3125 = vld [vmem:[%s37 + $0x3038] sm:$0xff]
        %3126 = vst [vmem:[%s38 + $0x3038] sm:$0xff] %v3125
        %v3127 = vld [vmem:[%s37 + $0x3040] sm:$0xff]
        %3128 = vst [vmem:[%s38 + $0x3040] sm:$0xff] %v3127
        %v3129 = vld [vmem:[%s37 + $0x3048] sm:$0xff]
        %3130 = vst [vmem:[%s38 + $0x3048] sm:$0xff] %v3129
        %v3131 = vld [vmem:[%s37 + $0x3050] sm:$0xff]
        %3132 = vst [vmem:[%s38 + $0x3050] sm:$0xff] %v3131
        %v3133 = vld [vmem:[%s37 + $0x3058] sm:$0xff]
        %3134 = vst [vmem:[%s38 + $0x3058] sm:$0xff] %v3133
        %v3135 = vld [vmem:[%s37 + $0x3060] sm:$0xff]
        %3136 = vst [vmem:[%s38 + $0x3060] sm:$0xff] %v3135
        %v3137 = vld [vmem:[%s37 + $0x3068] sm:$0xff]
        %3138 = vst [vmem:[%s38 + $0x3068] sm:$0xff] %v3137
        %v3139 = vld [vmem:[%s37 + $0x3070] sm:$0xff]
        %3140 = vst [vmem:[%s38 + $0x3070] sm:$0xff] %v3139
        %v3141 = vld [vmem:[%s37 + $0x3078] sm:$0xff]
        %3142 = vst [vmem:[%s38 + $0x3078] sm:$0xff] %v3141
        %v3143 = vld [vmem:[%s37 + $0x3080] sm:$0xff]
        %3144 = vst [vmem:[%s38 + $0x3080] sm:$0xff] %v3143
        %v3145 = vld [vmem:[%s37 + $0x3088] sm:$0xff]
        %3146 = vst [vmem:[%s38 + $0x3088] sm:$0xff] %v3145
        %v3147 = vld [vmem:[%s37 + $0x3090] sm:$0xff]
        %3148 = vst [vmem:[%s38 + $0x3090] sm:$0xff] %v3147
        %v3149 = vld [vmem:[%s37 + $0x3098] sm:$0xff]
        %3150 = vst [vmem:[%s38 + $0x3098] sm:$0xff] %v3149
        %v3151 = vld [vmem:[%s37 + $0x30a0] sm:$0xff]
        %3152 = vst [vmem:[%s38 + $0x30a0] sm:$0xff] %v3151
        %v3153 = vld [vmem:[%s37 + $0x30a8] sm:$0xff]
        %3154 = vst [vmem:[%s38 + $0x30a8] sm:$0xff] %v3153
        %v3155 = vld [vmem:[%s37 + $0x30b0] sm:$0xff]
        %3156 = vst [vmem:[%s38 + $0x30b0] sm:$0xff] %v3155
        %v3157 = vld [vmem:[%s37 + $0x30b8] sm:$0xff]
        %3158 = vst [vmem:[%s38 + $0x30b8] sm:$0xff] %v3157
        %v3159 = vld [vmem:[%s37 + $0x30c0] sm:$0xff]
        %3160 = vst [vmem:[%s38 + $0x30c0] sm:$0xff] %v3159
        %v3161 = vld [vmem:[%s37 + $0x30c8] sm:$0xff]
        %3162 = vst [vmem:[%s38 + $0x30c8] sm:$0xff] %v3161
        %v3163 = vld [vmem:[%s37 + $0x30d0] sm:$0xff]
        %3164 = vst [vmem:[%s38 + $0x30d0] sm:$0xff] %v3163
        %v3165 = vld [vmem:[%s37 + $0x30d8] sm:$0xff]
        %3166 = vst [vmem:[%s38 + $0x30d8] sm:$0xff] %v3165
        %v3167 = vld [vmem:[%s37 + $0x30e0] sm:$0xff]
        %3168 = vst [vmem:[%s38 + $0x30e0] sm:$0xff] %v3167
        %v3169 = vld [vmem:[%s37 + $0x30e8] sm:$0xff]
        %3170 = vst [vmem:[%s38 + $0x30e8] sm:$0xff] %v3169
        %v3171 = vld [vmem:[%s37 + $0x30f0] sm:$0xff]
        %3172 = vst [vmem:[%s38 + $0x30f0] sm:$0xff] %v3171
        %v3173 = vld [vmem:[%s37 + $0x30f8] sm:$0xff]
        %3174 = vst [vmem:[%s38 + $0x30f8] sm:$0xff] %v3173
        %v3175 = vld [vmem:[%s37 + $0x3100] sm:$0xff]
        %3176 = vst [vmem:[%s38 + $0x3100] sm:$0xff] %v3175
        %v3177 = vld [vmem:[%s37 + $0x3108] sm:$0xff]
        %3178 = vst [vmem:[%s38 + $0x3108] sm:$0xff] %v3177
        %v3179 = vld [vmem:[%s37 + $0x3110] sm:$0xff]
        %3180 = vst [vmem:[%s38 + $0x3110] sm:$0xff] %v3179
        %v3181 = vld [vmem:[%s37 + $0x3118] sm:$0xff]
        %3182 = vst [vmem:[%s38 + $0x3118] sm:$0xff] %v3181
        %v3183 = vld [vmem:[%s37 + $0x3120] sm:$0xff]
        %3184 = vst [vmem:[%s38 + $0x3120] sm:$0xff] %v3183
        %v3185 = vld [vmem:[%s37 + $0x3128] sm:$0xff]
        %3186 = vst [vmem:[%s38 + $0x3128] sm:$0xff] %v3185
        %v3187 = vld [vmem:[%s37 + $0x3130] sm:$0xff]
        %3188 = vst [vmem:[%s38 + $0x3130] sm:$0xff] %v3187
        %v3189 = vld [vmem:[%s37 + $0x3138] sm:$0xff]
        %3190 = vst [vmem:[%s38 + $0x3138] sm:$0xff] %v3189
        %v3191 = vld [vmem:[%s37 + $0x3140] sm:$0xff]
        %3192 = vst [vmem:[%s38 + $0x3140] sm:$0xff] %v3191
        %v3193 = vld [vmem:[%s37 + $0x3148] sm:$0xff]
        %3194 = vst [vmem:[%s38 + $0x3148] sm:$0xff] %v3193
        %v3195 = vld [vmem:[%s37 + $0x3150] sm:$0xff]
        %3196 = vst [vmem:[%s38 + $0x3150] sm:$0xff] %v3195
        %v3197 = vld [vmem:[%s37 + $0x3158] sm:$0xff]
        %3198 = vst [vmem:[%s38 + $0x3158] sm:$0xff] %v3197
        %v3199 = vld [vmem:[%s37 + $0x3160] sm:$0xff]
        %3200 = vst [vmem:[%s38 + $0x3160] sm:$0xff] %v3199
        %v3201 = vld [vmem:[%s37 + $0x3168] sm:$0xff]
        %3202 = vst [vmem:[%s38 + $0x3168] sm:$0xff] %v3201
        %v3203 = vld [vmem:[%s37 + $0x3170] sm:$0xff]
        %3204 = vst [vmem:[%s38 + $0x3170] sm:$0xff] %v3203
        %v3205 = vld [vmem:[%s37 + $0x3178] sm:$0xff]
        %3206 = vst [vmem:[%s38 + $0x3178] sm:$0xff] %v3205
        %v3207 = vld [vmem:[%s37 + $0x3180] sm:$0xff]
        %3208 = vst [vmem:[%s38 + $0x3180] sm:$0xff] %v3207
        %v3209 = vld [vmem:[%s37 + $0x3188] sm:$0xff]
        %3210 = vst [vmem:[%s38 + $0x3188] sm:$0xff] %v3209
        %v3211 = vld [vmem:[%s37 + $0x3190] sm:$0xff]
        %3212 = vst [vmem:[%s38 + $0x3190] sm:$0xff] %v3211
        %v3213 = vld [vmem:[%s37 + $0x3198] sm:$0xff]
        %3214 = vst [vmem:[%s38 + $0x3198] sm:$0xff] %v3213
        %v3215 = vld [vmem:[%s37 + $0x31a0] sm:$0xff]
        %3216 = vst [vmem:[%s38 + $0x31a0] sm:$0xff] %v3215
        %v3217 = vld [vmem:[%s37 + $0x31a8] sm:$0xff]
        %3218 = vst [vmem:[%s38 + $0x31a8] sm:$0xff] %v3217
        %v3219 = vld [vmem:[%s37 + $0x31b0] sm:$0xff]
        %3220 = vst [vmem:[%s38 + $0x31b0] sm:$0xff] %v3219
        %v3221 = vld [vmem:[%s37 + $0x31b8] sm:$0xff]
        %3222 = vst [vmem:[%s38 + $0x31b8] sm:$0xff] %v3221
        %v3223 = vld [vmem:[%s37 + $0x31c0] sm:$0xff]
        %3224 = vst [vmem:[%s38 + $0x31c0] sm:$0xff] %v3223
        %v3225 = vld [vmem:[%s37 + $0x31c8] sm:$0xff]
        %3226 = vst [vmem:[%s38 + $0x31c8] sm:$0xff] %v3225
        %v3227 = vld [vmem:[%s37 + $0x31d0] sm:$0xff]
        %3228 = vst [vmem:[%s38 + $0x31d0] sm:$0xff] %v3227
        %v3229 = vld [vmem:[%s37 + $0x31d8] sm:$0xff]
        %3230 = vst [vmem:[%s38 + $0x31d8] sm:$0xff] %v3229
        %v3231 = vld [vmem:[%s37 + $0x31e0] sm:$0xff]
        %3232 = vst [vmem:[%s38 + $0x31e0] sm:$0xff] %v3231
        %v3233 = vld [vmem:[%s37 + $0x31e8] sm:$0xff]
        %3234 = vst [vmem:[%s38 + $0x31e8] sm:$0xff] %v3233
        %v3235 = vld [vmem:[%s37 + $0x31f0] sm:$0xff]
        %3236 = vst [vmem:[%s38 + $0x31f0] sm:$0xff] %v3235
        %v3237 = vld [vmem:[%s37 + $0x31f8] sm:$0xff]
        %3238 = vst [vmem:[%s38 + $0x31f8] sm:$0xff] %v3237
        %v3239 = vld [vmem:[%s37 + $0x3200] sm:$0xff]
        %3240 = vst [vmem:[%s38 + $0x3200] sm:$0xff] %v3239
        %v3241 = vld [vmem:[%s37 + $0x3208] sm:$0xff]
        %3242 = vst [vmem:[%s38 + $0x3208] sm:$0xff] %v3241
        %v3243 = vld [vmem:[%s37 + $0x3210] sm:$0xff]
        %3244 = vst [vmem:[%s38 + $0x3210] sm:$0xff] %v3243
        %v3245 = vld [vmem:[%s37 + $0x3218] sm:$0xff]
        %3246 = vst [vmem:[%s38 + $0x3218] sm:$0xff] %v3245
        %v3247 = vld [vmem:[%s37 + $0x3220] sm:$0xff]
        %3248 = vst [vmem:[%s38 + $0x3220] sm:$0xff] %v3247
        %v3249 = vld [vmem:[%s37 + $0x3228] sm:$0xff]
        %3250 = vst [vmem:[%s38 + $0x3228] sm:$0xff] %v3249
        %v3251 = vld [vmem:[%s37 + $0x3230] sm:$0xff]
        %3252 = vst [vmem:[%s38 + $0x3230] sm:$0xff] %v3251
        %v3253 = vld [vmem:[%s37 + $0x3238] sm:$0xff]
        %3254 = vst [vmem:[%s38 + $0x3238] sm:$0xff] %v3253
        %v3255 = vld [vmem:[%s37 + $0x3240] sm:$0xff]
        %3256 = vst [vmem:[%s38 + $0x3240] sm:$0xff] %v3255
        %v3257 = vld [vmem:[%s37 + $0x3248] sm:$0xff]
        %3258 = vst [vmem:[%s38 + $0x3248] sm:$0xff] %v3257
        %v3259 = vld [vmem:[%s37 + $0x3250] sm:$0xff]
        %3260 = vst [vmem:[%s38 + $0x3250] sm:$0xff] %v3259
        %v3261 = vld [vmem:[%s37 + $0x3258] sm:$0xff]
        %3262 = vst [vmem:[%s38 + $0x3258] sm:$0xff] %v3261
        %v3263 = vld [vmem:[%s37 + $0x3260] sm:$0xff]
        %3264 = vst [vmem:[%s38 + $0x3260] sm:$0xff] %v3263
        %v3265 = vld [vmem:[%s37 + $0x3268] sm:$0xff]
        %3266 = vst [vmem:[%s38 + $0x3268] sm:$0xff] %v3265
        %v3267 = vld [vmem:[%s37 + $0x3270] sm:$0xff]
        %3268 = vst [vmem:[%s38 + $0x3270] sm:$0xff] %v3267
        %v3269 = vld [vmem:[%s37 + $0x3278] sm:$0xff]
        %3270 = vst [vmem:[%s38 + $0x3278] sm:$0xff] %v3269
        %v3271 = vld [vmem:[%s37 + $0x3280] sm:$0xff]
        %3272 = vst [vmem:[%s38 + $0x3280] sm:$0xff] %v3271
        %v3273 = vld [vmem:[%s37 + $0x3288] sm:$0xff]
        %3274 = vst [vmem:[%s38 + $0x3288] sm:$0xff] %v3273
        %v3275 = vld [vmem:[%s37 + $0x3290] sm:$0xff]
        %3276 = vst [vmem:[%s38 + $0x3290] sm:$0xff] %v3275
        %v3277 = vld [vmem:[%s37 + $0x3298] sm:$0xff]
        %3278 = vst [vmem:[%s38 + $0x3298] sm:$0xff] %v3277
        %v3279 = vld [vmem:[%s37 + $0x32a0] sm:$0xff]
        %3280 = vst [vmem:[%s38 + $0x32a0] sm:$0xff] %v3279
        %v3281 = vld [vmem:[%s37 + $0x32a8] sm:$0xff]
        %3282 = vst [vmem:[%s38 + $0x32a8] sm:$0xff] %v3281
        %v3283 = vld [vmem:[%s37 + $0x32b0] sm:$0xff]
        %3284 = vst [vmem:[%s38 + $0x32b0] sm:$0xff] %v3283
        %v3285 = vld [vmem:[%s37 + $0x32b8] sm:$0xff]
        %3286 = vst [vmem:[%s38 + $0x32b8] sm:$0xff] %v3285
        %v3287 = vld [vmem:[%s37 + $0x32c0] sm:$0xff]
        %3288 = vst [vmem:[%s38 + $0x32c0] sm:$0xff] %v3287
        %v3289 = vld [vmem:[%s37 + $0x32c8] sm:$0xff]
        %3290 = vst [vmem:[%s38 + $0x32c8] sm:$0xff] %v3289
        %v3291 = vld [vmem:[%s37 + $0x32d0] sm:$0xff]
        %3292 = vst [vmem:[%s38 + $0x32d0] sm:$0xff] %v3291
        %v3293 = vld [vmem:[%s37 + $0x32d8] sm:$0xff]
        %3294 = vst [vmem:[%s38 + $0x32d8] sm:$0xff] %v3293
        %v3295 = vld [vmem:[%s37 + $0x32e0] sm:$0xff]
        %3296 = vst [vmem:[%s38 + $0x32e0] sm:$0xff] %v3295
        %v3297 = vld [vmem:[%s37 + $0x32e8] sm:$0xff]
        %3298 = vst [vmem:[%s38 + $0x32e8] sm:$0xff] %v3297
        %v3299 = vld [vmem:[%s37 + $0x32f0] sm:$0xff]
        %3300 = vst [vmem:[%s38 + $0x32f0] sm:$0xff] %v3299
        %v3301 = vld [vmem:[%s37 + $0x32f8] sm:$0xff]
        %3302 = vst [vmem:[%s38 + $0x32f8] sm:$0xff] %v3301
        %v3303 = vld [vmem:[%s37 + $0x3300] sm:$0xff]
        %3304 = vst [vmem:[%s38 + $0x3300] sm:$0xff] %v3303
        %v3305 = vld [vmem:[%s37 + $0x3308] sm:$0xff]
        %3306 = vst [vmem:[%s38 + $0x3308] sm:$0xff] %v3305
        %v3307 = vld [vmem:[%s37 + $0x3310] sm:$0xff]
        %3308 = vst [vmem:[%s38 + $0x3310] sm:$0xff] %v3307
        %v3309 = vld [vmem:[%s37 + $0x3318] sm:$0xff]
        %3310 = vst [vmem:[%s38 + $0x3318] sm:$0xff] %v3309
        %v3311 = vld [vmem:[%s37 + $0x3320] sm:$0xff]
        %3312 = vst [vmem:[%s38 + $0x3320] sm:$0xff] %v3311
        %v3313 = vld [vmem:[%s37 + $0x3328] sm:$0xff]
        %3314 = vst [vmem:[%s38 + $0x3328] sm:$0xff] %v3313
        %v3315 = vld [vmem:[%s37 + $0x3330] sm:$0xff]
        %3316 = vst [vmem:[%s38 + $0x3330] sm:$0xff] %v3315
        %v3317 = vld [vmem:[%s37 + $0x3338] sm:$0xff]
        %3318 = vst [vmem:[%s38 + $0x3338] sm:$0xff] %v3317
        %v3319 = vld [vmem:[%s37 + $0x3340] sm:$0xff]
        %3320 = vst [vmem:[%s38 + $0x3340] sm:$0xff] %v3319
        %v3321 = vld [vmem:[%s37 + $0x3348] sm:$0xff]
        %3322 = vst [vmem:[%s38 + $0x3348] sm:$0xff] %v3321
        %v3323 = vld [vmem:[%s37 + $0x3350] sm:$0xff]
        %3324 = vst [vmem:[%s38 + $0x3350] sm:$0xff] %v3323
        %v3325 = vld [vmem:[%s37 + $0x3358] sm:$0xff]
        %3326 = vst [vmem:[%s38 + $0x3358] sm:$0xff] %v3325
        %v3327 = vld [vmem:[%s37 + $0x3360] sm:$0xff]
        %3328 = vst [vmem:[%s38 + $0x3360] sm:$0xff] %v3327
        %v3329 = vld [vmem:[%s37 + $0x3368] sm:$0xff]
        %3330 = vst [vmem:[%s38 + $0x3368] sm:$0xff] %v3329
        %v3331 = vld [vmem:[%s37 + $0x3370] sm:$0xff]
        %3332 = vst [vmem:[%s38 + $0x3370] sm:$0xff] %v3331
        %v3333 = vld [vmem:[%s37 + $0x3378] sm:$0xff]
        %3334 = vst [vmem:[%s38 + $0x3378] sm:$0xff] %v3333
        %v3335 = vld [vmem:[%s37 + $0x3380] sm:$0xff]
        %3336 = vst [vmem:[%s38 + $0x3380] sm:$0xff] %v3335
        %v3337 = vld [vmem:[%s37 + $0x3388] sm:$0xff]
        %3338 = vst [vmem:[%s38 + $0x3388] sm:$0xff] %v3337
        %v3339 = vld [vmem:[%s37 + $0x3390] sm:$0xff]
        %3340 = vst [vmem:[%s38 + $0x3390] sm:$0xff] %v3339
        %v3341 = vld [vmem:[%s37 + $0x3398] sm:$0xff]
        %3342 = vst [vmem:[%s38 + $0x3398] sm:$0xff] %v3341
        %v3343 = vld [vmem:[%s37 + $0x33a0] sm:$0xff]
        %3344 = vst [vmem:[%s38 + $0x33a0] sm:$0xff] %v3343
        %v3345 = vld [vmem:[%s37 + $0x33a8] sm:$0xff]
        %3346 = vst [vmem:[%s38 + $0x33a8] sm:$0xff] %v3345
        %v3347 = vld [vmem:[%s37 + $0x33b0] sm:$0xff]
        %3348 = vst [vmem:[%s38 + $0x33b0] sm:$0xff] %v3347
        %v3349 = vld [vmem:[%s37 + $0x33b8] sm:$0xff]
        %3350 = vst [vmem:[%s38 + $0x33b8] sm:$0xff] %v3349
        %v3351 = vld [vmem:[%s37 + $0x33c0] sm:$0xff]
        %3352 = vst [vmem:[%s38 + $0x33c0] sm:$0xff] %v3351
        %v3353 = vld [vmem:[%s37 + $0x33c8] sm:$0xff]
        %3354 = vst [vmem:[%s38 + $0x33c8] sm:$0xff] %v3353
        %v3355 = vld [vmem:[%s37 + $0x33d0] sm:$0xff]
        %3356 = vst [vmem:[%s38 + $0x33d0] sm:$0xff] %v3355
        %v3357 = vld [vmem:[%s37 + $0x33d8] sm:$0xff]
        %3358 = vst [vmem:[%s38 + $0x33d8] sm:$0xff] %v3357
        %v3359 = vld [vmem:[%s37 + $0x33e0] sm:$0xff]
        %3360 = vst [vmem:[%s38 + $0x33e0] sm:$0xff] %v3359
        %v3361 = vld [vmem:[%s37 + $0x33e8] sm:$0xff]
        %3362 = vst [vmem:[%s38 + $0x33e8] sm:$0xff] %v3361
        %v3363 = vld [vmem:[%s37 + $0x33f0] sm:$0xff]
        %3364 = vst [vmem:[%s38 + $0x33f0] sm:$0xff] %v3363
        %v3365 = vld [vmem:[%s37 + $0x33f8] sm:$0xff]
        %3366 = vst [vmem:[%s38 + $0x33f8] sm:$0xff] %v3365
        %v3367 = vld [vmem:[%s37 + $0x3400] sm:$0xff]
        %3368 = vst [vmem:[%s38 + $0x3400] sm:$0xff] %v3367
        %v3369 = vld [vmem:[%s37 + $0x3408] sm:$0xff]
        %3370 = vst [vmem:[%s38 + $0x3408] sm:$0xff] %v3369
        %v3371 = vld [vmem:[%s37 + $0x3410] sm:$0xff]
        %3372 = vst [vmem:[%s38 + $0x3410] sm:$0xff] %v3371
        %v3373 = vld [vmem:[%s37 + $0x3418] sm:$0xff]
        %3374 = vst [vmem:[%s38 + $0x3418] sm:$0xff] %v3373
        %v3375 = vld [vmem:[%s37 + $0x3420] sm:$0xff]
        %3376 = vst [vmem:[%s38 + $0x3420] sm:$0xff] %v3375
        %v3377 = vld [vmem:[%s37 + $0x3428] sm:$0xff]
        %3378 = vst [vmem:[%s38 + $0x3428] sm:$0xff] %v3377
        %v3379 = vld [vmem:[%s37 + $0x3430] sm:$0xff]
        %3380 = vst [vmem:[%s38 + $0x3430] sm:$0xff] %v3379
        %v3381 = vld [vmem:[%s37 + $0x3438] sm:$0xff]
        %3382 = vst [vmem:[%s38 + $0x3438] sm:$0xff] %v3381
        %v3383 = vld [vmem:[%s37 + $0x3440] sm:$0xff]
        %3384 = vst [vmem:[%s38 + $0x3440] sm:$0xff] %v3383
        %v3385 = vld [vmem:[%s37 + $0x3448] sm:$0xff]
        %3386 = vst [vmem:[%s38 + $0x3448] sm:$0xff] %v3385
        %v3387 = vld [vmem:[%s37 + $0x3450] sm:$0xff]
        %3388 = vst [vmem:[%s38 + $0x3450] sm:$0xff] %v3387
        %v3389 = vld [vmem:[%s37 + $0x3458] sm:$0xff]
        %3390 = vst [vmem:[%s38 + $0x3458] sm:$0xff] %v3389
        %v3391 = vld [vmem:[%s37 + $0x3460] sm:$0xff]
        %3392 = vst [vmem:[%s38 + $0x3460] sm:$0xff] %v3391
        %v3393 = vld [vmem:[%s37 + $0x3468] sm:$0xff]
        %3394 = vst [vmem:[%s38 + $0x3468] sm:$0xff] %v3393
        %v3395 = vld [vmem:[%s37 + $0x3470] sm:$0xff]
        %3396 = vst [vmem:[%s38 + $0x3470] sm:$0xff] %v3395
        %v3397 = vld [vmem:[%s37 + $0x3478] sm:$0xff]
        %3398 = vst [vmem:[%s38 + $0x3478] sm:$0xff] %v3397
        %v3399 = vld [vmem:[%s37 + $0x3480] sm:$0xff]
        %3400 = vst [vmem:[%s38 + $0x3480] sm:$0xff] %v3399
        %v3401 = vld [vmem:[%s37 + $0x3488] sm:$0xff]
        %3402 = vst [vmem:[%s38 + $0x3488] sm:$0xff] %v3401
        %v3403 = vld [vmem:[%s37 + $0x3490] sm:$0xff]
        %3404 = vst [vmem:[%s38 + $0x3490] sm:$0xff] %v3403
        %v3405 = vld [vmem:[%s37 + $0x3498] sm:$0xff]
        %3406 = vst [vmem:[%s38 + $0x3498] sm:$0xff] %v3405
        %v3407 = vld [vmem:[%s37 + $0x34a0] sm:$0xff]
        %3408 = vst [vmem:[%s38 + $0x34a0] sm:$0xff] %v3407
        %v3409 = vld [vmem:[%s37 + $0x34a8] sm:$0xff]
        %3410 = vst [vmem:[%s38 + $0x34a8] sm:$0xff] %v3409
        %v3411 = vld [vmem:[%s37 + $0x34b0] sm:$0xff]
        %3412 = vst [vmem:[%s38 + $0x34b0] sm:$0xff] %v3411
        %v3413 = vld [vmem:[%s37 + $0x34b8] sm:$0xff]
        %3414 = vst [vmem:[%s38 + $0x34b8] sm:$0xff] %v3413
        %v3415 = vld [vmem:[%s37 + $0x34c0] sm:$0xff]
        %3416 = vst [vmem:[%s38 + $0x34c0] sm:$0xff] %v3415
        %v3417 = vld [vmem:[%s37 + $0x34c8] sm:$0xff]
        %3418 = vst [vmem:[%s38 + $0x34c8] sm:$0xff] %v3417
        %v3419 = vld [vmem:[%s37 + $0x34d0] sm:$0xff]
        %3420 = vst [vmem:[%s38 + $0x34d0] sm:$0xff] %v3419
        %v3421 = vld [vmem:[%s37 + $0x34d8] sm:$0xff]
        %3422 = vst [vmem:[%s38 + $0x34d8] sm:$0xff] %v3421
        %v3423 = vld [vmem:[%s37 + $0x34e0] sm:$0xff]
        %3424 = vst [vmem:[%s38 + $0x34e0] sm:$0xff] %v3423
        %v3425 = vld [vmem:[%s37 + $0x34e8] sm:$0xff]
        %3426 = vst [vmem:[%s38 + $0x34e8] sm:$0xff] %v3425
        %v3427 = vld [vmem:[%s37 + $0x34f0] sm:$0xff]
        %3428 = vst [vmem:[%s38 + $0x34f0] sm:$0xff] %v3427
        %v3429 = vld [vmem:[%s37 + $0x34f8] sm:$0xff]
        %3430 = vst [vmem:[%s38 + $0x34f8] sm:$0xff] %v3429
        %v3431 = vld [vmem:[%s37 + $0x3500] sm:$0xff]
        %3432 = vst [vmem:[%s38 + $0x3500] sm:$0xff] %v3431
        %v3433 = vld [vmem:[%s37 + $0x3508] sm:$0xff]
        %3434 = vst [vmem:[%s38 + $0x3508] sm:$0xff] %v3433
        %v3435 = vld [vmem:[%s37 + $0x3510] sm:$0xff]
        %3436 = vst [vmem:[%s38 + $0x3510] sm:$0xff] %v3435
        %v3437 = vld [vmem:[%s37 + $0x3518] sm:$0xff]
        %3438 = vst [vmem:[%s38 + $0x3518] sm:$0xff] %v3437
        %v3439 = vld [vmem:[%s37 + $0x3520] sm:$0xff]
        %3440 = vst [vmem:[%s38 + $0x3520] sm:$0xff] %v3439
        %v3441 = vld [vmem:[%s37 + $0x3528] sm:$0xff]
        %3442 = vst [vmem:[%s38 + $0x3528] sm:$0xff] %v3441
        %v3443 = vld [vmem:[%s37 + $0x3530] sm:$0xff]
        %3444 = vst [vmem:[%s38 + $0x3530] sm:$0xff] %v3443
        %v3445 = vld [vmem:[%s37 + $0x3538] sm:$0xff]
        %3446 = vst [vmem:[%s38 + $0x3538] sm:$0xff] %v3445
        %v3447 = vld [vmem:[%s37 + $0x3540] sm:$0xff]
        %3448 = vst [vmem:[%s38 + $0x3540] sm:$0xff] %v3447
        %v3449 = vld [vmem:[%s37 + $0x3548] sm:$0xff]
        %3450 = vst [vmem:[%s38 + $0x3548] sm:$0xff] %v3449
        %v3451 = vld [vmem:[%s37 + $0x3550] sm:$0xff]
        %3452 = vst [vmem:[%s38 + $0x3550] sm:$0xff] %v3451
        %v3453 = vld [vmem:[%s37 + $0x3558] sm:$0xff]
        %3454 = vst [vmem:[%s38 + $0x3558] sm:$0xff] %v3453
        %v3455 = vld [vmem:[%s37 + $0x3560] sm:$0xff]
        %3456 = vst [vmem:[%s38 + $0x3560] sm:$0xff] %v3455
        %v3457 = vld [vmem:[%s37 + $0x3568] sm:$0xff]
        %3458 = vst [vmem:[%s38 + $0x3568] sm:$0xff] %v3457
        %v3459 = vld [vmem:[%s37 + $0x3570] sm:$0xff]
        %3460 = vst [vmem:[%s38 + $0x3570] sm:$0xff] %v3459
        %v3461 = vld [vmem:[%s37 + $0x3578] sm:$0xff]
        %3462 = vst [vmem:[%s38 + $0x3578] sm:$0xff] %v3461
        %v3463 = vld [vmem:[%s37 + $0x3580] sm:$0xff]
        %3464 = vst [vmem:[%s38 + $0x3580] sm:$0xff] %v3463
        %v3465 = vld [vmem:[%s37 + $0x3588] sm:$0xff]
        %3466 = vst [vmem:[%s38 + $0x3588] sm:$0xff] %v3465
        %v3467 = vld [vmem:[%s37 + $0x3590] sm:$0xff]
        %3468 = vst [vmem:[%s38 + $0x3590] sm:$0xff] %v3467
        %v3469 = vld [vmem:[%s37 + $0x3598] sm:$0xff]
        %3470 = vst [vmem:[%s38 + $0x3598] sm:$0xff] %v3469
        %v3471 = vld [vmem:[%s37 + $0x35a0] sm:$0xff]
        %3472 = vst [vmem:[%s38 + $0x35a0] sm:$0xff] %v3471
        %v3473 = vld [vmem:[%s37 + $0x35a8] sm:$0xff]
        %3474 = vst [vmem:[%s38 + $0x35a8] sm:$0xff] %v3473
        %v3475 = vld [vmem:[%s37 + $0x35b0] sm:$0xff]
        %3476 = vst [vmem:[%s38 + $0x35b0] sm:$0xff] %v3475
        %v3477 = vld [vmem:[%s37 + $0x35b8] sm:$0xff]
        %3478 = vst [vmem:[%s38 + $0x35b8] sm:$0xff] %v3477
        %v3479 = vld [vmem:[%s37 + $0x35c0] sm:$0xff]
        %3480 = vst [vmem:[%s38 + $0x35c0] sm:$0xff] %v3479
        %v3481 = vld [vmem:[%s37 + $0x35c8] sm:$0xff]
        %3482 = vst [vmem:[%s38 + $0x35c8] sm:$0xff] %v3481
        %v3483 = vld [vmem:[%s37 + $0x35d0] sm:$0xff]
        %3484 = vst [vmem:[%s38 + $0x35d0] sm:$0xff] %v3483
        %v3485 = vld [vmem:[%s37 + $0x35d8] sm:$0xff]
        %3486 = vst [vmem:[%s38 + $0x35d8] sm:$0xff] %v3485
        %v3487 = vld [vmem:[%s37 + $0x35e0] sm:$0xff]
        %3488 = vst [vmem:[%s38 + $0x35e0] sm:$0xff] %v3487
        %v3489 = vld [vmem:[%s37 + $0x35e8] sm:$0xff]
        %3490 = vst [vmem:[%s38 + $0x35e8] sm:$0xff] %v3489
        %v3491 = vld [vmem:[%s37 + $0x35f0] sm:$0xff]
        %3492 = vst [vmem:[%s38 + $0x35f0] sm:$0xff] %v3491
        %v3493 = vld [vmem:[%s37 + $0x35f8] sm:$0xff]
        %3494 = vst [vmem:[%s38 + $0x35f8] sm:$0xff] %v3493
        %v3495 = vld [vmem:[%s37 + $0x3600] sm:$0xff]
        %3496 = vst [vmem:[%s38 + $0x3600] sm:$0xff] %v3495
        %v3497 = vld [vmem:[%s37 + $0x3608] sm:$0xff]
        %3498 = vst [vmem:[%s38 + $0x3608] sm:$0xff] %v3497
        %v3499 = vld [vmem:[%s37 + $0x3610] sm:$0xff]
        %3500 = vst [vmem:[%s38 + $0x3610] sm:$0xff] %v3499
        %v3501 = vld [vmem:[%s37 + $0x3618] sm:$0xff]
        %3502 = vst [vmem:[%s38 + $0x3618] sm:$0xff] %v3501
        %v3503 = vld [vmem:[%s37 + $0x3620] sm:$0xff]
        %3504 = vst [vmem:[%s38 + $0x3620] sm:$0xff] %v3503
        %v3505 = vld [vmem:[%s37 + $0x3628] sm:$0xff]
        %3506 = vst [vmem:[%s38 + $0x3628] sm:$0xff] %v3505
        %v3507 = vld [vmem:[%s37 + $0x3630] sm:$0xff]
        %3508 = vst [vmem:[%s38 + $0x3630] sm:$0xff] %v3507
        %v3509 = vld [vmem:[%s37 + $0x3638] sm:$0xff]
        %3510 = vst [vmem:[%s38 + $0x3638] sm:$0xff] %v3509
        %v3511 = vld [vmem:[%s37 + $0x3640] sm:$0xff]
        %3512 = vst [vmem:[%s38 + $0x3640] sm:$0xff] %v3511
        %v3513 = vld [vmem:[%s37 + $0x3648] sm:$0xff]
        %3514 = vst [vmem:[%s38 + $0x3648] sm:$0xff] %v3513
        %v3515 = vld [vmem:[%s37 + $0x3650] sm:$0xff]
        %3516 = vst [vmem:[%s38 + $0x3650] sm:$0xff] %v3515
        %v3517 = vld [vmem:[%s37 + $0x3658] sm:$0xff]
        %3518 = vst [vmem:[%s38 + $0x3658] sm:$0xff] %v3517
        %v3519 = vld [vmem:[%s37 + $0x3660] sm:$0xff]
        %3520 = vst [vmem:[%s38 + $0x3660] sm:$0xff] %v3519
        %v3521 = vld [vmem:[%s37 + $0x3668] sm:$0xff]
        %3522 = vst [vmem:[%s38 + $0x3668] sm:$0xff] %v3521
        %v3523 = vld [vmem:[%s37 + $0x3670] sm:$0xff]
        %3524 = vst [vmem:[%s38 + $0x3670] sm:$0xff] %v3523
        %v3525 = vld [vmem:[%s37 + $0x3678] sm:$0xff]
        %3526 = vst [vmem:[%s38 + $0x3678] sm:$0xff] %v3525
        %v3527 = vld [vmem:[%s37 + $0x3680] sm:$0xff]
        %3528 = vst [vmem:[%s38 + $0x3680] sm:$0xff] %v3527
        %v3529 = vld [vmem:[%s37 + $0x3688] sm:$0xff]
        %3530 = vst [vmem:[%s38 + $0x3688] sm:$0xff] %v3529
        %v3531 = vld [vmem:[%s37 + $0x3690] sm:$0xff]
        %3532 = vst [vmem:[%s38 + $0x3690] sm:$0xff] %v3531
        %v3533 = vld [vmem:[%s37 + $0x3698] sm:$0xff]
        %3534 = vst [vmem:[%s38 + $0x3698] sm:$0xff] %v3533
        %v3535 = vld [vmem:[%s37 + $0x36a0] sm:$0xff]
        %3536 = vst [vmem:[%s38 + $0x36a0] sm:$0xff] %v3535
        %v3537 = vld [vmem:[%s37 + $0x36a8] sm:$0xff]
        %3538 = vst [vmem:[%s38 + $0x36a8] sm:$0xff] %v3537
        %v3539 = vld [vmem:[%s37 + $0x36b0] sm:$0xff]
        %3540 = vst [vmem:[%s38 + $0x36b0] sm:$0xff] %v3539
        %v3541 = vld [vmem:[%s37 + $0x36b8] sm:$0xff]
        %3542 = vst [vmem:[%s38 + $0x36b8] sm:$0xff] %v3541
        %v3543 = vld [vmem:[%s37 + $0x36c0] sm:$0xff]
        %3544 = vst [vmem:[%s38 + $0x36c0] sm:$0xff] %v3543
        %v3545 = vld [vmem:[%s37 + $0x36c8] sm:$0xff]
        %3546 = vst [vmem:[%s38 + $0x36c8] sm:$0xff] %v3545
        %v3547 = vld [vmem:[%s37 + $0x36d0] sm:$0xff]
        %3548 = vst [vmem:[%s38 + $0x36d0] sm:$0xff] %v3547
        %v3549 = vld [vmem:[%s37 + $0x36d8] sm:$0xff]
        %3550 = vst [vmem:[%s38 + $0x36d8] sm:$0xff] %v3549
        %v3551 = vld [vmem:[%s37 + $0x36e0] sm:$0xff]
        %3552 = vst [vmem:[%s38 + $0x36e0] sm:$0xff] %v3551
        %v3553 = vld [vmem:[%s37 + $0x36e8] sm:$0xff]
        %3554 = vst [vmem:[%s38 + $0x36e8] sm:$0xff] %v3553
        %v3555 = vld [vmem:[%s37 + $0x36f0] sm:$0xff]
        %3556 = vst [vmem:[%s38 + $0x36f0] sm:$0xff] %v3555
        %v3557 = vld [vmem:[%s37 + $0x36f8] sm:$0xff]
        %3558 = vst [vmem:[%s38 + $0x36f8] sm:$0xff] %v3557
        %v3559 = vld [vmem:[%s37 + $0x3700] sm:$0xff]
        %3560 = vst [vmem:[%s38 + $0x3700] sm:$0xff] %v3559
        %v3561 = vld [vmem:[%s37 + $0x3708] sm:$0xff]
        %3562 = vst [vmem:[%s38 + $0x3708] sm:$0xff] %v3561
        %v3563 = vld [vmem:[%s37 + $0x3710] sm:$0xff]
        %3564 = vst [vmem:[%s38 + $0x3710] sm:$0xff] %v3563
        %v3565 = vld [vmem:[%s37 + $0x3718] sm:$0xff]
        %3566 = vst [vmem:[%s38 + $0x3718] sm:$0xff] %v3565
        %v3567 = vld [vmem:[%s37 + $0x3720] sm:$0xff]
        %3568 = vst [vmem:[%s38 + $0x3720] sm:$0xff] %v3567
        %v3569 = vld [vmem:[%s37 + $0x3728] sm:$0xff]
        %3570 = vst [vmem:[%s38 + $0x3728] sm:$0xff] %v3569
        %v3571 = vld [vmem:[%s37 + $0x3730] sm:$0xff]
        %3572 = vst [vmem:[%s38 + $0x3730] sm:$0xff] %v3571
        %v3573 = vld [vmem:[%s37 + $0x3738] sm:$0xff]
        %3574 = vst [vmem:[%s38 + $0x3738] sm:$0xff] %v3573
        %v3575 = vld [vmem:[%s37 + $0x3740] sm:$0xff]
        %3576 = vst [vmem:[%s38 + $0x3740] sm:$0xff] %v3575
        %v3577 = vld [vmem:[%s37 + $0x3748] sm:$0xff]
        %3578 = vst [vmem:[%s38 + $0x3748] sm:$0xff] %v3577
        %v3579 = vld [vmem:[%s37 + $0x3750] sm:$0xff]
        %3580 = vst [vmem:[%s38 + $0x3750] sm:$0xff] %v3579
        %v3581 = vld [vmem:[%s37 + $0x3758] sm:$0xff]
        %3582 = vst [vmem:[%s38 + $0x3758] sm:$0xff] %v3581
        %v3583 = vld [vmem:[%s37 + $0x3760] sm:$0xff]
        %3584 = vst [vmem:[%s38 + $0x3760] sm:$0xff] %v3583
        %v3585 = vld [vmem:[%s37 + $0x3768] sm:$0xff]
        %3586 = vst [vmem:[%s38 + $0x3768] sm:$0xff] %v3585
        %v3587 = vld [vmem:[%s37 + $0x3770] sm:$0xff]
        %3588 = vst [vmem:[%s38 + $0x3770] sm:$0xff] %v3587
        %v3589 = vld [vmem:[%s37 + $0x3778] sm:$0xff]
        %3590 = vst [vmem:[%s38 + $0x3778] sm:$0xff] %v3589
        %v3591 = vld [vmem:[%s37 + $0x3780] sm:$0xff]
        %3592 = vst [vmem:[%s38 + $0x3780] sm:$0xff] %v3591
        %v3593 = vld [vmem:[%s37 + $0x3788] sm:$0xff]
        %3594 = vst [vmem:[%s38 + $0x3788] sm:$0xff] %v3593
        %v3595 = vld [vmem:[%s37 + $0x3790] sm:$0xff]
        %3596 = vst [vmem:[%s38 + $0x3790] sm:$0xff] %v3595
        %v3597 = vld [vmem:[%s37 + $0x3798] sm:$0xff]
        %3598 = vst [vmem:[%s38 + $0x3798] sm:$0xff] %v3597
        %v3599 = vld [vmem:[%s37 + $0x37a0] sm:$0xff]
        %3600 = vst [vmem:[%s38 + $0x37a0] sm:$0xff] %v3599
        %v3601 = vld [vmem:[%s37 + $0x37a8] sm:$0xff]
        %3602 = vst [vmem:[%s38 + $0x37a8] sm:$0xff] %v3601
        %v3603 = vld [vmem:[%s37 + $0x37b0] sm:$0xff]
        %3604 = vst [vmem:[%s38 + $0x37b0] sm:$0xff] %v3603
        %v3605 = vld [vmem:[%s37 + $0x37b8] sm:$0xff]
        %3606 = vst [vmem:[%s38 + $0x37b8] sm:$0xff] %v3605
        %v3607 = vld [vmem:[%s37 + $0x37c0] sm:$0xff]
        %3608 = vst [vmem:[%s38 + $0x37c0] sm:$0xff] %v3607
        %v3609 = vld [vmem:[%s37 + $0x37c8] sm:$0xff]
        %3610 = vst [vmem:[%s38 + $0x37c8] sm:$0xff] %v3609
        %v3611 = vld [vmem:[%s37 + $0x37d0] sm:$0xff]
        %3612 = vst [vmem:[%s38 + $0x37d0] sm:$0xff] %v3611
        %v3613 = vld [vmem:[%s37 + $0x37d8] sm:$0xff]
        %3614 = vst [vmem:[%s38 + $0x37d8] sm:$0xff] %v3613
        %v3615 = vld [vmem:[%s37 + $0x37e0] sm:$0xff]
        %3616 = vst [vmem:[%s38 + $0x37e0] sm:$0xff] %v3615
        %v3617 = vld [vmem:[%s37 + $0x37e8] sm:$0xff]
        %3618 = vst [vmem:[%s38 + $0x37e8] sm:$0xff] %v3617
        %v3619 = vld [vmem:[%s37 + $0x37f0] sm:$0xff]
        %3620 = vst [vmem:[%s38 + $0x37f0] sm:$0xff] %v3619
        %v3621 = vld [vmem:[%s37 + $0x37f8] sm:$0xff]
        %3622 = vst [vmem:[%s38 + $0x37f8] sm:$0xff] %v3621
        %v3623 = vld [vmem:[%s37 + $0x3800] sm:$0xff]
        %3624 = vst [vmem:[%s38 + $0x3800] sm:$0xff] %v3623
        %v3625 = vld [vmem:[%s37 + $0x3808] sm:$0xff]
        %3626 = vst [vmem:[%s38 + $0x3808] sm:$0xff] %v3625
        %v3627 = vld [vmem:[%s37 + $0x3810] sm:$0xff]
        %3628 = vst [vmem:[%s38 + $0x3810] sm:$0xff] %v3627
        %v3629 = vld [vmem:[%s37 + $0x3818] sm:$0xff]
        %3630 = vst [vmem:[%s38 + $0x3818] sm:$0xff] %v3629
        %v3631 = vld [vmem:[%s37 + $0x3820] sm:$0xff]
        %3632 = vst [vmem:[%s38 + $0x3820] sm:$0xff] %v3631
        %v3633 = vld [vmem:[%s37 + $0x3828] sm:$0xff]
        %3634 = vst [vmem:[%s38 + $0x3828] sm:$0xff] %v3633
        %v3635 = vld [vmem:[%s37 + $0x3830] sm:$0xff]
        %3636 = vst [vmem:[%s38 + $0x3830] sm:$0xff] %v3635
        %v3637 = vld [vmem:[%s37 + $0x3838] sm:$0xff]
        %3638 = vst [vmem:[%s38 + $0x3838] sm:$0xff] %v3637
        %v3639 = vld [vmem:[%s37 + $0x3840] sm:$0xff]
        %3640 = vst [vmem:[%s38 + $0x3840] sm:$0xff] %v3639
        %v3641 = vld [vmem:[%s37 + $0x3848] sm:$0xff]
        %3642 = vst [vmem:[%s38 + $0x3848] sm:$0xff] %v3641
        %v3643 = vld [vmem:[%s37 + $0x3850] sm:$0xff]
        %3644 = vst [vmem:[%s38 + $0x3850] sm:$0xff] %v3643
        %v3645 = vld [vmem:[%s37 + $0x3858] sm:$0xff]
        %3646 = vst [vmem:[%s38 + $0x3858] sm:$0xff] %v3645
        %v3647 = vld [vmem:[%s37 + $0x3860] sm:$0xff]
        %3648 = vst [vmem:[%s38 + $0x3860] sm:$0xff] %v3647
        %v3649 = vld [vmem:[%s37 + $0x3868] sm:$0xff]
        %3650 = vst [vmem:[%s38 + $0x3868] sm:$0xff] %v3649
        %v3651 = vld [vmem:[%s37 + $0x3870] sm:$0xff]
        %3652 = vst [vmem:[%s38 + $0x3870] sm:$0xff] %v3651
        %v3653 = vld [vmem:[%s37 + $0x3878] sm:$0xff]
        %3654 = vst [vmem:[%s38 + $0x3878] sm:$0xff] %v3653
        %v3655 = vld [vmem:[%s37 + $0x3880] sm:$0xff]
        %3656 = vst [vmem:[%s38 + $0x3880] sm:$0xff] %v3655
        %v3657 = vld [vmem:[%s37 + $0x3888] sm:$0xff]
        %3658 = vst [vmem:[%s38 + $0x3888] sm:$0xff] %v3657
        %v3659 = vld [vmem:[%s37 + $0x3890] sm:$0xff]
        %3660 = vst [vmem:[%s38 + $0x3890] sm:$0xff] %v3659
        %v3661 = vld [vmem:[%s37 + $0x3898] sm:$0xff]
        %3662 = vst [vmem:[%s38 + $0x3898] sm:$0xff] %v3661
        %v3663 = vld [vmem:[%s37 + $0x38a0] sm:$0xff]
        %3664 = vst [vmem:[%s38 + $0x38a0] sm:$0xff] %v3663
        %v3665 = vld [vmem:[%s37 + $0x38a8] sm:$0xff]
        %3666 = vst [vmem:[%s38 + $0x38a8] sm:$0xff] %v3665
        %v3667 = vld [vmem:[%s37 + $0x38b0] sm:$0xff]
        %3668 = vst [vmem:[%s38 + $0x38b0] sm:$0xff] %v3667
        %v3669 = vld [vmem:[%s37 + $0x38b8] sm:$0xff]
        %3670 = vst [vmem:[%s38 + $0x38b8] sm:$0xff] %v3669
        %v3671 = vld [vmem:[%s37 + $0x38c0] sm:$0xff]
        %3672 = vst [vmem:[%s38 + $0x38c0] sm:$0xff] %v3671
        %v3673 = vld [vmem:[%s37 + $0x38c8] sm:$0xff]
        %3674 = vst [vmem:[%s38 + $0x38c8] sm:$0xff] %v3673
        %v3675 = vld [vmem:[%s37 + $0x38d0] sm:$0xff]
        %3676 = vst [vmem:[%s38 + $0x38d0] sm:$0xff] %v3675
        %v3677 = vld [vmem:[%s37 + $0x38d8] sm:$0xff]
        %3678 = vst [vmem:[%s38 + $0x38d8] sm:$0xff] %v3677
        %v3679 = vld [vmem:[%s37 + $0x38e0] sm:$0xff]
        %3680 = vst [vmem:[%s38 + $0x38e0] sm:$0xff] %v3679
        %v3681 = vld [vmem:[%s37 + $0x38e8] sm:$0xff]
        %3682 = vst [vmem:[%s38 + $0x38e8] sm:$0xff] %v3681
        %v3683 = vld [vmem:[%s37 + $0x38f0] sm:$0xff]
        %3684 = vst [vmem:[%s38 + $0x38f0] sm:$0xff] %v3683
        %v3685 = vld [vmem:[%s37 + $0x38f8] sm:$0xff]
        %3686 = vst [vmem:[%s38 + $0x38f8] sm:$0xff] %v3685
        %v3687 = vld [vmem:[%s37 + $0x3900] sm:$0xff]
        %3688 = vst [vmem:[%s38 + $0x3900] sm:$0xff] %v3687
        %v3689 = vld [vmem:[%s37 + $0x3908] sm:$0xff]
        %3690 = vst [vmem:[%s38 + $0x3908] sm:$0xff] %v3689
        %v3691 = vld [vmem:[%s37 + $0x3910] sm:$0xff]
        %3692 = vst [vmem:[%s38 + $0x3910] sm:$0xff] %v3691
        %v3693 = vld [vmem:[%s37 + $0x3918] sm:$0xff]
        %3694 = vst [vmem:[%s38 + $0x3918] sm:$0xff] %v3693
        %v3695 = vld [vmem:[%s37 + $0x3920] sm:$0xff]
        %3696 = vst [vmem:[%s38 + $0x3920] sm:$0xff] %v3695
        %v3697 = vld [vmem:[%s37 + $0x3928] sm:$0xff]
        %3698 = vst [vmem:[%s38 + $0x3928] sm:$0xff] %v3697
        %v3699 = vld [vmem:[%s37 + $0x3930] sm:$0xff]
        %3700 = vst [vmem:[%s38 + $0x3930] sm:$0xff] %v3699
        %v3701 = vld [vmem:[%s37 + $0x3938] sm:$0xff]
        %3702 = vst [vmem:[%s38 + $0x3938] sm:$0xff] %v3701
        %v3703 = vld [vmem:[%s37 + $0x3940] sm:$0xff]
        %3704 = vst [vmem:[%s38 + $0x3940] sm:$0xff] %v3703
        %v3705 = vld [vmem:[%s37 + $0x3948] sm:$0xff]
        %3706 = vst [vmem:[%s38 + $0x3948] sm:$0xff] %v3705
        %v3707 = vld [vmem:[%s37 + $0x3950] sm:$0xff]
        %3708 = vst [vmem:[%s38 + $0x3950] sm:$0xff] %v3707
        %v3709 = vld [vmem:[%s37 + $0x3958] sm:$0xff]
        %3710 = vst [vmem:[%s38 + $0x3958] sm:$0xff] %v3709
        %v3711 = vld [vmem:[%s37 + $0x3960] sm:$0xff]
        %3712 = vst [vmem:[%s38 + $0x3960] sm:$0xff] %v3711
        %v3713 = vld [vmem:[%s37 + $0x3968] sm:$0xff]
        %3714 = vst [vmem:[%s38 + $0x3968] sm:$0xff] %v3713
        %v3715 = vld [vmem:[%s37 + $0x3970] sm:$0xff]
        %3716 = vst [vmem:[%s38 + $0x3970] sm:$0xff] %v3715
        %v3717 = vld [vmem:[%s37 + $0x3978] sm:$0xff]
        %3718 = vst [vmem:[%s38 + $0x3978] sm:$0xff] %v3717
        %v3719 = vld [vmem:[%s37 + $0x3980] sm:$0xff]
        %3720 = vst [vmem:[%s38 + $0x3980] sm:$0xff] %v3719
        %v3721 = vld [vmem:[%s37 + $0x3988] sm:$0xff]
        %3722 = vst [vmem:[%s38 + $0x3988] sm:$0xff] %v3721
        %v3723 = vld [vmem:[%s37 + $0x3990] sm:$0xff]
        %3724 = vst [vmem:[%s38 + $0x3990] sm:$0xff] %v3723
        %v3725 = vld [vmem:[%s37 + $0x3998] sm:$0xff]
        %3726 = vst [vmem:[%s38 + $0x3998] sm:$0xff] %v3725
        %v3727 = vld [vmem:[%s37 + $0x39a0] sm:$0xff]
        %3728 = vst [vmem:[%s38 + $0x39a0] sm:$0xff] %v3727
        %v3729 = vld [vmem:[%s37 + $0x39a8] sm:$0xff]
        %3730 = vst [vmem:[%s38 + $0x39a8] sm:$0xff] %v3729
        %v3731 = vld [vmem:[%s37 + $0x39b0] sm:$0xff]
        %3732 = vst [vmem:[%s38 + $0x39b0] sm:$0xff] %v3731
        %v3733 = vld [vmem:[%s37 + $0x39b8] sm:$0xff]
        %3734 = vst [vmem:[%s38 + $0x39b8] sm:$0xff] %v3733
        %v3735 = vld [vmem:[%s37 + $0x39c0] sm:$0xff]
        %3736 = vst [vmem:[%s38 + $0x39c0] sm:$0xff] %v3735
        %v3737 = vld [vmem:[%s37 + $0x39c8] sm:$0xff]
        %3738 = vst [vmem:[%s38 + $0x39c8] sm:$0xff] %v3737
        %v3739 = vld [vmem:[%s37 + $0x39d0] sm:$0xff]
        %3740 = vst [vmem:[%s38 + $0x39d0] sm:$0xff] %v3739
        %v3741 = vld [vmem:[%s37 + $0x39d8] sm:$0xff]
        %3742 = vst [vmem:[%s38 + $0x39d8] sm:$0xff] %v3741
        %v3743 = vld [vmem:[%s37 + $0x39e0] sm:$0xff]
        %3744 = vst [vmem:[%s38 + $0x39e0] sm:$0xff] %v3743
        %v3745 = vld [vmem:[%s37 + $0x39e8] sm:$0xff]
        %3746 = vst [vmem:[%s38 + $0x39e8] sm:$0xff] %v3745
        %v3747 = vld [vmem:[%s37 + $0x39f0] sm:$0xff]
        %3748 = vst [vmem:[%s38 + $0x39f0] sm:$0xff] %v3747
        %v3749 = vld [vmem:[%s37 + $0x39f8] sm:$0xff]
        %3750 = vst [vmem:[%s38 + $0x39f8] sm:$0xff] %v3749
        %v3751 = vld [vmem:[%s37 + $0x3a00] sm:$0xff]
        %3752 = vst [vmem:[%s38 + $0x3a00] sm:$0xff] %v3751
        %v3753 = vld [vmem:[%s37 + $0x3a08] sm:$0xff]
        %3754 = vst [vmem:[%s38 + $0x3a08] sm:$0xff] %v3753
        %v3755 = vld [vmem:[%s37 + $0x3a10] sm:$0xff]
        %3756 = vst [vmem:[%s38 + $0x3a10] sm:$0xff] %v3755
        %v3757 = vld [vmem:[%s37 + $0x3a18] sm:$0xff]
        %3758 = vst [vmem:[%s38 + $0x3a18] sm:$0xff] %v3757
        %v3759 = vld [vmem:[%s37 + $0x3a20] sm:$0xff]
        %3760 = vst [vmem:[%s38 + $0x3a20] sm:$0xff] %v3759
        %v3761 = vld [vmem:[%s37 + $0x3a28] sm:$0xff]
        %3762 = vst [vmem:[%s38 + $0x3a28] sm:$0xff] %v3761
        %v3763 = vld [vmem:[%s37 + $0x3a30] sm:$0xff]
        %3764 = vst [vmem:[%s38 + $0x3a30] sm:$0xff] %v3763
        %v3765 = vld [vmem:[%s37 + $0x3a38] sm:$0xff]
        %3766 = vst [vmem:[%s38 + $0x3a38] sm:$0xff] %v3765
        %v3767 = vld [vmem:[%s37 + $0x3a40] sm:$0xff]
        %3768 = vst [vmem:[%s38 + $0x3a40] sm:$0xff] %v3767
        %v3769 = vld [vmem:[%s37 + $0x3a48] sm:$0xff]
        %3770 = vst [vmem:[%s38 + $0x3a48] sm:$0xff] %v3769
        %v3771 = vld [vmem:[%s37 + $0x3a50] sm:$0xff]
        %3772 = vst [vmem:[%s38 + $0x3a50] sm:$0xff] %v3771
        %v3773 = vld [vmem:[%s37 + $0x3a58] sm:$0xff]
        %3774 = vst [vmem:[%s38 + $0x3a58] sm:$0xff] %v3773
        %v3775 = vld [vmem:[%s37 + $0x3a60] sm:$0xff]
        %3776 = vst [vmem:[%s38 + $0x3a60] sm:$0xff] %v3775
        %v3777 = vld [vmem:[%s37 + $0x3a68] sm:$0xff]
        %3778 = vst [vmem:[%s38 + $0x3a68] sm:$0xff] %v3777
        %v3779 = vld [vmem:[%s37 + $0x3a70] sm:$0xff]
        %3780 = vst [vmem:[%s38 + $0x3a70] sm:$0xff] %v3779
        %v3781 = vld [vmem:[%s37 + $0x3a78] sm:$0xff]
        %3782 = vst [vmem:[%s38 + $0x3a78] sm:$0xff] %v3781
        %v3783 = vld [vmem:[%s37 + $0x3a80] sm:$0xff]
        %3784 = vst [vmem:[%s38 + $0x3a80] sm:$0xff] %v3783
        %v3785 = vld [vmem:[%s37 + $0x3a88] sm:$0xff]
        %3786 = vst [vmem:[%s38 + $0x3a88] sm:$0xff] %v3785
        %v3787 = vld [vmem:[%s37 + $0x3a90] sm:$0xff]
        %3788 = vst [vmem:[%s38 + $0x3a90] sm:$0xff] %v3787
        %v3789 = vld [vmem:[%s37 + $0x3a98] sm:$0xff]
        %3790 = vst [vmem:[%s38 + $0x3a98] sm:$0xff] %v3789
        %v3791 = vld [vmem:[%s37 + $0x3aa0] sm:$0xff]
        %3792 = vst [vmem:[%s38 + $0x3aa0] sm:$0xff] %v3791
        %v3793 = vld [vmem:[%s37 + $0x3aa8] sm:$0xff]
        %3794 = vst [vmem:[%s38 + $0x3aa8] sm:$0xff] %v3793
        %v3795 = vld [vmem:[%s37 + $0x3ab0] sm:$0xff]
        %3796 = vst [vmem:[%s38 + $0x3ab0] sm:$0xff] %v3795
        %v3797 = vld [vmem:[%s37 + $0x3ab8] sm:$0xff]
        %3798 = vst [vmem:[%s38 + $0x3ab8] sm:$0xff] %v3797
        %v3799 = vld [vmem:[%s37 + $0x3ac0] sm:$0xff]
        %3800 = vst [vmem:[%s38 + $0x3ac0] sm:$0xff] %v3799
        %v3801 = vld [vmem:[%s37 + $0x3ac8] sm:$0xff]
        %3802 = vst [vmem:[%s38 + $0x3ac8] sm:$0xff] %v3801
        %v3803 = vld [vmem:[%s37 + $0x3ad0] sm:$0xff]
        %3804 = vst [vmem:[%s38 + $0x3ad0] sm:$0xff] %v3803
        %v3805 = vld [vmem:[%s37 + $0x3ad8] sm:$0xff]
        %3806 = vst [vmem:[%s38 + $0x3ad8] sm:$0xff] %v3805
        %v3807 = vld [vmem:[%s37 + $0x3ae0] sm:$0xff]
        %3808 = vst [vmem:[%s38 + $0x3ae0] sm:$0xff] %v3807
        %v3809 = vld [vmem:[%s37 + $0x3ae8] sm:$0xff]
        %3810 = vst [vmem:[%s38 + $0x3ae8] sm:$0xff] %v3809
        %v3811 = vld [vmem:[%s37 + $0x3af0] sm:$0xff]
        %3812 = vst [vmem:[%s38 + $0x3af0] sm:$0xff] %v3811
        %v3813 = vld [vmem:[%s37 + $0x3af8] sm:$0xff]
        %3814 = vst [vmem:[%s38 + $0x3af8] sm:$0xff] %v3813
        %v3815 = vld [vmem:[%s37 + $0x3b00] sm:$0xff]
        %3816 = vst [vmem:[%s38 + $0x3b00] sm:$0xff] %v3815
        %v3817 = vld [vmem:[%s37 + $0x3b08] sm:$0xff]
        %3818 = vst [vmem:[%s38 + $0x3b08] sm:$0xff] %v3817
        %v3819 = vld [vmem:[%s37 + $0x3b10] sm:$0xff]
        %3820 = vst [vmem:[%s38 + $0x3b10] sm:$0xff] %v3819
        %v3821 = vld [vmem:[%s37 + $0x3b18] sm:$0xff]
        %3822 = vst [vmem:[%s38 + $0x3b18] sm:$0xff] %v3821
        %v3823 = vld [vmem:[%s37 + $0x3b20] sm:$0xff]
        %3824 = vst [vmem:[%s38 + $0x3b20] sm:$0xff] %v3823
        %v3825 = vld [vmem:[%s37 + $0x3b28] sm:$0xff]
        %3826 = vst [vmem:[%s38 + $0x3b28] sm:$0xff] %v3825
        %v3827 = vld [vmem:[%s37 + $0x3b30] sm:$0xff]
        %3828 = vst [vmem:[%s38 + $0x3b30] sm:$0xff] %v3827
        %v3829 = vld [vmem:[%s37 + $0x3b38] sm:$0xff]
        %3830 = vst [vmem:[%s38 + $0x3b38] sm:$0xff] %v3829
        %v3831 = vld [vmem:[%s37 + $0x3b40] sm:$0xff]
        %3832 = vst [vmem:[%s38 + $0x3b40] sm:$0xff] %v3831
        %v3833 = vld [vmem:[%s37 + $0x3b48] sm:$0xff]
        %3834 = vst [vmem:[%s38 + $0x3b48] sm:$0xff] %v3833
        %v3835 = vld [vmem:[%s37 + $0x3b50] sm:$0xff]
        %3836 = vst [vmem:[%s38 + $0x3b50] sm:$0xff] %v3835
        %v3837 = vld [vmem:[%s37 + $0x3b58] sm:$0xff]
        %3838 = vst [vmem:[%s38 + $0x3b58] sm:$0xff] %v3837
        %v3839 = vld [vmem:[%s37 + $0x3b60] sm:$0xff]
        %3840 = vst [vmem:[%s38 + $0x3b60] sm:$0xff] %v3839
        %v3841 = vld [vmem:[%s37 + $0x3b68] sm:$0xff]
        %3842 = vst [vmem:[%s38 + $0x3b68] sm:$0xff] %v3841
        %v3843 = vld [vmem:[%s37 + $0x3b70] sm:$0xff]
        %3844 = vst [vmem:[%s38 + $0x3b70] sm:$0xff] %v3843
        %v3845 = vld [vmem:[%s37 + $0x3b78] sm:$0xff]
        %3846 = vst [vmem:[%s38 + $0x3b78] sm:$0xff] %v3845
        %v3847 = vld [vmem:[%s37 + $0x3b80] sm:$0xff]
        %3848 = vst [vmem:[%s38 + $0x3b80] sm:$0xff] %v3847
        %v3849 = vld [vmem:[%s37 + $0x3b88] sm:$0xff]
        %3850 = vst [vmem:[%s38 + $0x3b88] sm:$0xff] %v3849
        %v3851 = vld [vmem:[%s37 + $0x3b90] sm:$0xff]
        %3852 = vst [vmem:[%s38 + $0x3b90] sm:$0xff] %v3851
        %v3853 = vld [vmem:[%s37 + $0x3b98] sm:$0xff]
        %3854 = vst [vmem:[%s38 + $0x3b98] sm:$0xff] %v3853
        %v3855 = vld [vmem:[%s37 + $0x3ba0] sm:$0xff]
        %3856 = vst [vmem:[%s38 + $0x3ba0] sm:$0xff] %v3855
        %v3857 = vld [vmem:[%s37 + $0x3ba8] sm:$0xff]
        %3858 = vst [vmem:[%s38 + $0x3ba8] sm:$0xff] %v3857
        %v3859 = vld [vmem:[%s37 + $0x3bb0] sm:$0xff]
        %3860 = vst [vmem:[%s38 + $0x3bb0] sm:$0xff] %v3859
        %v3861 = vld [vmem:[%s37 + $0x3bb8] sm:$0xff]
        %3862 = vst [vmem:[%s38 + $0x3bb8] sm:$0xff] %v3861
        %v3863 = vld [vmem:[%s37 + $0x3bc0] sm:$0xff]
        %3864 = vst [vmem:[%s38 + $0x3bc0] sm:$0xff] %v3863
        %v3865 = vld [vmem:[%s37 + $0x3bc8] sm:$0xff]
        %3866 = vst [vmem:[%s38 + $0x3bc8] sm:$0xff] %v3865
        %v3867 = vld [vmem:[%s37 + $0x3bd0] sm:$0xff]
        %3868 = vst [vmem:[%s38 + $0x3bd0] sm:$0xff] %v3867
        %v3869 = vld [vmem:[%s37 + $0x3bd8] sm:$0xff]
        %3870 = vst [vmem:[%s38 + $0x3bd8] sm:$0xff] %v3869
        %v3871 = vld [vmem:[%s37 + $0x3be0] sm:$0xff]
        %3872 = vst [vmem:[%s38 + $0x3be0] sm:$0xff] %v3871
        %v3873 = vld [vmem:[%s37 + $0x3be8] sm:$0xff]
        %3874 = vst [vmem:[%s38 + $0x3be8] sm:$0xff] %v3873
        %v3875 = vld [vmem:[%s37 + $0x3bf0] sm:$0xff]
        %3876 = vst [vmem:[%s38 + $0x3bf0] sm:$0xff] %v3875
        %v3877 = vld [vmem:[%s37 + $0x3bf8] sm:$0xff]
        %3878 = vst [vmem:[%s38 + $0x3bf8] sm:$0xff] %v3877
        %v3879 = vld [vmem:[%s37 + $0x3c00] sm:$0xff]
        %3880 = vst [vmem:[%s38 + $0x3c00] sm:$0xff] %v3879
        %v3881 = vld [vmem:[%s37 + $0x3c08] sm:$0xff]
        %3882 = vst [vmem:[%s38 + $0x3c08] sm:$0xff] %v3881
        %v3883 = vld [vmem:[%s37 + $0x3c10] sm:$0xff]
        %3884 = vst [vmem:[%s38 + $0x3c10] sm:$0xff] %v3883
        %v3885 = vld [vmem:[%s37 + $0x3c18] sm:$0xff]
        %3886 = vst [vmem:[%s38 + $0x3c18] sm:$0xff] %v3885
        %v3887 = vld [vmem:[%s37 + $0x3c20] sm:$0xff]
        %3888 = vst [vmem:[%s38 + $0x3c20] sm:$0xff] %v3887
        %v3889 = vld [vmem:[%s37 + $0x3c28] sm:$0xff]
        %3890 = vst [vmem:[%s38 + $0x3c28] sm:$0xff] %v3889
        %v3891 = vld [vmem:[%s37 + $0x3c30] sm:$0xff]
        %3892 = vst [vmem:[%s38 + $0x3c30] sm:$0xff] %v3891
        %v3893 = vld [vmem:[%s37 + $0x3c38] sm:$0xff]
        %3894 = vst [vmem:[%s38 + $0x3c38] sm:$0xff] %v3893
        %v3895 = vld [vmem:[%s37 + $0x3c40] sm:$0xff]
        %3896 = vst [vmem:[%s38 + $0x3c40] sm:$0xff] %v3895
        %v3897 = vld [vmem:[%s37 + $0x3c48] sm:$0xff]
        %3898 = vst [vmem:[%s38 + $0x3c48] sm:$0xff] %v3897
        %v3899 = vld [vmem:[%s37 + $0x3c50] sm:$0xff]
        %3900 = vst [vmem:[%s38 + $0x3c50] sm:$0xff] %v3899
        %v3901 = vld [vmem:[%s37 + $0x3c58] sm:$0xff]
        %3902 = vst [vmem:[%s38 + $0x3c58] sm:$0xff] %v3901
        %v3903 = vld [vmem:[%s37 + $0x3c60] sm:$0xff]
        %3904 = vst [vmem:[%s38 + $0x3c60] sm:$0xff] %v3903
        %v3905 = vld [vmem:[%s37 + $0x3c68] sm:$0xff]
        %3906 = vst [vmem:[%s38 + $0x3c68] sm:$0xff] %v3905
        %v3907 = vld [vmem:[%s37 + $0x3c70] sm:$0xff]
        %3908 = vst [vmem:[%s38 + $0x3c70] sm:$0xff] %v3907
        %v3909 = vld [vmem:[%s37 + $0x3c78] sm:$0xff]
        %3910 = vst [vmem:[%s38 + $0x3c78] sm:$0xff] %v3909
        %v3911 = vld [vmem:[%s37 + $0x3c80] sm:$0xff]
        %3912 = vst [vmem:[%s38 + $0x3c80] sm:$0xff] %v3911
        %v3913 = vld [vmem:[%s37 + $0x3c88] sm:$0xff]
        %3914 = vst [vmem:[%s38 + $0x3c88] sm:$0xff] %v3913
        %v3915 = vld [vmem:[%s37 + $0x3c90] sm:$0xff]
        %3916 = vst [vmem:[%s38 + $0x3c90] sm:$0xff] %v3915
        %v3917 = vld [vmem:[%s37 + $0x3c98] sm:$0xff]
        %3918 = vst [vmem:[%s38 + $0x3c98] sm:$0xff] %v3917
        %v3919 = vld [vmem:[%s37 + $0x3ca0] sm:$0xff]
        %3920 = vst [vmem:[%s38 + $0x3ca0] sm:$0xff] %v3919
        %v3921 = vld [vmem:[%s37 + $0x3ca8] sm:$0xff]
        %3922 = vst [vmem:[%s38 + $0x3ca8] sm:$0xff] %v3921
        %v3923 = vld [vmem:[%s37 + $0x3cb0] sm:$0xff]
        %3924 = vst [vmem:[%s38 + $0x3cb0] sm:$0xff] %v3923
        %v3925 = vld [vmem:[%s37 + $0x3cb8] sm:$0xff]
        %3926 = vst [vmem:[%s38 + $0x3cb8] sm:$0xff] %v3925
        %v3927 = vld [vmem:[%s37 + $0x3cc0] sm:$0xff]
        %3928 = vst [vmem:[%s38 + $0x3cc0] sm:$0xff] %v3927
        %v3929 = vld [vmem:[%s37 + $0x3cc8] sm:$0xff]
        %3930 = vst [vmem:[%s38 + $0x3cc8] sm:$0xff] %v3929
        %v3931 = vld [vmem:[%s37 + $0x3cd0] sm:$0xff]
        %3932 = vst [vmem:[%s38 + $0x3cd0] sm:$0xff] %v3931
        %v3933 = vld [vmem:[%s37 + $0x3cd8] sm:$0xff]
        %3934 = vst [vmem:[%s38 + $0x3cd8] sm:$0xff] %v3933
        %v3935 = vld [vmem:[%s37 + $0x3ce0] sm:$0xff]
        %3936 = vst [vmem:[%s38 + $0x3ce0] sm:$0xff] %v3935
        %v3937 = vld [vmem:[%s37 + $0x3ce8] sm:$0xff]
        %3938 = vst [vmem:[%s38 + $0x3ce8] sm:$0xff] %v3937
        %v3939 = vld [vmem:[%s37 + $0x3cf0] sm:$0xff]
        %3940 = vst [vmem:[%s38 + $0x3cf0] sm:$0xff] %v3939
        %v3941 = vld [vmem:[%s37 + $0x3cf8] sm:$0xff]
        %3942 = vst [vmem:[%s38 + $0x3cf8] sm:$0xff] %v3941
        %v3943 = vld [vmem:[%s37 + $0x3d00] sm:$0xff]
        %3944 = vst [vmem:[%s38 + $0x3d00] sm:$0xff] %v3943
        %v3945 = vld [vmem:[%s37 + $0x3d08] sm:$0xff]
        %3946 = vst [vmem:[%s38 + $0x3d08] sm:$0xff] %v3945
        %v3947 = vld [vmem:[%s37 + $0x3d10] sm:$0xff]
        %3948 = vst [vmem:[%s38 + $0x3d10] sm:$0xff] %v3947
        %v3949 = vld [vmem:[%s37 + $0x3d18] sm:$0xff]
        %3950 = vst [vmem:[%s38 + $0x3d18] sm:$0xff] %v3949
        %v3951 = vld [vmem:[%s37 + $0x3d20] sm:$0xff]
        %3952 = vst [vmem:[%s38 + $0x3d20] sm:$0xff] %v3951
        %v3953 = vld [vmem:[%s37 + $0x3d28] sm:$0xff]
        %3954 = vst [vmem:[%s38 + $0x3d28] sm:$0xff] %v3953
        %v3955 = vld [vmem:[%s37 + $0x3d30] sm:$0xff]
        %3956 = vst [vmem:[%s38 + $0x3d30] sm:$0xff] %v3955
        %v3957 = vld [vmem:[%s37 + $0x3d38] sm:$0xff]
        %3958 = vst [vmem:[%s38 + $0x3d38] sm:$0xff] %v3957
        %v3959 = vld [vmem:[%s37 + $0x3d40] sm:$0xff]
        %3960 = vst [vmem:[%s38 + $0x3d40] sm:$0xff] %v3959
        %v3961 = vld [vmem:[%s37 + $0x3d48] sm:$0xff]
        %3962 = vst [vmem:[%s38 + $0x3d48] sm:$0xff] %v3961
        %v3963 = vld [vmem:[%s37 + $0x3d50] sm:$0xff]
        %3964 = vst [vmem:[%s38 + $0x3d50] sm:$0xff] %v3963
        %v3965 = vld [vmem:[%s37 + $0x3d58] sm:$0xff]
        %3966 = vst [vmem:[%s38 + $0x3d58] sm:$0xff] %v3965
        %v3967 = vld [vmem:[%s37 + $0x3d60] sm:$0xff]
        %3968 = vst [vmem:[%s38 + $0x3d60] sm:$0xff] %v3967
        %v3969 = vld [vmem:[%s37 + $0x3d68] sm:$0xff]
        %3970 = vst [vmem:[%s38 + $0x3d68] sm:$0xff] %v3969
        %v3971 = vld [vmem:[%s37 + $0x3d70] sm:$0xff]
        %3972 = vst [vmem:[%s38 + $0x3d70] sm:$0xff] %v3971
        %v3973 = vld [vmem:[%s37 + $0x3d78] sm:$0xff]
        %3974 = vst [vmem:[%s38 + $0x3d78] sm:$0xff] %v3973
        %v3975 = vld [vmem:[%s37 + $0x3d80] sm:$0xff]
        %3976 = vst [vmem:[%s38 + $0x3d80] sm:$0xff] %v3975
        %v3977 = vld [vmem:[%s37 + $0x3d88] sm:$0xff]
        %3978 = vst [vmem:[%s38 + $0x3d88] sm:$0xff] %v3977
        %v3979 = vld [vmem:[%s37 + $0x3d90] sm:$0xff]
        %3980 = vst [vmem:[%s38 + $0x3d90] sm:$0xff] %v3979
        %v3981 = vld [vmem:[%s37 + $0x3d98] sm:$0xff]
        %3982 = vst [vmem:[%s38 + $0x3d98] sm:$0xff] %v3981
        %v3983 = vld [vmem:[%s37 + $0x3da0] sm:$0xff]
        %3984 = vst [vmem:[%s38 + $0x3da0] sm:$0xff] %v3983
        %v3985 = vld [vmem:[%s37 + $0x3da8] sm:$0xff]
        %3986 = vst [vmem:[%s38 + $0x3da8] sm:$0xff] %v3985
        %v3987 = vld [vmem:[%s37 + $0x3db0] sm:$0xff]
        %3988 = vst [vmem:[%s38 + $0x3db0] sm:$0xff] %v3987
        %v3989 = vld [vmem:[%s37 + $0x3db8] sm:$0xff]
        %3990 = vst [vmem:[%s38 + $0x3db8] sm:$0xff] %v3989
        %v3991 = vld [vmem:[%s37 + $0x3dc0] sm:$0xff]
        %3992 = vst [vmem:[%s38 + $0x3dc0] sm:$0xff] %v3991
        %v3993 = vld [vmem:[%s37 + $0x3dc8] sm:$0xff]
        %3994 = vst [vmem:[%s38 + $0x3dc8] sm:$0xff] %v3993
        %v3995 = vld [vmem:[%s37 + $0x3dd0] sm:$0xff]
        %3996 = vst [vmem:[%s38 + $0x3dd0] sm:$0xff] %v3995
        %v3997 = vld [vmem:[%s37 + $0x3dd8] sm:$0xff]
        %3998 = vst [vmem:[%s38 + $0x3dd8] sm:$0xff] %v3997
        %v3999 = vld [vmem:[%s37 + $0x3de0] sm:$0xff]
        %4000 = vst [vmem:[%s38 + $0x3de0] sm:$0xff] %v3999
        %v4001 = vld [vmem:[%s37 + $0x3de8] sm:$0xff]
        %4002 = vst [vmem:[%s38 + $0x3de8] sm:$0xff] %v4001
        %v4003 = vld [vmem:[%s37 + $0x3df0] sm:$0xff]
        %4004 = vst [vmem:[%s38 + $0x3df0] sm:$0xff] %v4003
        %v4005 = vld [vmem:[%s37 + $0x3df8] sm:$0xff]
        %4006 = vst [vmem:[%s38 + $0x3df8] sm:$0xff] %v4005
        %v4007 = vld [vmem:[%s37 + $0x3e00] sm:$0xff]
        %4008 = vst [vmem:[%s38 + $0x3e00] sm:$0xff] %v4007
        %v4009 = vld [vmem:[%s37 + $0x3e08] sm:$0xff]
        %4010 = vst [vmem:[%s38 + $0x3e08] sm:$0xff] %v4009
        %v4011 = vld [vmem:[%s37 + $0x3e10] sm:$0xff]
        %4012 = vst [vmem:[%s38 + $0x3e10] sm:$0xff] %v4011
        %v4013 = vld [vmem:[%s37 + $0x3e18] sm:$0xff]
        %4014 = vst [vmem:[%s38 + $0x3e18] sm:$0xff] %v4013
        %v4015 = vld [vmem:[%s37 + $0x3e20] sm:$0xff]
        %4016 = vst [vmem:[%s38 + $0x3e20] sm:$0xff] %v4015
        %v4017 = vld [vmem:[%s37 + $0x3e28] sm:$0xff]
        %4018 = vst [vmem:[%s38 + $0x3e28] sm:$0xff] %v4017
        %v4019 = vld [vmem:[%s37 + $0x3e30] sm:$0xff]
        %4020 = vst [vmem:[%s38 + $0x3e30] sm:$0xff] %v4019
        %v4021 = vld [vmem:[%s37 + $0x3e38] sm:$0xff]
        %4022 = vst [vmem:[%s38 + $0x3e38] sm:$0xff] %v4021
        %v4023 = vld [vmem:[%s37 + $0x3e40] sm:$0xff]
        %4024 = vst [vmem:[%s38 + $0x3e40] sm:$0xff] %v4023
        %v4025 = vld [vmem:[%s37 + $0x3e48] sm:$0xff]
        %4026 = vst [vmem:[%s38 + $0x3e48] sm:$0xff] %v4025
        %v4027 = vld [vmem:[%s37 + $0x3e50] sm:$0xff]
        %4028 = vst [vmem:[%s38 + $0x3e50] sm:$0xff] %v4027
        %v4029 = vld [vmem:[%s37 + $0x3e58] sm:$0xff]
        %4030 = vst [vmem:[%s38 + $0x3e58] sm:$0xff] %v4029
        %v4031 = vld [vmem:[%s37 + $0x3e60] sm:$0xff]
        %4032 = vst [vmem:[%s38 + $0x3e60] sm:$0xff] %v4031
        %v4033 = vld [vmem:[%s37 + $0x3e68] sm:$0xff]
        %4034 = vst [vmem:[%s38 + $0x3e68] sm:$0xff] %v4033
        %v4035 = vld [vmem:[%s37 + $0x3e70] sm:$0xff]
        %4036 = vst [vmem:[%s38 + $0x3e70] sm:$0xff] %v4035
        %v4037 = vld [vmem:[%s37 + $0x3e78] sm:$0xff]
        %4038 = vst [vmem:[%s38 + $0x3e78] sm:$0xff] %v4037
        %v4039 = vld [vmem:[%s37 + $0x3e80] sm:$0xff]
        %4040 = vst [vmem:[%s38 + $0x3e80] sm:$0xff] %v4039
        %v4041 = vld [vmem:[%s37 + $0x3e88] sm:$0xff]
        %4042 = vst [vmem:[%s38 + $0x3e88] sm:$0xff] %v4041
        %v4043 = vld [vmem:[%s37 + $0x3e90] sm:$0xff]
        %4044 = vst [vmem:[%s38 + $0x3e90] sm:$0xff] %v4043
        %v4045 = vld [vmem:[%s37 + $0x3e98] sm:$0xff]
        %4046 = vst [vmem:[%s38 + $0x3e98] sm:$0xff] %v4045
        %v4047 = vld [vmem:[%s37 + $0x3ea0] sm:$0xff]
        %4048 = vst [vmem:[%s38 + $0x3ea0] sm:$0xff] %v4047
        %v4049 = vld [vmem:[%s37 + $0x3ea8] sm:$0xff]
        %4050 = vst [vmem:[%s38 + $0x3ea8] sm:$0xff] %v4049
        %v4051 = vld [vmem:[%s37 + $0x3eb0] sm:$0xff]
        %4052 = vst [vmem:[%s38 + $0x3eb0] sm:$0xff] %v4051
        %v4053 = vld [vmem:[%s37 + $0x3eb8] sm:$0xff]
        %4054 = vst [vmem:[%s38 + $0x3eb8] sm:$0xff] %v4053
        %v4055 = vld [vmem:[%s37 + $0x3ec0] sm:$0xff]
        %4056 = vst [vmem:[%s38 + $0x3ec0] sm:$0xff] %v4055
        %v4057 = vld [vmem:[%s37 + $0x3ec8] sm:$0xff]
        %4058 = vst [vmem:[%s38 + $0x3ec8] sm:$0xff] %v4057
        %v4059 = vld [vmem:[%s37 + $0x3ed0] sm:$0xff]
        %4060 = vst [vmem:[%s38 + $0x3ed0] sm:$0xff] %v4059
        %v4061 = vld [vmem:[%s37 + $0x3ed8] sm:$0xff]
        %4062 = vst [vmem:[%s38 + $0x3ed8] sm:$0xff] %v4061
        %v4063 = vld [vmem:[%s37 + $0x3ee0] sm:$0xff]
        %4064 = vst [vmem:[%s38 + $0x3ee0] sm:$0xff] %v4063
        %v4065 = vld [vmem:[%s37 + $0x3ee8] sm:$0xff]
        %4066 = vst [vmem:[%s38 + $0x3ee8] sm:$0xff] %v4065
        %v4067 = vld [vmem:[%s37 + $0x3ef0] sm:$0xff]
        %4068 = vst [vmem:[%s38 + $0x3ef0] sm:$0xff] %v4067
        %v4069 = vld [vmem:[%s37 + $0x3ef8] sm:$0xff]
        %4070 = vst [vmem:[%s38 + $0x3ef8] sm:$0xff] %v4069
        %v4071 = vld [vmem:[%s37 + $0x3f00] sm:$0xff]
        %4072 = vst [vmem:[%s38 + $0x3f00] sm:$0xff] %v4071
        %v4073 = vld [vmem:[%s37 + $0x3f08] sm:$0xff]
        %4074 = vst [vmem:[%s38 + $0x3f08] sm:$0xff] %v4073
        %v4075 = vld [vmem:[%s37 + $0x3f10] sm:$0xff]
        %4076 = vst [vmem:[%s38 + $0x3f10] sm:$0xff] %v4075
        %v4077 = vld [vmem:[%s37 + $0x3f18] sm:$0xff]
        %4078 = vst [vmem:[%s38 + $0x3f18] sm:$0xff] %v4077
        %v4079 = vld [vmem:[%s37 + $0x3f20] sm:$0xff]
        %4080 = vst [vmem:[%s38 + $0x3f20] sm:$0xff] %v4079
        %v4081 = vld [vmem:[%s37 + $0x3f28] sm:$0xff]
        %4082 = vst [vmem:[%s38 + $0x3f28] sm:$0xff] %v4081
        %v4083 = vld [vmem:[%s37 + $0x3f30] sm:$0xff]
        %4084 = vst [vmem:[%s38 + $0x3f30] sm:$0xff] %v4083
        %v4085 = vld [vmem:[%s37 + $0x3f38] sm:$0xff]
        %4086 = vst [vmem:[%s38 + $0x3f38] sm:$0xff] %v4085
        %v4087 = vld [vmem:[%s37 + $0x3f40] sm:$0xff]
        %4088 = vst [vmem:[%s38 + $0x3f40] sm:$0xff] %v4087
        %v4089 = vld [vmem:[%s37 + $0x3f48] sm:$0xff]
        %4090 = vst [vmem:[%s38 + $0x3f48] sm:$0xff] %v4089
        %v4091 = vld [vmem:[%s37 + $0x3f50] sm:$0xff]
        %4092 = vst [vmem:[%s38 + $0x3f50] sm:$0xff] %v4091
        %v4093 = vld [vmem:[%s37 + $0x3f58] sm:$0xff]
        %4094 = vst [vmem:[%s38 + $0x3f58] sm:$0xff] %v4093
        %v4095 = vld [vmem:[%s37 + $0x3f60] sm:$0xff]
        %4096 = vst [vmem:[%s38 + $0x3f60] sm:$0xff] %v4095
        %v4097 = vld [vmem:[%s37 + $0x3f68] sm:$0xff]
        %4098 = vst [vmem:[%s38 + $0x3f68] sm:$0xff] %v4097
        %v4099 = vld [vmem:[%s37 + $0x3f70] sm:$0xff]
        %4100 = vst [vmem:[%s38 + $0x3f70] sm:$0xff] %v4099
        %v4101 = vld [vmem:[%s37 + $0x3f78] sm:$0xff]
        %4102 = vst [vmem:[%s38 + $0x3f78] sm:$0xff] %v4101
        %v4103 = vld [vmem:[%s37 + $0x3f80] sm:$0xff]
        %4104 = vst [vmem:[%s38 + $0x3f80] sm:$0xff] %v4103
        %v4105 = vld [vmem:[%s37 + $0x3f88] sm:$0xff]
        %4106 = vst [vmem:[%s38 + $0x3f88] sm:$0xff] %v4105
        %v4107 = vld [vmem:[%s37 + $0x3f90] sm:$0xff]
        %4108 = vst [vmem:[%s38 + $0x3f90] sm:$0xff] %v4107
        %v4109 = vld [vmem:[%s37 + $0x3f98] sm:$0xff]
        %4110 = vst [vmem:[%s38 + $0x3f98] sm:$0xff] %v4109
        %v4111 = vld [vmem:[%s37 + $0x3fa0] sm:$0xff]
        %4112 = vst [vmem:[%s38 + $0x3fa0] sm:$0xff] %v4111
        %v4113 = vld [vmem:[%s37 + $0x3fa8] sm:$0xff]
        %4114 = vst [vmem:[%s38 + $0x3fa8] sm:$0xff] %v4113
        %v4115 = vld [vmem:[%s37 + $0x3fb0] sm:$0xff]
        %4116 = vst [vmem:[%s38 + $0x3fb0] sm:$0xff] %v4115
        %v4117 = vld [vmem:[%s37 + $0x3fb8] sm:$0xff]
        %4118 = vst [vmem:[%s38 + $0x3fb8] sm:$0xff] %v4117
        %v4119 = vld [vmem:[%s37 + $0x3fc0] sm:$0xff]
        %4120 = vst [vmem:[%s38 + $0x3fc0] sm:$0xff] %v4119
        %v4121 = vld [vmem:[%s37 + $0x3fc8] sm:$0xff]
        %4122 = vst [vmem:[%s38 + $0x3fc8] sm:$0xff] %v4121
        %v4123 = vld [vmem:[%s37 + $0x3fd0] sm:$0xff]
        %4124 = vst [vmem:[%s38 + $0x3fd0] sm:$0xff] %v4123
        %v4125 = vld [vmem:[%s37 + $0x3fd8] sm:$0xff]
        %4126 = vst [vmem:[%s38 + $0x3fd8] sm:$0xff] %v4125
        %v4127 = vld [vmem:[%s37 + $0x3fe0] sm:$0xff]
        %4128 = vst [vmem:[%s38 + $0x3fe0] sm:$0xff] %v4127
        %v4129 = vld [vmem:[%s37 + $0x3fe8] sm:$0xff]
        %4130 = vst [vmem:[%s38 + $0x3fe8] sm:$0xff] %v4129
        %v4131 = vld [vmem:[%s37 + $0x3ff0] sm:$0xff]
        %4132 = vst [vmem:[%s38 + $0x3ff0] sm:$0xff] %v4131
        %v4133 = vld [vmem:[%s37 + $0x3ff8] sm:$0xff]
        %4134 = vst [vmem:[%s38 + $0x3ff8] sm:$0xff] %v4133
      $region25: #{complex_flatten.1} parent=19 // loop_footer
        %s36 = sadd.s32 1, %s32
      $region26: #{complex_flatten.1} parent=19 // loop_footer_branch
        %31 = sbr.rel target = $region22
      $region27: #{complex_flatten.1} parent=19 // loop_exit
        _
    $region20: #{complex_flatten.1} parent=4 // pred_fallthru
      _
    %p4135 = pneg %p27
    // Predicated region
    $region28: #{complex_flatten.1} parent=4 // pred_check
      _
    $region29: #{complex_flatten.1} parent=4 // pred_check_branch
      %4137 = sbr.rel (%p27) target = $region31
    $region30: #{complex_flatten.1} parent=4 // pred_region
      %s4138 = sand.u32 16384, 7
    $region31: #{complex_flatten.1} parent=4 // pred_fallthru
      _
  $region5: #{complex_flatten.1} parent=0 // pred_fallthru
    _
  // Predicated region
  $region6: #{complex_flatten.1} parent=0 // pred_check
    %p11 = pneg %p7
  $region7: #{complex_flatten.1} parent=0 // pred_check_branch
    %13 = sbr.rel (%p11) target = $region9
  $region8: #{complex_flatten.1} parent=0 // pred_region
    %s14 = sshll.u32 1, 16384
    %s15 = ssub.s32 %s14, 1
    loop: start=0, step=1, limit=1
    $region10: #{complex_flatten.1} parent=8 // loop_pre_header
      _
    $region11: #{complex_flatten.1} parent=8 // loop_header
      %s17 = sphi 0, %s21
      %p18 = scmp.ge.s32.totalorder %s17, 1
      %s22 = sphi %s0, %s0
      %s23 = sphi %s1, %s1
    $region12: #{complex_flatten.1} parent=8 // loop_header_branch
      %20 = sbr.rel (%p18) target = $region16
    $region13: #{complex_flatten.1} parent=8 // loop_body
      %v24 = vld [vmem:[%s22] sm:%s15]
      %25 = vst [vmem:[%s23] sm:%s15] %v24
    $region14: #{complex_flatten.1} parent=8 // loop_footer
      %s21 = sadd.s32 1, %s17
    $region15: #{complex_flatten.1} parent=8 // loop_footer_branch
      %16 = sbr.rel target = $region11
    $region16: #{complex_flatten.1} parent=8 // loop_exit
      _
  $region9: #{complex_flatten.1} parent=0 // pred_fallthru
    _
  // Predicated region
  $region32: #{complex_flatten.1} parent=0 // pred_check
    _
  $region33: #{complex_flatten.1} parent=0 // pred_check_branch
    %4141 = sbr.rel (0) target = $region35
  $region34: #{complex_flatten.1} parent=0 // pred_region
    %4142 = vsyncadd [#allocation2], 262144
  $region35: #{complex_flatten.1} parent=0 // pred_fallthru
    _
  %s4143 = smul.u32 2, 8192
  %s4144 = smul.u32 %s4143, 1
  %s4145 = sshll.u32 %s4144, 4
  %4146 = dma.done [#allocation2], %s4145
  %4147 = vsyncmov [#allocation2]
  %s4148 = vpop.sfrf %4147
  %p4149 = scmp.eq.s32.totalorder %s4148, 0
  %p4150 = pneg %p4149
  %4152 = shalt.err (%p4150)

</llo_original>
